<compile_context>
chip_gen: v7x
topology: tpu7x:2x2x1
jax: 0.10.0
libtpu: 0.0.40
codegen_flags: <defaults>
</compile_context>

<pallas_src>
import jax
import jax.numpy as jnp
import numpy as np
from jax.experimental import pallas as pl
from jax.experimental.pallas import tpu as pltpu

# ---- problem sizes (small, consistent with the module: dim divisible by reduction=8) ----
N, H, W = 2, 16, 16
DIM = 16          # channels
RED = 8           # channel-attention reduction
CR = DIM // RED   # hidden channels of channel attention
K1 = 3            # body conv kernel size
K2 = 5            # spatial-attention conv kernel size

LD = W * DIM                       # 256 lanes: pixel-x major, channel minor
R = N * H                          # 32 rows: (n, y)
P1 = (K1 - 1) // 2
P2 = (K2 - 1) // 2
PH1 = ((H + K1 - 1 + 7) // 8) * 8  # 24 padded rows (body-conv y halo)
PH2 = ((H + K2 - 1 + 7) // 8) * 8  # 24 padded rows (SA-conv y halo)


def dau_kernel(x_ref, m1_ref, m2_ref, bsa_ref, wca1t_ref, wca2_ref,
               bd11a_ref, bd11b_ref, e_sa_ref, t_ca_ref, rm_ref,
               o_ref, padb_ref, padsa_ref):
    # Zero the haloed scratches exactly once; only interiors are rewritten below,
    # so the halo rows stay zero ('same' conv padding in y).
    padb_ref[...] = jnp.zeros_like(padb_ref)
    padsa_ref[...] = jnp.zeros_like(padsa_ref)

    x_ld = x_ref[...]                                   # (N, H, LD)
    x_flat = x_ld.reshape(R, LD)

    # ---- 1) body: conv3x3 -> ReLU -> conv3x3, each = 3 per-dy block-banded MXU dots ----
    padb_ref[:, P1:P1 + H, :] = x_ld
    t = jnp.zeros((R, LD), jnp.float32)
    for dy in range(K1):
        slab = padb_ref[:, dy:dy + H, :].reshape(R, LD)
        t = t + jnp.dot(slab, m1_ref[dy], preferred_element_type=jnp.float32)
    t = jnp.maximum(t, 0.0)
    padb_ref[:, P1:P1 + H, :] = t.reshape(N, H, LD)
    res = jnp.zeros((R, LD), jnp.float32)
    for dy in range(K1):
        slab = padb_ref[:, dy:dy + H, :].reshape(R, LD)
        res = res + jnp.dot(slab, m2_ref[dy], preferred_element_type=jnp.float32)

    # ---- 2) spatial attention: [max_c|mean_c] -> banded 5x5 conv (MXU) -> sigmoid -> scale ----
    resr = res.reshape(R, W, DIM)
    cmax = jnp.max(resr, axis=-1)                       # (R, W)
    cmean = jnp.mean(resr, axis=-1)                     # (R, W)
    comp = jnp.concatenate([cmax, cmean], axis=1)       # (R, 2W), channel-major lanes
    padsa_ref[:, P2:P2 + H, :] = comp.reshape(N, H, 2 * W)
    sa_logit = jnp.zeros((R, W), jnp.float32)
    for dy in range(K2):
        slab = padsa_ref[:, dy:dy + H, :].reshape(R, 2 * W)
        sa_logit = sa_logit + jnp.dot(slab, bsa_ref[dy],
                                      preferred_element_type=jnp.float32)
    s_sa = jax.nn.sigmoid(sa_logit)                     # (R, W)   per-pixel scale
    s_sa_exp = jnp.dot(s_sa, e_sa_ref[...],
                       preferred_element_type=jnp.float32)   # (R, LD) repeated over channels

    # ---- 3) channel attention: GAP -> 1x1 -> ReLU -> 1x1 -> sigmoid -> scale ----
    gsum = jnp.sum(res.reshape(N, H, LD), axis=1)       # (N, LD)
    gap = jnp.dot(gsum, rm_ref[...], preferred_element_type=jnp.float32)    # (N, DIM), incl 1/(H*W)
    hid = jnp.maximum(jnp.dot(gap, wca1t_ref[...],
                              preferred_element_type=jnp.float32), 0.0)     # (N, CR)
    s_ca = jax.nn.sigmoid(jnp.dot(hid, wca2_ref[...],
                                  preferred_element_type=jnp.float32))      # (N, DIM)
    s_ca_exp = jnp.dot(s_ca, t_ca_ref[...],
                       preferred_element_type=jnp.float32)                  # (N, LD) tiled over x
    s_ca_full = jnp.broadcast_to(s_ca_exp[:, None, :], (N, H, LD)).reshape(R, LD)

    # ---- 4) fused 1x1 over concat([SA, CA]) (block-diagonal dots) + residual ----
    out = (jnp.dot(res * s_sa_exp, bd11a_ref[...], preferred_element_type=jnp.float32)
           + jnp.dot(res * s_ca_full, bd11b_ref[...], preferred_element_type=jnp.float32)
           + x_flat)
    o_ref[...] = out.astype(o_ref.dtype)                # unmasked lane-dense (32, 256) store


# ---------------- wrapper-side weight expansion (one-time XLA work outside the kernel) ----------------
def _expand_body_weight(w):
    """(K1,K1,DIM,DIM) conv weight -> (K1, LD, LD) per-dy block-banded matrices over x."""
    sel = np.zeros((K1, W, W), np.float32)
    for dx in range(K1):
        for xo in range(W):
            xi = xo + dx - P1
            if 0 <= xi < W:
                sel[dx, xi, xo] = 1.0
    m = jnp.einsum('dio,ydcf->yicof', jnp.asarray(sel), w)   # (K1, W, DIM, W, DIM)
    return m.reshape(K1, LD, LD)


def _expand_sa_weight(wsa):
    """(K2*K2, 2) SA conv weight -> (K2, 2*W, W) banded matrices over the lane (x) axis."""
    wsa_r = wsa.reshape(K2, K2, 2)
    sel = np.zeros((K2, W, W), np.float32)
    for dx in range(K2):
        for xo in range(W):
            xi = xo + dx - P2
            if 0 <= xi < W:
                sel[dx, xi, xo] = 1.0
    b = jnp.einsum('djx,ydc->ycjx', jnp.asarray(sel), wsa_r)  # (K2, 2, W, W)
    return b.reshape(K2, 2 * W, W)


def _expand_1x1(w):
    """(DIM,DIM) 1x1 conv weight -> block-diagonal (LD, LD)."""
    return jnp.einsum('io,cf->icof', jnp.eye(W, dtype=w.dtype), w).reshape(LD, LD)


def _const_mats():
    e_sa = np.zeros((W, LD), np.float32)     # repeat per-pixel SA scale across its DIM channel lanes
    t_ca = np.zeros((DIM, LD), np.float32)   # tile per-channel CA scale across the W pixel groups
    rm = np.zeros((LD, DIM), np.float32)     # fold the x-part of global average pooling (incl 1/(H*W))
    for x in range(W):
        e_sa[x, x * DIM:(x + 1) * DIM] = 1.0
        for ch in range(DIM):
            t_ca[ch, x * DIM + ch] = 1.0
            rm[x * DIM + ch, ch] = 1.0 / (H * W)
    return jnp.asarray(e_sa), jnp.asarray(t_ca), jnp.asarray(rm)


def dau_forward(x, params):
    w1, w2, wsa, wca1, wca2, w11a, w11b = params
    m1 = _expand_body_weight(w1)
    m2 = _expand_body_weight(w2)
    bsa = _expand_sa_weight(wsa)
    bd11a = _expand_1x1(w11a)
    bd11b = _expand_1x1(w11b)
    wca1t = wca1.T                          # (DIM, CR)
    e_sa, t_ca, rm = _const_mats()
    x_ld = x.reshape(N, H, LD)              # contiguous: NHWC -> (N, H, W*DIM), lane-dense

    grid_spec = pltpu.PrefetchScalarGridSpec(
        num_scalar_prefetch=0,
        grid=(1,),   # single grid step: whole batch in one set of matrices, weights stay resident
        in_specs=[
            pl.BlockSpec((N, H, LD), lambda i: (0, 0, 0)),        # x, lane-dense
            pl.BlockSpec((K1, LD, LD), lambda i: (0, 0, 0)),      # body conv1, block-banded per dy
            pl.BlockSpec((K1, LD, LD), lambda i: (0, 0, 0)),      # body conv2
            pl.BlockSpec((K2, 2 * W, W), lambda i: (0, 0, 0)),    # SA 5x5 conv, banded over x
            pl.BlockSpec((DIM, CR), lambda i: (0, 0)),            # CA squeeze (transposed)
            pl.BlockSpec((CR, DIM), lambda i: (0, 0)),            # CA excite
            pl.BlockSpec((LD, LD), lambda i: (0, 0)),             # 1x1, SA half (block-diag)
            pl.BlockSpec((LD, LD), lambda i: (0, 0)),             # 1x1, CA half (block-diag)
            pl.BlockSpec((W, LD), lambda i: (0, 0)),              # SA-scale channel-repeat matrix
            pl.BlockSpec((DIM, LD), lambda i: (0, 0)),            # CA-scale x-tile matrix
            pl.BlockSpec((LD, DIM), lambda i: (0, 0)),            # GAP x-fold matrix
        ],
        out_specs=pl.BlockSpec((R, LD), lambda i: (0, 0)),        # lane-dense (32, 256) output
        scratch_shapes=[
            pltpu.VMEM((N, PH1, LD), jnp.float32),      # zero-haloed body-conv rows
            pltpu.VMEM((N, PH2, 2 * W), jnp.float32),   # zero-haloed [max|mean] rows
        ],
    )
    out_ld = pl.pallas_call(
        dau_kernel,
        out_shape=jax.ShapeDtypeStruct((R, LD), jnp.float32),
        grid_spec=grid_spec,
        compiler_params=pltpu.CompilerParams(dimension_semantics=("arbitrary",)),
    )(x_ld, m1, m2, bsa, wca1t, wca2, bd11a, bd11b, e_sa, t_ca, rm)
    # contiguous reshape back to NHWC (metadata-only in XLA)
    return out_ld.reshape(N, H, W, DIM)


# ---------------- pure-JAX reference (same NHWC layout / same weight layout) ----------------
def _conv_same_ref(x, w):
    kh, kw, cin, cout = w.shape
    ph, pw = (kh - 1) // 2, (kw - 1) // 2
    xp = jnp.pad(x, ((0, 0), (ph, ph), (pw, pw), (0, 0)))
    out = jnp.zeros(x.shape[:3] + (cout,), jnp.float32)
    for dy in range(kh):
        for dx in range(kw):
            out = out + jnp.einsum(
                'nhwc,cd->nhwd',
                xp[:, dy:dy + x.shape[1], dx:dx + x.shape[2], :], w[dy, dx])
    return out


def dau_ref(x, params):
    w1, w2, wsa, wca1, wca2, w11a, w11b = params
    t = jax.nn.relu(_conv_same_ref(x, w1))
    res = _conv_same_ref(t, w2)
    # spatial attention
    cmax = jnp.max(res, axis=3, keepdims=True)
    cmean = jnp.mean(res, axis=3, keepdims=True)
    comp = jnp.concatenate([cmax, cmean], axis=3)
    sa_map = _conv_same_ref(comp, wsa.reshape(K2, K2, 2, 1))
    sa = res * jax.nn.sigmoid(sa_map)
    # channel attention
    gap = jnp.mean(res, axis=(1, 2), keepdims=True)                      # (N,1,1,DIM)
    hid = jax.nn.relu(jnp.einsum('nijc,rc->nijr', gap, wca1))
    ca_scale = jax.nn.sigmoid(jnp.einsum('nijr,rc->nijc', hid, wca2))
    ca = res * ca_scale
    return (jnp.einsum('nhwc,cd->nhwd', sa, w11a)
            + jnp.einsum('nhwc,cd->nhwd', ca, w11b) + x)


if __name__ == "__main__":
    key = jax.random.PRNGKey(0)
    ks = jax.random.split(key, 8)
    s = 0.1
    x = jax.random.normal(ks[0], (N, H, W, DIM), jnp.float32)
    params = (
        s * jax.random.normal(ks[1], (K1, K1, DIM, DIM), jnp.float32),  # body conv1
        s * jax.random.normal(ks[2], (K1, K1, DIM, DIM), jnp.float32),  # body conv2
        s * jax.random.normal(ks[3], (K2 * K2, 2), jnp.float32),        # SA 5x5 conv (2->1)
        s * jax.random.normal(ks[4], (CR, DIM), jnp.float32),           # CA conv1 (DIM->CR)
        s * jax.random.normal(ks[5], (CR, DIM), jnp.float32),           # CA conv2 (CR->DIM)
        s * jax.random.normal(ks[6], (DIM, DIM), jnp.float32),          # 1x1, SA half of concat
        s * jax.random.normal(ks[7], (DIM, DIM), jnp.float32),          # 1x1, CA half of concat
    )

    out = jax.block_until_ready(dau_forward(x, params))
    ref = jax.block_until_ready(dau_ref(x, params))

    assert out.shape == (N, H, W, DIM) and out.dtype == jnp.float32
    if not np.allclose(np.asarray(out), np.asarray(ref), rtol=1e-4, atol=1e-4):
        raise AssertionError(
            f"mismatch vs reference, max abs err = {np.max(np.abs(np.asarray(out) - np.asarray(ref)))}")
    print("KERNEL_OK")
</pallas_src>

<mosaic_0001>
module attributes {stable_mosaic.version = 11 : i64} {
  func.func @dau_kernel(%arg0: i32, %arg1: memref<2x16x256xf32, #tpu.memory_space<vmem>>, %arg2: memref<3x256x256xf32, #tpu.memory_space<vmem>>, %arg3: memref<3x256x256xf32, #tpu.memory_space<vmem>>, %arg4: memref<5x32x16xf32, #tpu.memory_space<vmem>>, %arg5: memref<16x2xf32, #tpu.memory_space<vmem>>, %arg6: memref<2x16xf32, #tpu.memory_space<vmem>>, %arg7: memref<256x256xf32, #tpu.memory_space<vmem>>, %arg8: memref<256x256xf32, #tpu.memory_space<vmem>>, %arg9: memref<16x256xf32, #tpu.memory_space<vmem>>, %arg10: memref<16x256xf32, #tpu.memory_space<vmem>>, %arg11: memref<256x16xf32, #tpu.memory_space<vmem>>, %arg12: memref<32x256xf32, #tpu.memory_space<vmem>>, %arg13: memref<2x24x256xf32, #tpu.memory_space<vmem>>, %arg14: memref<2x24x32xf32, #tpu.memory_space<vmem>>) attributes {dimension_semantics = [#tpu.dimension_semantics<arbitrary>], iteration_bounds = array<i64: 1>, scalar_prefetch = 0 : i64, scratch_operands = 2 : i64, tpu.core_type = #tpu.core_type<tc>, window_params = [{pipeline_mode = #tpu.pipeline_mode<synchronous>, transform_indices = @transform_0, window_bounds = array<i64: 2, 16, 256>}, {pipeline_mode = #tpu.pipeline_mode<synchronous>, transform_indices = @transform_1, window_bounds = array<i64: 3, 256, 256>}, {pipeline_mode = #tpu.pipeline_mode<synchronous>, transform_indices = @transform_2, window_bounds = array<i64: 3, 256, 256>}, {pipeline_mode = #tpu.pipeline_mode<synchronous>, transform_indices = @transform_3, window_bounds = array<i64: 5, 32, 16>}, {pipeline_mode = #tpu.pipeline_mode<synchronous>, transform_indices = @transform_4, window_bounds = array<i64: 16, 2>}, {pipeline_mode = #tpu.pipeline_mode<synchronous>, transform_indices = @transform_5, window_bounds = array<i64: 2, 16>}, {pipeline_mode = #tpu.pipeline_mode<synchronous>, transform_indices = @transform_6, window_bounds = array<i64: 256, 256>}, {pipeline_mode = #tpu.pipeline_mode<synchronous>, transform_indices = @transform_7, window_bounds = array<i64: 256, 256>}, {pipeline_mode = #tpu.pipeline_mode<synchronous>, transform_indices = @transform_8, window_bounds = array<i64: 16, 256>}, {pipeline_mode = #tpu.pipeline_mode<synchronous>, transform_indices = @transform_9, window_bounds = array<i64: 16, 256>}, {pipeline_mode = #tpu.pipeline_mode<synchronous>, transform_indices = @transform_10, window_bounds = array<i64: 256, 16>}, {pipeline_mode = #tpu.pipeline_mode<synchronous>, transform_indices = @transform_11, window_bounds = array<i64: 32, 256>}]} {
    %cst = arith.constant 0.000000e+00 : f32
    %0 = vector.broadcast %cst : f32 to vector<2x24x256xf32>
    %c0 = arith.constant 0 : index
    %c0_0 = arith.constant 0 : index
    %c0_1 = arith.constant 0 : index
    %1 = vector.load %arg13[%c0, %c0_0, %c0_1] : memref<2x24x256xf32, #tpu.memory_space<vmem>>, vector<2x24x256xf32>
    tpu.vector_store %arg13[%c0, %c0_0, %c0_1], %0 {strides = array<i32>} : memref<2x24x256xf32, #tpu.memory_space<vmem>>, vector<2x24x256xf32>,
    %cst_2 = arith.constant 0.000000e+00 : f32
    %2 = vector.broadcast %cst_2 : f32 to vector<2x24x32xf32>
    %c0_3 = arith.constant 0 : index
    %c0_4 = arith.constant 0 : index
    %c0_5 = arith.constant 0 : index
    %3 = vector.load %arg14[%c0_3, %c0_4, %c0_5] : memref<2x24x32xf32, #tpu.memory_space<vmem>>, vector<2x24x32xf32>
    tpu.vector_store %arg14[%c0_3, %c0_4, %c0_5], %2 {strides = array<i32>} : memref<2x24x32xf32, #tpu.memory_space<vmem>>, vector<2x24x32xf32>,
    %c0_6 = arith.constant 0 : index
    %c0_7 = arith.constant 0 : index
    %c0_8 = arith.constant 0 : index
    %4 = vector.load %arg1[%c0_6, %c0_7, %c0_8] : memref<2x16x256xf32, #tpu.memory_space<vmem>>, vector<2x16x256xf32>
    %5 = vector.shape_cast %4 : vector<2x16x256xf32> to vector<32x256xf32>
    %c0_9 = arith.constant 0 : index
    %c1 = arith.constant 1 : index
    %c0_10 = arith.constant 0 : index
    %6 = vector.load %arg13[%c0_9, %c1, %c0_10] : memref<2x24x256xf32, #tpu.memory_space<vmem>>, vector<2x16x256xf32>
    tpu.vector_store %arg13[%c0_9, %c1, %c0_10], %4 {strides = array<i32>} : memref<2x24x256xf32, #tpu.memory_space<vmem>>, vector<2x16x256xf32>,
    %cst_11 = arith.constant 0.000000e+00 : f32
    %7 = vector.broadcast %cst_11 : f32 to vector<32x256xf32>
    %c0_12 = arith.constant 0 : index
    %c0_13 = arith.constant 0 : index
    %c0_14 = arith.constant 0 : index
    %8 = vector.load %arg13[%c0_12, %c0_13, %c0_14] : memref<2x24x256xf32, #tpu.memory_space<vmem>>, vector<2x16x256xf32>
    %9 = vector.shape_cast %8 : vector<2x16x256xf32> to vector<32x256xf32>
    %c0_15 = arith.constant 0 : index
    %c0_16 = arith.constant 0 : index
    %c0_17 = arith.constant 0 : index
    %10 = vector.load %arg2[%c0_15, %c0_16, %c0_17] : memref<3x256x256xf32, #tpu.memory_space<vmem>>, vector<1x256x256xf32>
    %11 = vector.shape_cast %10 : vector<1x256x256xf32> to vector<256x256xf32>
    %cst_18 = arith.constant dense<0.000000e+00> : vector<32x256xf32>
    %12 = tpu.matmul %9, %11, %cst_18 {dimension_numbers = #tpu.dot_dimension_numbers<[1], [0], [0], [1], [0, 0, 1, 1], [], []>} : vector<32x256xf32>, vector<256x256xf32>, vector<32x256xf32> -> vector<32x256xf32>
    %13 = arith.addf %7, %12 : vector<32x256xf32>
    %c0_19 = arith.constant 0 : index
    %c1_20 = arith.constant 1 : index
    %c0_21 = arith.constant 0 : index
    %14 = vector.load %arg13[%c0_19, %c1_20, %c0_21] : memref<2x24x256xf32, #tpu.memory_space<vmem>>, vector<2x16x256xf32>
    %15 = vector.shape_cast %14 : vector<2x16x256xf32> to vector<32x256xf32>
    %c1_22 = arith.constant 1 : index
    %c0_23 = arith.constant 0 : index
    %c0_24 = arith.constant 0 : index
    %16 = vector.load %arg2[%c1_22, %c0_23, %c0_24] : memref<3x256x256xf32, #tpu.memory_space<vmem>>, vector<1x256x256xf32>
    %17 = vector.shape_cast %16 : vector<1x256x256xf32> to vector<256x256xf32>
    %cst_25 = arith.constant dense<0.000000e+00> : vector<32x256xf32>
    %18 = tpu.matmul %15, %17, %cst_25 {dimension_numbers = #tpu.dot_dimension_numbers<[1], [0], [0], [1], [0, 0, 1, 1], [], []>} : vector<32x256xf32>, vector<256x256xf32>, vector<32x256xf32> -> vector<32x256xf32>
    %19 = arith.addf %13, %18 : vector<32x256xf32>
    %c0_26 = arith.constant 0 : index
    %c2 = arith.constant 2 : index
    %c0_27 = arith.constant 0 : index
    %20 = vector.load %arg13[%c0_26, %c2, %c0_27] : memref<2x24x256xf32, #tpu.memory_space<vmem>>, vector<2x16x256xf32>
    %21 = vector.shape_cast %20 : vector<2x16x256xf32> to vector<32x256xf32>
    %c2_28 = arith.constant 2 : index
    %c0_29 = arith.constant 0 : index
    %c0_30 = arith.constant 0 : index
    %22 = vector.load %arg2[%c2_28, %c0_29, %c0_30] : memref<3x256x256xf32, #tpu.memory_space<vmem>>, vector<1x256x256xf32>
    %23 = vector.shape_cast %22 : vector<1x256x256xf32> to vector<256x256xf32>
    %cst_31 = arith.constant dense<0.000000e+00> : vector<32x256xf32>
    %24 = tpu.matmul %21, %23, %cst_31 {dimension_numbers = #tpu.dot_dimension_numbers<[1], [0], [0], [1], [0, 0, 1, 1], [], []>} : vector<32x256xf32>, vector<256x256xf32>, vector<32x256xf32> -> vector<32x256xf32>
    %25 = arith.addf %19, %24 : vector<32x256xf32>
    %cst_32 = arith.constant 0.000000e+00 : f32
    %26 = vector.broadcast %cst_32 : f32 to vector<32x256xf32>
    %27 = arith.maximumf %25, %26 : vector<32x256xf32>
    %28 = vector.shape_cast %27 : vector<32x256xf32> to vector<2x16x256xf32>
    %c0_33 = arith.constant 0 : index
    %c1_34 = arith.constant 1 : index
    %c0_35 = arith.constant 0 : index
    %29 = vector.load %arg13[%c0_33, %c1_34, %c0_35] : memref<2x24x256xf32, #tpu.memory_space<vmem>>, vector<2x16x256xf32>
    tpu.vector_store %arg13[%c0_33, %c1_34, %c0_35], %28 {strides = array<i32>} : memref<2x24x256xf32, #tpu.memory_space<vmem>>, vector<2x16x256xf32>,
    %cst_36 = arith.constant 0.000000e+00 : f32
    %30 = vector.broadcast %cst_36 : f32 to vector<32x256xf32>
    %c0_37 = arith.constant 0 : index
    %c0_38 = arith.constant 0 : index
    %c0_39 = arith.constant 0 : index
    %31 = vector.load %arg13[%c0_37, %c0_38, %c0_39] : memref<2x24x256xf32, #tpu.memory_space<vmem>>, vector<2x16x256xf32>
    %32 = vector.shape_cast %31 : vector<2x16x256xf32> to vector<32x256xf32>
    %c0_40 = arith.constant 0 : index
    %c0_41 = arith.constant 0 : index
    %c0_42 = arith.constant 0 : index
    %33 = vector.load %arg3[%c0_40, %c0_41, %c0_42] : memref<3x256x256xf32, #tpu.memory_space<vmem>>, vector<1x256x256xf32>
    %34 = vector.shape_cast %33 : vector<1x256x256xf32> to vector<256x256xf32>
    %cst_43 = arith.constant dense<0.000000e+00> : vector<32x256xf32>
    %35 = tpu.matmul %32, %34, %cst_43 {dimension_numbers = #tpu.dot_dimension_numbers<[1], [0], [0], [1], [0, 0, 1, 1], [], []>} : vector<32x256xf32>, vector<256x256xf32>, vector<32x256xf32> -> vector<32x256xf32>
    %36 = arith.addf %30, %35 : vector<32x256xf32>
    %c0_44 = arith.constant 0 : index
    %c1_45 = arith.constant 1 : index
    %c0_46 = arith.constant 0 : index
    %37 = vector.load %arg13[%c0_44, %c1_45, %c0_46] : memref<2x24x256xf32, #tpu.memory_space<vmem>>, vector<2x16x256xf32>
    %38 = vector.shape_cast %37 : vector<2x16x256xf32> to vector<32x256xf32>
    %c1_47 = arith.constant 1 : index
    %c0_48 = arith.constant 0 : index
    %c0_49 = arith.constant 0 : index
    %39 = vector.load %arg3[%c1_47, %c0_48, %c0_49] : memref<3x256x256xf32, #tpu.memory_space<vmem>>, vector<1x256x256xf32>
    %40 = vector.shape_cast %39 : vector<1x256x256xf32> to vector<256x256xf32>
    %cst_50 = arith.constant dense<0.000000e+00> : vector<32x256xf32>
    %41 = tpu.matmul %38, %40, %cst_50 {dimension_numbers = #tpu.dot_dimension_numbers<[1], [0], [0], [1], [0, 0, 1, 1], [], []>} : vector<32x256xf32>, vector<256x256xf32>, vector<32x256xf32> -> vector<32x256xf32>
    %42 = arith.addf %36, %41 : vector<32x256xf32>
    %c0_51 = arith.constant 0 : index
    %c2_52 = arith.constant 2 : index
    %c0_53 = arith.constant 0 : index
    %43 = vector.load %arg13[%c0_51, %c2_52, %c0_53] : memref<2x24x256xf32, #tpu.memory_space<vmem>>, vector<2x16x256xf32>
    %44 = vector.shape_cast %43 : vector<2x16x256xf32> to vector<32x256xf32>
    %c2_54 = arith.constant 2 : index
    %c0_55 = arith.constant 0 : index
    %c0_56 = arith.constant 0 : index
    %45 = vector.load %arg3[%c2_54, %c0_55, %c0_56] : memref<3x256x256xf32, #tpu.memory_space<vmem>>, vector<1x256x256xf32>
    %46 = vector.shape_cast %45 : vector<1x256x256xf32> to vector<256x256xf32>
    %cst_57 = arith.constant dense<0.000000e+00> : vector<32x256xf32>
    %47 = tpu.matmul %44, %46, %cst_57 {dimension_numbers = #tpu.dot_dimension_numbers<[1], [0], [0], [1], [0, 0, 1, 1], [], []>} : vector<32x256xf32>, vector<256x256xf32>, vector<32x256xf32> -> vector<32x256xf32>
    %48 = arith.addf %42, %47 : vector<32x256xf32>
    %49 = vector.shape_cast %48 : vector<32x256xf32> to vector<32x16x16xf32>
    %cst_58 = arith.constant dense<0xFF800000> : vector<32x16xf32>
    %50 = vector.multi_reduction <maximumf>, %49, %cst_58 [2] : vector<32x16x16xf32> to vector<32x16xf32>
    %cst_59 = arith.constant dense<0.000000e+00> : vector<32x16xf32>
    %51 = vector.multi_reduction <add>, %49, %cst_59 [2] : vector<32x16x16xf32> to vector<32x16xf32>
    %cst_60 = arith.constant 1.600000e+01 : f32
    %52 = vector.broadcast %cst_60 : f32 to vector<32x16xf32>
    %53 = arith.divf %51, %52 : vector<32x16xf32>
    %54 = tpu.concatenate %50, %53 in 1 : vector<32x16xf32>, vector<32x16xf32> -> vector<32x32xf32>
    %55 = vector.shape_cast %54 : vector<32x32xf32> to vector<2x16x32xf32>
    %c0_61 = arith.constant 0 : index
    %c2_62 = arith.constant 2 : index
    %c0_63 = arith.constant 0 : index
    %56 = vector.load %arg14[%c0_61, %c2_62, %c0_63] : memref<2x24x32xf32, #tpu.memory_space<vmem>>, vector<2x16x32xf32>
    tpu.vector_store %arg14[%c0_61, %c2_62, %c0_63], %55 {strides = array<i32>} : memref<2x24x32xf32, #tpu.memory_space<vmem>>, vector<2x16x32xf32>,
    %cst_64 = arith.constant 0.000000e+00 : f32
    %57 = vector.broadcast %cst_64 : f32 to vector<32x16xf32>
    %c0_65 = arith.constant 0 : index
    %c0_66 = arith.constant 0 : index
    %c0_67 = arith.constant 0 : index
    %58 = vector.load %arg14[%c0_65, %c0_66, %c0_67] : memref<2x24x32xf32, #tpu.memory_space<vmem>>, vector<2x16x32xf32>
    %59 = vector.shape_cast %58 : vector<2x16x32xf32> to vector<32x32xf32>
    %c0_68 = arith.constant 0 : index
    %c0_69 = arith.constant 0 : index
    %c0_70 = arith.constant 0 : index
    %60 = vector.load %arg4[%c0_68, %c0_69, %c0_70] : memref<5x32x16xf32, #tpu.memory_space<vmem>>, vector<1x32x16xf32>
    %61 = vector.shape_cast %60 : vector<1x32x16xf32> to vector<32x16xf32>
    %cst_71 = arith.constant dense<0.000000e+00> : vector<32x16xf32>
    %62 = tpu.matmul %59, %61, %cst_71 {dimension_numbers = #tpu.dot_dimension_numbers<[1], [0], [0], [1], [0, 0, 1, 1], [], []>} : vector<32x32xf32>, vector<32x16xf32>, vector<32x16xf32> -> vector<32x16xf32>
    %63 = arith.addf %57, %62 : vector<32x16xf32>
    %c0_72 = arith.constant 0 : index
    %c1_73 = arith.constant 1 : index
    %c0_74 = arith.constant 0 : index
    %64 = vector.load %arg14[%c0_72, %c1_73, %c0_74] : memref<2x24x32xf32, #tpu.memory_space<vmem>>, vector<2x16x32xf32>
    %65 = vector.shape_cast %64 : vector<2x16x32xf32> to vector<32x32xf32>
    %c1_75 = arith.constant 1 : index
    %c0_76 = arith.constant 0 : index
    %c0_77 = arith.constant 0 : index
    %66 = vector.load %arg4[%c1_75, %c0_76, %c0_77] : memref<5x32x16xf32, #tpu.memory_space<vmem>>, vector<1x32x16xf32>
    %67 = vector.shape_cast %66 : vector<1x32x16xf32> to vector<32x16xf32>
    %cst_78 = arith.constant dense<0.000000e+00> : vector<32x16xf32>
    %68 = tpu.matmul %65, %67, %cst_78 {dimension_numbers = #tpu.dot_dimension_numbers<[1], [0], [0], [1], [0, 0, 1, 1], [], []>} : vector<32x32xf32>, vector<32x16xf32>, vector<32x16xf32> -> vector<32x16xf32>
    %69 = arith.addf %63, %68 : vector<32x16xf32>
    %c0_79 = arith.constant 0 : index
    %c2_80 = arith.constant 2 : index
    %c0_81 = arith.constant 0 : index
    %70 = vector.load %arg14[%c0_79, %c2_80, %c0_81] : memref<2x24x32xf32, #tpu.memory_space<vmem>>, vector<2x16x32xf32>
    %71 = vector.shape_cast %70 : vector<2x16x32xf32> to vector<32x32xf32>
    %c2_82 = arith.constant 2 : index
    %c0_83 = arith.constant 0 : index
    %c0_84 = arith.constant 0 : index
    %72 = vector.load %arg4[%c2_82, %c0_83, %c0_84] : memref<5x32x16xf32, #tpu.memory_space<vmem>>, vector<1x32x16xf32>
    %73 = vector.shape_cast %72 : vector<1x32x16xf32> to vector<32x16xf32>
    %cst_85 = arith.constant dense<0.000000e+00> : vector<32x16xf32>
    %74 = tpu.matmul %71, %73, %cst_85 {dimension_numbers = #tpu.dot_dimension_numbers<[1], [0], [0], [1], [0, 0, 1, 1], [], []>} : vector<32x32xf32>, vector<32x16xf32>, vector<32x16xf32> -> vector<32x16xf32>
    %75 = arith.addf %69, %74 : vector<32x16xf32>
    %c0_86 = arith.constant 0 : index
    %c3 = arith.constant 3 : index
    %c0_87 = arith.constant 0 : index
    %76 = vector.load %arg14[%c0_86, %c3, %c0_87] : memref<2x24x32xf32, #tpu.memory_space<vmem>>, vector<2x16x32xf32>
    %77 = vector.shape_cast %76 : vector<2x16x32xf32> to vector<32x32xf32>
    %c3_88 = arith.constant 3 : index
    %c0_89 = arith.constant 0 : index
    %c0_90 = arith.constant 0 : index
    %78 = vector.load %arg4[%c3_88, %c0_89, %c0_90] : memref<5x32x16xf32, #tpu.memory_space<vmem>>, vector<1x32x16xf32>
    %79 = vector.shape_cast %78 : vector<1x32x16xf32> to vector<32x16xf32>
    %cst_91 = arith.constant dense<0.000000e+00> : vector<32x16xf32>
    %80 = tpu.matmul %77, %79, %cst_91 {dimension_numbers = #tpu.dot_dimension_numbers<[1], [0], [0], [1], [0, 0, 1, 1], [], []>} : vector<32x32xf32>, vector<32x16xf32>, vector<32x16xf32> -> vector<32x16xf32>
    %81 = arith.addf %75, %80 : vector<32x16xf32>
    %c0_92 = arith.constant 0 : index
    %c4 = arith.constant 4 : index
    %c0_93 = arith.constant 0 : index
    %82 = vector.load %arg14[%c0_92, %c4, %c0_93] : memref<2x24x32xf32, #tpu.memory_space<vmem>>, vector<2x16x32xf32>
    %83 = vector.shape_cast %82 : vector<2x16x32xf32> to vector<32x32xf32>
    %c4_94 = arith.constant 4 : index
    %c0_95 = arith.constant 0 : index
    %c0_96 = arith.constant 0 : index
    %84 = vector.load %arg4[%c4_94, %c0_95, %c0_96] : memref<5x32x16xf32, #tpu.memory_space<vmem>>, vector<1x32x16xf32>
    %85 = vector.shape_cast %84 : vector<1x32x16xf32> to vector<32x16xf32>
    %cst_97 = arith.constant dense<0.000000e+00> : vector<32x16xf32>
    %86 = tpu.matmul %83, %85, %cst_97 {dimension_numbers = #tpu.dot_dimension_numbers<[1], [0], [0], [1], [0, 0, 1, 1], [], []>} : vector<32x32xf32>, vector<32x16xf32>, vector<32x16xf32> -> vector<32x16xf32>
    %87 = arith.addf %81, %86 : vector<32x16xf32>
    %88 = arith.negf %87 : vector<32x16xf32>
    %89 = math.exp %88 : vector<32x16xf32>
    %cst_98 = arith.constant 1.000000e+00 : f32
    %90 = vector.broadcast %cst_98 : f32 to vector<32x16xf32>
    %91 = arith.addf %90, %89 : vector<32x16xf32>
    %92 = arith.divf %90, %91 : vector<32x16xf32>
    %c0_99 = arith.constant 0 : index
    %c0_100 = arith.constant 0 : index
    %93 = vector.load %arg9[%c0_99, %c0_100] : memref<16x256xf32, #tpu.memory_space<vmem>>, vector<16x256xf32>
    %cst_101 = arith.constant dense<0.000000e+00> : vector<32x256xf32>
    %94 = tpu.matmul %92, %93, %cst_101 {dimension_numbers = #tpu.dot_dimension_numbers<[1], [0], [0], [1], [0, 0, 1, 1], [], []>} : vector<32x16xf32>, vector<16x256xf32>, vector<32x256xf32> -> vector<32x256xf32>
    %95 = vector.shape_cast %48 : vector<32x256xf32> to vector<2x16x256xf32>
    %cst_102 = arith.constant dense<0.000000e+00> : vector<2x256xf32>
    %96 = vector.multi_reduction <add>, %95, %cst_102 [1] : vector<2x16x256xf32> to vector<2x256xf32>
    %c0_103 = arith.constant 0 : index
    %c0_104 = arith.constant 0 : index
    %97 = vector.load %arg11[%c0_103, %c0_104] : memref<256x16xf32, #tpu.memory_space<vmem>>, vector<256x16xf32>
    %cst_105 = arith.constant dense<0.000000e+00> : vector<2x16xf32>
    %98 = tpu.matmul %96, %97, %cst_105 {dimension_numbers = #tpu.dot_dimension_numbers<[1], [0], [0], [1], [0, 0, 1, 1], [], []>} : vector<2x256xf32>, vector<256x16xf32>, vector<2x16xf32> -> vector<2x16xf32>
    %c0_106 = arith.constant 0 : index
    %c0_107 = arith.constant 0 : index
    %99 = vector.load %arg5[%c0_106, %c0_107] : memref<16x2xf32, #tpu.memory_space<vmem>>, vector<16x2xf32>
    %cst_108 = arith.constant dense<0.000000e+00> : vector<2x2xf32>
    %100 = tpu.matmul %98, %99, %cst_108 {dimension_numbers = #tpu.dot_dimension_numbers<[1], [0], [0], [1], [0, 0, 1, 1], [], []>} : vector<2x16xf32>, vector<16x2xf32>, vector<2x2xf32> -> vector<2x2xf32>
    %cst_109 = arith.constant 0.000000e+00 : f32
    %101 = vector.broadcast %cst_109 : f32 to vector<2x2xf32>
    %102 = arith.maximumf %100, %101 : vector<2x2xf32>
    %c0_110 = arith.constant 0 : index
    %c0_111 = arith.constant 0 : index
    %103 = vector.load %arg6[%c0_110, %c0_111] : memref<2x16xf32, #tpu.memory_space<vmem>>, vector<2x16xf32>
    %cst_112 = arith.constant dense<0.000000e+00> : vector<2x16xf32>
    %104 = tpu.matmul %102, %103, %cst_112 {dimension_numbers = #tpu.dot_dimension_numbers<[1], [0], [0], [1], [0, 0, 1, 1], [], []>} : vector<2x2xf32>, vector<2x16xf32>, vector<2x16xf32> -> vector<2x16xf32>
    %105 = arith.negf %104 : vector<2x16xf32>
    %106 = math.exp %105 : vector<2x16xf32>
    %cst_113 = arith.constant 1.000000e+00 : f32
    %107 = vector.broadcast %cst_113 : f32 to vector<2x16xf32>
    %108 = arith.addf %107, %106 : vector<2x16xf32>
    %109 = arith.divf %107, %108 : vector<2x16xf32>
    %c0_114 = arith.constant 0 : index
    %c0_115 = arith.constant 0 : index
    %110 = vector.load %arg10[%c0_114, %c0_115] : memref<16x256xf32, #tpu.memory_space<vmem>>, vector<16x256xf32>
    %cst_116 = arith.constant dense<0.000000e+00> : vector<2x256xf32>
    %111 = tpu.matmul %109, %110, %cst_116 {dimension_numbers = #tpu.dot_dimension_numbers<[1], [0], [0], [1], [0, 0, 1, 1], [], []>} : vector<2x16xf32>, vector<16x256xf32>, vector<2x256xf32> -> vector<2x256xf32>
    %112 = vector.shape_cast %111 : vector<2x256xf32> to vector<2x1x256xf32>
    %113 = vector.shape_cast %112 : vector<2x1x256xf32> to vector<2x1x256xf32>
    %114 = vector.broadcast %113 : vector<2x1x256xf32> to vector<2x16x256xf32>
    %115 = vector.shape_cast %114 : vector<2x16x256xf32> to vector<32x256xf32>
    %116 = arith.mulf %48, %94 : vector<32x256xf32>
    %c0_117 = arith.constant 0 : index
    %c0_118 = arith.constant 0 : index
    %117 = vector.load %arg7[%c0_117, %c0_118] : memref<256x256xf32, #tpu.memory_space<vmem>>, vector<256x256xf32>
    %cst_119 = arith.constant dense<0.000000e+00> : vector<32x256xf32>
    %118 = tpu.matmul %116, %117, %cst_119 {dimension_numbers = #tpu.dot_dimension_numbers<[1], [0], [0], [1], [0, 0, 1, 1], [], []>} : vector<32x256xf32>, vector<256x256xf32>, vector<32x256xf32> -> vector<32x256xf32>
    %119 = arith.mulf %48, %115 : vector<32x256xf32>
    %c0_120 = arith.constant 0 : index
    %c0_121 = arith.constant 0 : index
    %120 = vector.load %arg8[%c0_120, %c0_121] : memref<256x256xf32, #tpu.memory_space<vmem>>, vector<256x256xf32>
    %cst_122 = arith.constant dense<0.000000e+00> : vector<32x256xf32>
    %121 = tpu.matmul %119, %120, %cst_122 {dimension_numbers = #tpu.dot_dimension_numbers<[1], [0], [0], [1], [0, 0, 1, 1], [], []>} : vector<32x256xf32>, vector<256x256xf32>, vector<32x256xf32> -> vector<32x256xf32>
    %122 = arith.addf %118, %121 : vector<32x256xf32>
    %123 = arith.addf %122, %5 : vector<32x256xf32>
    %c0_123 = arith.constant 0 : index
    %c0_124 = arith.constant 0 : index
    %124 = vector.load %arg12[%c0_123, %c0_124] : memref<32x256xf32, #tpu.memory_space<vmem>>, vector<32x256xf32>
    tpu.vector_store %arg12[%c0_123, %c0_124], %123 {strides = array<i32>} : memref<32x256xf32, #tpu.memory_space<vmem>>, vector<32x256xf32>,
    return
  }
  func.func @transform_0(%arg0: i32) -> (i32, i32, i32) {
    %c0_i32 = arith.constant 0 : i32
    %c0_i32_0 = arith.constant 0 : i32
    %c0_i32_1 = arith.constant 0 : i32
    %c0_i32_2 = arith.constant 0 : i32
    return %c0_i32, %c0_i32_0, %c0_i32_1 : i32, i32, i32
  }
  func.func @transform_1(%arg0: i32) -> (i32, i32, i32) {
    %c0_i32 = arith.constant 0 : i32
    %c0_i32_0 = arith.constant 0 : i32
    %c0_i32_1 = arith.constant 0 : i32
    %c0_i32_2 = arith.constant 0 : i32
    return %c0_i32, %c0_i32_0, %c0_i32_1 : i32, i32, i32
  }
  func.func @transform_2(%arg0: i32) -> (i32, i32, i32) {
    %c0_i32 = arith.constant 0 : i32
    %c0_i32_0 = arith.constant 0 : i32
    %c0_i32_1 = arith.constant 0 : i32
    %c0_i32_2 = arith.constant 0 : i32
    return %c0_i32, %c0_i32_0, %c0_i32_1 : i32, i32, i32
  }
  func.func @transform_3(%arg0: i32) -> (i32, i32, i32) {
    %c0_i32 = arith.constant 0 : i32
    %c0_i32_0 = arith.constant 0 : i32
    %c0_i32_1 = arith.constant 0 : i32
    %c0_i32_2 = arith.constant 0 : i32
    return %c0_i32, %c0_i32_0, %c0_i32_1 : i32, i32, i32
  }
  func.func @transform_4(%arg0: i32) -> (i32, i32) {
    %c0_i32 = arith.constant 0 : i32
    %c0_i32_0 = arith.constant 0 : i32
    %c0_i32_1 = arith.constant 0 : i32
    return %c0_i32, %c0_i32_0 : i32, i32
  }
  func.func @transform_5(%arg0: i32) -> (i32, i32) {
    %c0_i32 = arith.constant 0 : i32
    %c0_i32_0 = arith.constant 0 : i32
    %c0_i32_1 = arith.constant 0 : i32
    return %c0_i32, %c0_i32_0 : i32, i32
  }
  func.func @transform_6(%arg0: i32) -> (i32, i32) {
    %c0_i32 = arith.constant 0 : i32
    %c0_i32_0 = arith.constant 0 : i32
    %c0_i32_1 = arith.constant 0 : i32
    return %c0_i32, %c0_i32_0 : i32, i32
  }
  func.func @transform_7(%arg0: i32) -> (i32, i32) {
    %c0_i32 = arith.constant 0 : i32
    %c0_i32_0 = arith.constant 0 : i32
    %c0_i32_1 = arith.constant 0 : i32
    return %c0_i32, %c0_i32_0 : i32, i32
  }
  func.func @transform_8(%arg0: i32) -> (i32, i32) {
    %c0_i32 = arith.constant 0 : i32
    %c0_i32_0 = arith.constant 0 : i32
    %c0_i32_1 = arith.constant 0 : i32
    return %c0_i32, %c0_i32_0 : i32, i32
  }
  func.func @transform_9(%arg0: i32) -> (i32, i32) {
    %c0_i32 = arith.constant 0 : i32
    %c0_i32_0 = arith.constant 0 : i32
    %c0_i32_1 = arith.constant 0 : i32
    return %c0_i32, %c0_i32_0 : i32, i32
  }
  func.func @transform_10(%arg0: i32) -> (i32, i32) {
    %c0_i32 = arith.constant 0 : i32
    %c0_i32_0 = arith.constant 0 : i32
    %c0_i32_1 = arith.constant 0 : i32
    return %c0_i32, %c0_i32_0 : i32, i32
  }
  func.func @transform_11(%arg0: i32) -> (i32, i32) {
    %c0_i32 = arith.constant 0 : i32
    %c0_i32_0 = arith.constant 0 : i32
    %c0_i32_1 = arith.constant 0 : i32
    return %c0_i32, %c0_i32_0 : i32, i32
  }
}

</mosaic_0001>

<llo_original>
// kernel: tpu_custom_call.1
$region0: #{tpu_custom_call.1}
  #allocation0 [shape = 'u32[]', space=smem, size = 0x4, offset = 0x4, fixed_abs, tag = 'smem constant byte address 0x4 - core index']
  #allocation1 [shape = 'u32[144,128]{1,0:T(1,128)}', space=vmem, size = 0x12000, scoped, tag = 'internal scratch']
  #allocation2 [shape = 'f32[2,24,256]{2,1,0:T(8,128)}', space=vmem, size = 0xc000, scoped, tag = 'scratch operand']
  #allocation3 [shape = 'f32[2,24,32]{2,1,0:T(8,128)}', space=vmem, size = 0x6000, scoped, tag = 'scratch operand']
  %s0 = inlined_call_operand.hbm [shape: f32[2,16,256], index: 0, kind: input, shape index: {}]
  %s1 = inlined_call_operand.hbm [shape: f32[3,256,256], index: 1, kind: input, shape index: {}]
  %s2 = inlined_call_operand.hbm [shape: f32[3,256,256], index: 2, kind: input, shape index: {}]
  %s3 = inlined_call_operand.vmem [shape: f32[5,32,16], index: 3, kind: input, shape index: {}]
  %s4 = inlined_call_operand.vmem [shape: f32[16,2], index: 4, kind: input, shape index: {}]
  %s5 = inlined_call_operand.hbm [shape: f32[2,16], index: 5, kind: input, shape index: {}]
  %s6 = inlined_call_operand.vmem [shape: f32[256,256], index: 6, kind: input, shape index: {}]
  %s7 = inlined_call_operand.hbm [shape: f32[256,256], index: 7, kind: input, shape index: {}]
  %s8 = inlined_call_operand.vmem [shape: f32[16,256], index: 8, kind: input, shape index: {}]
  %s9 = inlined_call_operand.vmem [shape: f32[16,256], index: 9, kind: input, shape index: {}]
  %s10 = inlined_call_operand.vmem [shape: f32[256,16], index: 10, kind: input, shape index: {}]
  %s11 = inlined_call_operand.hbm [shape: f32[32,256], index: 11, kind: output, shape index: {}]
  %s12 = sld [smem:[#allocation0]]
  $region74: #{tpu_custom_call.1} parent=0
    _
  %s14 = ssub.s32 1, %s12
  %s15 = scalar_select 0, %s14, %s12
  $region1: #{tpu_custom_call.1} parent=0
    #allocation4 [shape = 'u8[32768]{0}', space=vmem, size = 0x8000, scoped, tag = 'input window, operand 0, single buffered']
    #allocation5 [shape = 's32[1]{0}', space=sflag, size = 0x4, scoped, tag = 'scoped memory for tpu_custom_call.1']
    #allocation6 [shape = 's32[1]{0}', space=sflag, size = 0x4, scoped, tag = 'scoped memory for tpu_custom_call.1']
    #allocation7 [shape = 'u8[786432]{0}', space=vmem, size = 0xc0000, scoped, tag = 'input window, operand 1, single buffered']
    #allocation8 [shape = 's32[1]{0}', space=sflag, size = 0x4, scoped, tag = 'scoped memory for tpu_custom_call.1']
    #allocation9 [shape = 'u8[786432]{0}', space=vmem, size = 0xc0000, scoped, tag = 'input window, operand 2, single buffered']
    #allocation10 [shape = 'u8[1024]{0}', space=vmem, size = 0x400, scoped, tag = 'input window, operand 5, single buffered']
    #allocation11 [shape = 's32[1]{0}', space=sflag, size = 0x4, scoped, tag = 'scoped memory for tpu_custom_call.1']
    #allocation12 [shape = 'u8[262144]{0}', space=vmem, size = 0x40000, scoped, tag = 'input window, operand 7, single buffered']
    #allocation13 [shape = 'u8[32768]{0}', space=vmem, size = 0x8000, scoped, tag = 'output window, operand 0, single buffered']
    %16 = vsyncpa [#allocation5], 0
    %17 = vsyncpa [#allocation8], 0
    %18 = vsyncpa [#allocation11], 0
    %19 = vsyncpa [#allocation6], 0
    // Predicated region
    $region2: #{tpu_custom_call.1} parent=1 // pred_check
      _
    $region3: #{tpu_custom_call.1} parent=1 // pred_check_branch
      %21 = sbr.rel (0) target = $region5
    $region4: #{tpu_custom_call.1} parent=1 // pred_region
      %s23 = ssub.s32 1024, 1024
      %24 = vsyncadd [#allocation5], %s23
      %s25 = sshll.u32 [#allocation4], 4
      %s26 = int_to_ptr.vmem [resolvable:$true] %s25
      %31 = dma.hbm_to_vmem [thread:$0]  %s0, 1024, %s26, [#allocation5], 256, 256, 16
    $region5: #{tpu_custom_call.1} parent=1 // pred_fallthru
      _
    // Predicated region
    $region6: #{tpu_custom_call.1} parent=1 // pred_check
      _
    $region7: #{tpu_custom_call.1} parent=1 // pred_check_branch
      %33 = sbr.rel (0) target = $region9
    $region8: #{tpu_custom_call.1} parent=1 // pred_region
      %s35 = ssub.s32 24576, 24576
      %36 = vsyncadd [#allocation8], %s35
      %s37 = sshll.u32 [#allocation7], 4
      %s38 = int_to_ptr.vmem [resolvable:$true] %s37
      %43 = dma.hbm_to_vmem [thread:$0]  %s1, 24576, %s38, [#allocation8], 256, 256, 16
    $region9: #{tpu_custom_call.1} parent=1 // pred_fallthru
      _
    // Predicated region
    $region10: #{tpu_custom_call.1} parent=1 // pred_check
      _
    $region11: #{tpu_custom_call.1} parent=1 // pred_check_branch
      %45 = sbr.rel (0) target = $region13
    $region12: #{tpu_custom_call.1} parent=1 // pred_region
      %s47 = ssub.s32 24576, 24576
      %48 = vsyncadd [#allocation8], %s47
      %s49 = sshll.u32 [#allocation9], 4
      %s50 = int_to_ptr.vmem [resolvable:$true] %s49
      %55 = dma.hbm_to_vmem [thread:$0]  %s2, 24576, %s50, [#allocation8], 256, 256, 16
    $region13: #{tpu_custom_call.1} parent=1 // pred_fallthru
      _
    // Predicated region
    $region14: #{tpu_custom_call.1} parent=1 // pred_check
      _
    $region15: #{tpu_custom_call.1} parent=1 // pred_check_branch
      %57 = sbr.rel (0) target = $region17
    $region16: #{tpu_custom_call.1} parent=1 // pred_region
      _
    $region17: #{tpu_custom_call.1} parent=1 // pred_fallthru
      _
    // Predicated region
    $region18: #{tpu_custom_call.1} parent=1 // pred_check
      _
    $region19: #{tpu_custom_call.1} parent=1 // pred_check_branch
      %59 = sbr.rel (0) target = $region21
    $region20: #{tpu_custom_call.1} parent=1 // pred_region
      _
    $region21: #{tpu_custom_call.1} parent=1 // pred_fallthru
      _
    // Predicated region
    $region22: #{tpu_custom_call.1} parent=1 // pred_check
      _
    $region23: #{tpu_custom_call.1} parent=1 // pred_check_branch
      %61 = sbr.rel (0) target = $region25
    $region24: #{tpu_custom_call.1} parent=1 // pred_region
      %s63 = ssub.s32 32, 32
      %64 = vsyncadd [#allocation11], %s63
      %s66 = sshll.u32 [#allocation10], 4
      %s67 = int_to_ptr.vmem [resolvable:$true] %s66
      %69 = dma.hbm_to_vmem [thread:$0]  %s5, 32, %s67, [#allocation11]
    $region25: #{tpu_custom_call.1} parent=1 // pred_fallthru
      _
    // Predicated region
    $region26: #{tpu_custom_call.1} parent=1 // pred_check
      _
    $region27: #{tpu_custom_call.1} parent=1 // pred_check_branch
      %71 = sbr.rel (0) target = $region29
    $region28: #{tpu_custom_call.1} parent=1 // pred_region
      _
    $region29: #{tpu_custom_call.1} parent=1 // pred_fallthru
      _
    // Predicated region
    $region30: #{tpu_custom_call.1} parent=1 // pred_check
      _
    $region31: #{tpu_custom_call.1} parent=1 // pred_check_branch
      %73 = sbr.rel (0) target = $region33
    $region32: #{tpu_custom_call.1} parent=1 // pred_region
      %s75 = ssub.s32 8192, 8192
      %76 = vsyncadd [#allocation11], %s75
      %s77 = sshll.u32 [#allocation12], 4
      %s78 = int_to_ptr.vmem [resolvable:$true] %s77
      %83 = dma.hbm_to_vmem [thread:$0]  %s7, 8192, %s78, [#allocation11], 256, 256, 16
    $region33: #{tpu_custom_call.1} parent=1 // pred_fallthru
      _
    // Predicated region
    $region34: #{tpu_custom_call.1} parent=1 // pred_check
      _
    $region35: #{tpu_custom_call.1} parent=1 // pred_check_branch
      %85 = sbr.rel (0) target = $region37
    $region36: #{tpu_custom_call.1} parent=1 // pred_region
      _
    $region37: #{tpu_custom_call.1} parent=1 // pred_fallthru
      _
    // Predicated region
    $region38: #{tpu_custom_call.1} parent=1 // pred_check
      _
    $region39: #{tpu_custom_call.1} parent=1 // pred_check_branch
      %87 = sbr.rel (0) target = $region41
    $region40: #{tpu_custom_call.1} parent=1 // pred_region
      _
    $region41: #{tpu_custom_call.1} parent=1 // pred_fallthru
      _
    // Predicated region
    $region42: #{tpu_custom_call.1} parent=1 // pred_check
      _
    $region43: #{tpu_custom_call.1} parent=1 // pred_check_branch
      %89 = sbr.rel (0) target = $region45
    $region44: #{tpu_custom_call.1} parent=1 // pred_region
      _
    $region45: #{tpu_custom_call.1} parent=1 // pred_fallthru
      _
    // Predicated region
    $region46: #{tpu_custom_call.1} parent=1 // pred_check
      _
    $region47: #{tpu_custom_call.1} parent=1 // pred_check_branch
      %91 = sbr.rel (0) target = $region49
    $region48: #{tpu_custom_call.1} parent=1 // pred_region
      %92 = dma.done [#allocation5], 1024
    $region49: #{tpu_custom_call.1} parent=1 // pred_fallthru
      _
    // Predicated region
    $region50: #{tpu_custom_call.1} parent=1 // pred_check
      _
    $region51: #{tpu_custom_call.1} parent=1 // pred_check_branch
      %94 = sbr.rel (0) target = $region53
    $region52: #{tpu_custom_call.1} parent=1 // pred_region
      %95 = dma.done [#allocation8], 24576
    $region53: #{tpu_custom_call.1} parent=1 // pred_fallthru
      _
    // Predicated region
    $region54: #{tpu_custom_call.1} parent=1 // pred_check
      _
    $region55: #{tpu_custom_call.1} parent=1 // pred_check_branch
      %97 = sbr.rel (0) target = $region57
    $region56: #{tpu_custom_call.1} parent=1 // pred_region
      %98 = dma.done [#allocation8], 24576
    $region57: #{tpu_custom_call.1} parent=1 // pred_fallthru
      _
    // Predicated region
    $region58: #{tpu_custom_call.1} parent=1 // pred_check
      _
    $region59: #{tpu_custom_call.1} parent=1 // pred_check_branch
      %100 = sbr.rel (0) target = $region61
    $region60: #{tpu_custom_call.1} parent=1 // pred_region
      %101 = dma.done [#allocation11], 32
    $region61: #{tpu_custom_call.1} parent=1 // pred_fallthru
      _
    // Predicated region
    $region62: #{tpu_custom_call.1} parent=1 // pred_check
      _
    $region63: #{tpu_custom_call.1} parent=1 // pred_check_branch
      %103 = sbr.rel (0) target = $region65
    $region64: #{tpu_custom_call.1} parent=1 // pred_region
      %104 = dma.done [#allocation11], 8192
    $region65: #{tpu_custom_call.1} parent=1 // pred_fallthru
      _
    %105 = vst [vmem:[#allocation2] sm:$0xff] 0.0
    %106 = vst [vmem:[#allocation2 + $0x8] sm:$0xff] 0.0
    %107 = vst [vmem:[#allocation2 + $0x10] sm:$0xff] 0.0
    %108 = vst [vmem:[#allocation2 + $0x18] sm:$0xff] 0.0
    %109 = vst [vmem:[#allocation2 + $0x20] sm:$0xff] 0.0
    %110 = vst [vmem:[#allocation2 + $0x28] sm:$0xff] 0.0
    %111 = vst [vmem:[#allocation2 + $0x30] sm:$0xff] 0.0
    %112 = vst [vmem:[#allocation2 + $0x38] sm:$0xff] 0.0
    %113 = vst [vmem:[#allocation2 + $0x40] sm:$0xff] 0.0
    %114 = vst [vmem:[#allocation2 + $0x48] sm:$0xff] 0.0
    %115 = vst [vmem:[#allocation2 + $0x50] sm:$0xff] 0.0
    %116 = vst [vmem:[#allocation2 + $0x58] sm:$0xff] 0.0
    %vm117 = vcmask 261120
    %118 = vst.msk [vmem:[#allocation3] sm:$0xff] %vm117, 0.0
    %119 = vst.msk [vmem:[#allocation3 + $0x8] sm:$0xff] %vm117, 0.0
    %120 = vst.msk [vmem:[#allocation3 + $0x10] sm:$0xff] %vm117, 0.0
    %121 = vst.msk [vmem:[#allocation3 + $0x18] sm:$0xff] %vm117, 0.0
    %122 = vst.msk [vmem:[#allocation3 + $0x20] sm:$0xff] %vm117, 0.0
    %123 = vst.msk [vmem:[#allocation3 + $0x28] sm:$0xff] %vm117, 0.0
    %v124 = vld [vmem:[#allocation4] sm:$0xff]
    %v125 = vld [vmem:[#allocation4 + $0x8] sm:$0xff]
    %v126 = vld [vmem:[#allocation4 + $0x10] sm:$0xff]
    %v127 = vld [vmem:[#allocation4 + $0x18] sm:$0xff]
    %v128 = vld [vmem:[#allocation4 + $0x20] sm:$0xff]
    %v129 = vld [vmem:[#allocation4 + $0x28] sm:$0xff]
    %v130 = vld [vmem:[#allocation4 + $0x30] sm:$0xff]
    %v131 = vld [vmem:[#allocation4 + $0x38] sm:$0xff]
    %vm140 = vcmask 1040384
    %v141 = vrot.slane %v124, 7
    %v142 = vrot.slane %v125, 7
    %v143 = vrot.slane %v126, 7
    %v144 = vsel %vm140, %v141, %v143
    %v145 = vrot.slane %v127, 7
    %v146 = vsel %vm140, %v142, %v145
    %v147 = vrot.slane %v128, 7
    %v148 = vrot.slane %v129, 7
    %v149 = vrot.slane %v130, 7
    %v150 = vsel %vm140, %v147, %v149
    %v151 = vrot.slane %v131, 7
    %v152 = vsel %vm140, %v148, %v151
    %165 = vst [vmem:[#allocation2] sm:$0xfe] %v141
    %166 = vst [vmem:[#allocation2 + $0x8] sm:$0xfe] %v142
    %167 = vst [vmem:[#allocation2 + $0x10] sm:$0xff] %v144
    %168 = vst [vmem:[#allocation2 + $0x18] sm:$0xff] %v146
    %169 = vst [vmem:[#allocation2 + $0x20] sm:$0x1] %v143
    %170 = vst [vmem:[#allocation2 + $0x28] sm:$0x1] %v145
    %171 = vst [vmem:[#allocation2 + $0x30] sm:$0xfe] %v147
    %172 = vst [vmem:[#allocation2 + $0x38] sm:$0xfe] %v148
    %173 = vst [vmem:[#allocation2 + $0x40] sm:$0xff] %v150
    %174 = vst [vmem:[#allocation2 + $0x48] sm:$0xff] %v152
    %175 = vst [vmem:[#allocation2 + $0x50] sm:$0x1] %v149
    %176 = vst [vmem:[#allocation2 + $0x58] sm:$0x1] %v151
    %v177 = vld [vmem:[#allocation2] sm:$0xff]
    %v178 = vld [vmem:[#allocation2 + $0x8] sm:$0xff]
    %v179 = vld [vmem:[#allocation2 + $0x10] sm:$0xff]
    %v180 = vld [vmem:[#allocation2 + $0x18] sm:$0xff]
    %v181 = vld [vmem:[#allocation2 + $0x30] sm:$0xff]
    %v182 = vld [vmem:[#allocation2 + $0x38] sm:$0xff]
    %v183 = vld [vmem:[#allocation2 + $0x40] sm:$0xff]
    %v184 = vld [vmem:[#allocation2 + $0x48] sm:$0xff]
    %v185 = vld [vmem:[#allocation7] sm:$0xff]
    %v186 = vld [vmem:[#allocation7 + $0x8] sm:$0xff]
    %v187 = vld [vmem:[#allocation7 + $0x10] sm:$0xff]
    %v188 = vld [vmem:[#allocation7 + $0x18] sm:$0xff]
    %v189 = vld [vmem:[#allocation7 + $0x20] sm:$0xff]
    %v190 = vld [vmem:[#allocation7 + $0x28] sm:$0xff]
    %v191 = vld [vmem:[#allocation7 + $0x30] sm:$0xff]
    %v192 = vld [vmem:[#allocation7 + $0x38] sm:$0xff]
    %v193 = vld [vmem:[#allocation7 + $0x40] sm:$0xff]
    %v194 = vld [vmem:[#allocation7 + $0x48] sm:$0xff]
    %v195 = vld [vmem:[#allocation7 + $0x50] sm:$0xff]
    %v196 = vld [vmem:[#allocation7 + $0x58] sm:$0xff]
    %v197 = vld [vmem:[#allocation7 + $0x60] sm:$0xff]
    %v198 = vld [vmem:[#allocation7 + $0x68] sm:$0xff]
    %v199 = vld [vmem:[#allocation7 + $0x70] sm:$0xff]
    %v200 = vld [vmem:[#allocation7 + $0x78] sm:$0xff]
    %v201 = vld [vmem:[#allocation7 + $0x80] sm:$0xff]
    %v202 = vld [vmem:[#allocation7 + $0x88] sm:$0xff]
    %v203 = vld [vmem:[#allocation7 + $0x90] sm:$0xff]
    %v204 = vld [vmem:[#allocation7 + $0x98] sm:$0xff]
    %v205 = vld [vmem:[#allocation7 + $0xa0] sm:$0xff]
    %v206 = vld [vmem:[#allocation7 + $0xa8] sm:$0xff]
    %v207 = vld [vmem:[#allocation7 + $0xb0] sm:$0xff]
    %v208 = vld [vmem:[#allocation7 + $0xb8] sm:$0xff]
    %v209 = vld [vmem:[#allocation7 + $0xc0] sm:$0xff]
    %v210 = vld [vmem:[#allocation7 + $0xc8] sm:$0xff]
    %v211 = vld [vmem:[#allocation7 + $0xd0] sm:$0xff]
    %v212 = vld [vmem:[#allocation7 + $0xd8] sm:$0xff]
    %v213 = vld [vmem:[#allocation7 + $0xe0] sm:$0xff]
    %v214 = vld [vmem:[#allocation7 + $0xe8] sm:$0xff]
    %v215 = vld [vmem:[#allocation7 + $0xf0] sm:$0xff]
    %v216 = vld [vmem:[#allocation7 + $0xf8] sm:$0xff]
    %v217 = vld [vmem:[#allocation7 + $0x100] sm:$0xff]
    %v218 = vld [vmem:[#allocation7 + $0x108] sm:$0xff]
    %v219 = vld [vmem:[#allocation7 + $0x110] sm:$0xff]
    %v220 = vld [vmem:[#allocation7 + $0x118] sm:$0xff]
    %v221 = vld [vmem:[#allocation7 + $0x120] sm:$0xff]
    %v222 = vld [vmem:[#allocation7 + $0x128] sm:$0xff]
    %v223 = vld [vmem:[#allocation7 + $0x130] sm:$0xff]
    %v224 = vld [vmem:[#allocation7 + $0x138] sm:$0xff]
    %v225 = vld [vmem:[#allocation7 + $0x140] sm:$0xff]
    %v226 = vld [vmem:[#allocation7 + $0x148] sm:$0xff]
    %v227 = vld [vmem:[#allocation7 + $0x150] sm:$0xff]
    %v228 = vld [vmem:[#allocation7 + $0x158] sm:$0xff]
    %v229 = vld [vmem:[#allocation7 + $0x160] sm:$0xff]
    %v230 = vld [vmem:[#allocation7 + $0x168] sm:$0xff]
    %v231 = vld [vmem:[#allocation7 + $0x170] sm:$0xff]
    %v232 = vld [vmem:[#allocation7 + $0x178] sm:$0xff]
    %v233 = vld [vmem:[#allocation7 + $0x180] sm:$0xff]
    %v234 = vld [vmem:[#allocation7 + $0x188] sm:$0xff]
    %v235 = vld [vmem:[#allocation7 + $0x190] sm:$0xff]
    %v236 = vld [vmem:[#allocation7 + $0x198] sm:$0xff]
    %v237 = vld [vmem:[#allocation7 + $0x1a0] sm:$0xff]
    %v238 = vld [vmem:[#allocation7 + $0x1a8] sm:$0xff]
    %v239 = vld [vmem:[#allocation7 + $0x1b0] sm:$0xff]
    %v240 = vld [vmem:[#allocation7 + $0x1b8] sm:$0xff]
    %v241 = vld [vmem:[#allocation7 + $0x1c0] sm:$0xff]
    %v242 = vld [vmem:[#allocation7 + $0x1c8] sm:$0xff]
    %v243 = vld [vmem:[#allocation7 + $0x1d0] sm:$0xff]
    %v244 = vld [vmem:[#allocation7 + $0x1d8] sm:$0xff]
    %v245 = vld [vmem:[#allocation7 + $0x1e0] sm:$0xff]
    %v246 = vld [vmem:[#allocation7 + $0x1e8] sm:$0xff]
    %v247 = vld [vmem:[#allocation7 + $0x1f0] sm:$0xff]
    %v248 = vld [vmem:[#allocation7 + $0x1f8] sm:$0xff]
    %v249 = vld [vmem:[#allocation2] sm:$0xfe]
    %v250 = vld [vmem:[#allocation2 + $0x8] sm:$0xfe]
    %v251 = vld [vmem:[#allocation2 + $0x10] sm:$0xff]
    %v252 = vld [vmem:[#allocation2 + $0x18] sm:$0xff]
    %v253 = vld [vmem:[#allocation2 + $0x20] sm:$0x1]
    %v254 = vld [vmem:[#allocation2 + $0x28] sm:$0x1]
    %v255 = vld [vmem:[#allocation2 + $0x30] sm:$0xfe]
    %v256 = vld [vmem:[#allocation2 + $0x38] sm:$0xfe]
    %v257 = vld [vmem:[#allocation2 + $0x40] sm:$0xff]
    %v258 = vld [vmem:[#allocation2 + $0x48] sm:$0xff]
    %v259 = vld [vmem:[#allocation2 + $0x50] sm:$0x1]
    %v260 = vld [vmem:[#allocation2 + $0x58] sm:$0x1]
    %vm273 = vcmask 1046528
    %v274 = vrot.slane %v249, 1
    %v275 = vrot.slane %v251, 1
    %v276 = vsel %vm273, %v274, %v275
    %v277 = vrot.slane %v250, 1
    %v278 = vrot.slane %v252, 1
    %v279 = vsel %vm273, %v277, %v278
    %v280 = vrot.slane %v253, 1
    %v281 = vsel %vm273, %v275, %v280
    %v282 = vrot.slane %v254, 1
    %v283 = vsel %vm273, %v278, %v282
    %v284 = vrot.slane %v255, 1
    %v285 = vrot.slane %v257, 1
    %v286 = vsel %vm273, %v284, %v285
    %v287 = vrot.slane %v256, 1
    %v288 = vrot.slane %v258, 1
    %v289 = vsel %vm273, %v287, %v288
    %v290 = vrot.slane %v259, 1
    %v291 = vsel %vm273, %v285, %v290
    %v292 = vrot.slane %v260, 1
    %v293 = vsel %vm273, %v288, %v292
    %s302 = scalar_lea.vmem [#allocation7], 512
    %v303 = vld [vmem:[%s302] sm:$0xff]
    %v304 = vld [vmem:[%s302 + $0x8] sm:$0xff]
    %v305 = vld [vmem:[%s302 + $0x10] sm:$0xff]
    %v306 = vld [vmem:[%s302 + $0x18] sm:$0xff]
    %v307 = vld [vmem:[%s302 + $0x20] sm:$0xff]
    %v308 = vld [vmem:[%s302 + $0x28] sm:$0xff]
    %v309 = vld [vmem:[%s302 + $0x30] sm:$0xff]
    %v310 = vld [vmem:[%s302 + $0x38] sm:$0xff]
    %v311 = vld [vmem:[%s302 + $0x40] sm:$0xff]
    %v312 = vld [vmem:[%s302 + $0x48] sm:$0xff]
    %v313 = vld [vmem:[%s302 + $0x50] sm:$0xff]
    %v314 = vld [vmem:[%s302 + $0x58] sm:$0xff]
    %v315 = vld [vmem:[%s302 + $0x60] sm:$0xff]
    %v316 = vld [vmem:[%s302 + $0x68] sm:$0xff]
    %v317 = vld [vmem:[%s302 + $0x70] sm:$0xff]
    %v318 = vld [vmem:[%s302 + $0x78] sm:$0xff]
    %v319 = vld [vmem:[%s302 + $0x80] sm:$0xff]
    %v320 = vld [vmem:[%s302 + $0x88] sm:$0xff]
    %v321 = vld [vmem:[%s302 + $0x90] sm:$0xff]
    %v322 = vld [vmem:[%s302 + $0x98] sm:$0xff]
    %v323 = vld [vmem:[%s302 + $0xa0] sm:$0xff]
    %v324 = vld [vmem:[%s302 + $0xa8] sm:$0xff]
    %v325 = vld [vmem:[%s302 + $0xb0] sm:$0xff]
    %v326 = vld [vmem:[%s302 + $0xb8] sm:$0xff]
    %v327 = vld [vmem:[%s302 + $0xc0] sm:$0xff]
    %v328 = vld [vmem:[%s302 + $0xc8] sm:$0xff]
    %v329 = vld [vmem:[%s302 + $0xd0] sm:$0xff]
    %v330 = vld [vmem:[%s302 + $0xd8] sm:$0xff]
    %v331 = vld [vmem:[%s302 + $0xe0] sm:$0xff]
    %v332 = vld [vmem:[%s302 + $0xe8] sm:$0xff]
    %v333 = vld [vmem:[%s302 + $0xf0] sm:$0xff]
    %v334 = vld [vmem:[%s302 + $0xf8] sm:$0xff]
    %v335 = vld [vmem:[%s302 + $0x100] sm:$0xff]
    %v336 = vld [vmem:[%s302 + $0x108] sm:$0xff]
    %v337 = vld [vmem:[%s302 + $0x110] sm:$0xff]
    %v338 = vld [vmem:[%s302 + $0x118] sm:$0xff]
    %v339 = vld [vmem:[%s302 + $0x120] sm:$0xff]
    %v340 = vld [vmem:[%s302 + $0x128] sm:$0xff]
    %v341 = vld [vmem:[%s302 + $0x130] sm:$0xff]
    %v342 = vld [vmem:[%s302 + $0x138] sm:$0xff]
    %v343 = vld [vmem:[%s302 + $0x140] sm:$0xff]
    %v344 = vld [vmem:[%s302 + $0x148] sm:$0xff]
    %v345 = vld [vmem:[%s302 + $0x150] sm:$0xff]
    %v346 = vld [vmem:[%s302 + $0x158] sm:$0xff]
    %v347 = vld [vmem:[%s302 + $0x160] sm:$0xff]
    %v348 = vld [vmem:[%s302 + $0x168] sm:$0xff]
    %v349 = vld [vmem:[%s302 + $0x170] sm:$0xff]
    %v350 = vld [vmem:[%s302 + $0x178] sm:$0xff]
    %v351 = vld [vmem:[%s302 + $0x180] sm:$0xff]
    %v352 = vld [vmem:[%s302 + $0x188] sm:$0xff]
    %v353 = vld [vmem:[%s302 + $0x190] sm:$0xff]
    %v354 = vld [vmem:[%s302 + $0x198] sm:$0xff]
    %v355 = vld [vmem:[%s302 + $0x1a0] sm:$0xff]
    %v356 = vld [vmem:[%s302 + $0x1a8] sm:$0xff]
    %v357 = vld [vmem:[%s302 + $0x1b0] sm:$0xff]
    %v358 = vld [vmem:[%s302 + $0x1b8] sm:$0xff]
    %v359 = vld [vmem:[%s302 + $0x1c0] sm:$0xff]
    %v360 = vld [vmem:[%s302 + $0x1c8] sm:$0xff]
    %v361 = vld [vmem:[%s302 + $0x1d0] sm:$0xff]
    %v362 = vld [vmem:[%s302 + $0x1d8] sm:$0xff]
    %v363 = vld [vmem:[%s302 + $0x1e0] sm:$0xff]
    %v364 = vld [vmem:[%s302 + $0x1e8] sm:$0xff]
    %v365 = vld [vmem:[%s302 + $0x1f0] sm:$0xff]
    %v366 = vld [vmem:[%s302 + $0x1f8] sm:$0xff]
    %367 = vmatprep.subr.mxu0 %v304
    %368 = vmatpush1.msra.mxu0 %v303
    %369 = vmatprep.subr.mxu0 %v306
    %370 = vmatpush1.msra.mxu0 %v305
    %371 = vmatprep.subr.mxu0 %v308
    %372 = vmatpush1.msra.mxu0 %v307
    %373 = vmatprep.subr.mxu0 %v310
    %374 = vmatpush1.msra.mxu0 %v309
    %375 = vmatprep.subr.mxu0 %v312
    %376 = vmatpush1.msra.mxu0 %v311
    %377 = vmatprep.subr.mxu0 %v314
    %378 = vmatpush1.msra.mxu0 %v313
    %379 = vmatprep.subr.mxu0 %v316
    %380 = vmatpush1.msra.mxu0 %v315
    %381 = vmatprep.subr.mxu0 %v318
    %382 = vmatpush1.msra.mxu0 %v317
    %383 = vmatprep.subr.mxu0 %v320
    %384 = vmatpush1.msra.mxu0 %v319
    %385 = vmatprep.subr.mxu0 %v322
    %386 = vmatpush1.msra.mxu0 %v321
    %387 = vmatprep.subr.mxu0 %v324
    %388 = vmatpush1.msra.mxu0 %v323
    %389 = vmatprep.subr.mxu0 %v326
    %390 = vmatpush1.msra.mxu0 %v325
    %391 = vmatprep.subr.mxu0 %v328
    %392 = vmatpush1.msra.mxu0 %v327
    %393 = vmatprep.subr.mxu0 %v330
    %394 = vmatpush1.msra.mxu0 %v329
    %395 = vmatprep.subr.mxu0 %v332
    %396 = vmatpush1.msra.mxu0 %v331
    %397 = vmatprep.subr.mxu0 %v334
    %398 = vmatpush1.msra.mxu0 %v333
    %399 = vmatprep.subr.mxu0 %v336
    %400 = vmatpush1.msra.mxu0 %v335
    %401 = vmatprep.subr.mxu0 %v338
    %402 = vmatpush1.msra.mxu0 %v337
    %403 = vmatprep.subr.mxu0 %v340
    %404 = vmatpush1.msra.mxu0 %v339
    %405 = vmatprep.subr.mxu0 %v342
    %406 = vmatpush1.msra.mxu0 %v341
    %407 = vmatprep.subr.mxu0 %v344
    %408 = vmatpush1.msra.mxu0 %v343
    %409 = vmatprep.subr.mxu0 %v346
    %410 = vmatpush1.msra.mxu0 %v345
    %411 = vmatprep.subr.mxu0 %v348
    %412 = vmatpush1.msra.mxu0 %v347
    %413 = vmatprep.subr.mxu0 %v350
    %414 = vmatpush1.msra.mxu0 %v349
    %415 = vmatprep.subr.mxu0 %v352
    %416 = vmatpush1.msra.mxu0 %v351
    %417 = vmatprep.subr.mxu0 %v354
    %418 = vmatpush1.msra.mxu0 %v353
    %419 = vmatprep.subr.mxu0 %v356
    %420 = vmatpush1.msra.mxu0 %v355
    %421 = vmatprep.subr.mxu0 %v358
    %422 = vmatpush1.msra.mxu0 %v357
    %423 = vmatprep.subr.mxu0 %v360
    %424 = vmatpush1.msra.mxu0 %v359
    %425 = vmatprep.subr.mxu0 %v362
    %426 = vmatpush1.msra.mxu0 %v361
    %427 = vmatprep.subr.mxu0 %v364
    %428 = vmatpush1.msra.mxu0 %v363
    %429 = vmatprep.subr.mxu0 %v366
    %430 = vmatpush1.msra.mxu0 %v365
    %431 = vmatprep.mubr.f32.mxu0 %v279
    %432 = vmatmul.mubr.f32.gmra.mrb[0].mxu0 %v276
    %v433 = vpop.f32.mrb[0].mxu0
    %v434 = vadd.f32 0.0, %v433
    %v435 = vpop.f32.mrb[0].mxu0
    %v436 = vadd.f32 0.0, %v435
    %437 = vmatprep.mubr.f32.mxu0 %v283
    %438 = vmatmul.mubr.f32.gmra.mrb[0].mxu0 %v281
    %v439 = vpop.f32.mrb[0].mxu0
    %v440 = vadd.f32 0.0, %v439
    %v441 = vpop.f32.mrb[0].mxu0
    %v442 = vadd.f32 0.0, %v441
    %443 = vmatprep.mubr.f32.mxu0 %v289
    %444 = vmatmul.mubr.f32.gmra.mrb[0].mxu0 %v286
    %v445 = vpop.f32.mrb[0].mxu0
    %v446 = vadd.f32 0.0, %v445
    %v447 = vpop.f32.mrb[0].mxu0
    %v448 = vadd.f32 0.0, %v447
    %449 = vmatprep.mubr.f32.mxu0 %v293
    %450 = vmatmul.mubr.f32.gmra.mrb[0].mxu0 %v291
    %v451 = vpop.f32.mrb[0].mxu0
    %v452 = vadd.f32 0.0, %v451
    %v453 = vpop.f32.mrb[0].mxu0
    %v454 = vadd.f32 0.0, %v453
    %455 = vdwg.mxu0
    %456 = vmatprep.subr.mxu0 %v186
    %457 = vmatpush1.msra.mxu0 %v185
    %458 = vmatprep.subr.mxu0 %v188
    %459 = vmatpush1.msra.mxu0 %v187
    %460 = vmatprep.subr.mxu0 %v190
    %461 = vmatpush1.msra.mxu0 %v189
    %462 = vmatprep.subr.mxu0 %v192
    %463 = vmatpush1.msra.mxu0 %v191
    %464 = vmatprep.subr.mxu0 %v194
    %465 = vmatpush1.msra.mxu0 %v193
    %466 = vmatprep.subr.mxu0 %v196
    %467 = vmatpush1.msra.mxu0 %v195
    %468 = vmatprep.subr.mxu0 %v198
    %469 = vmatpush1.msra.mxu0 %v197
    %470 = vmatprep.subr.mxu0 %v200
    %471 = vmatpush1.msra.mxu0 %v199
    %472 = vmatprep.subr.mxu0 %v202
    %473 = vmatpush1.msra.mxu0 %v201
    %474 = vmatprep.subr.mxu0 %v204
    %475 = vmatpush1.msra.mxu0 %v203
    %476 = vmatprep.subr.mxu0 %v206
    %477 = vmatpush1.msra.mxu0 %v205
    %478 = vmatprep.subr.mxu0 %v208
    %479 = vmatpush1.msra.mxu0 %v207
    %480 = vmatprep.subr.mxu0 %v210
    %481 = vmatpush1.msra.mxu0 %v209
    %482 = vmatprep.subr.mxu0 %v212
    %483 = vmatpush1.msra.mxu0 %v211
    %484 = vmatprep.subr.mxu0 %v214
    %485 = vmatpush1.msra.mxu0 %v213
    %486 = vmatprep.subr.mxu0 %v216
    %487 = vmatpush1.msra.mxu0 %v215
    %488 = vmatprep.subr.mxu0 %v218
    %489 = vmatpush1.msra.mxu0 %v217
    %490 = vmatprep.subr.mxu0 %v220
    %491 = vmatpush1.msra.mxu0 %v219
    %492 = vmatprep.subr.mxu0 %v222
    %493 = vmatpush1.msra.mxu0 %v221
    %494 = vmatprep.subr.mxu0 %v224
    %495 = vmatpush1.msra.mxu0 %v223
    %496 = vmatprep.subr.mxu0 %v226
    %497 = vmatpush1.msra.mxu0 %v225
    %498 = vmatprep.subr.mxu0 %v228
    %499 = vmatpush1.msra.mxu0 %v227
    %500 = vmatprep.subr.mxu0 %v230
    %501 = vmatpush1.msra.mxu0 %v229
    %502 = vmatprep.subr.mxu0 %v232
    %503 = vmatpush1.msra.mxu0 %v231
    %504 = vmatprep.subr.mxu0 %v234
    %505 = vmatpush1.msra.mxu0 %v233
    %506 = vmatprep.subr.mxu0 %v236
    %507 = vmatpush1.msra.mxu0 %v235
    %508 = vmatprep.subr.mxu0 %v238
    %509 = vmatpush1.msra.mxu0 %v237
    %510 = vmatprep.subr.mxu0 %v240
    %511 = vmatpush1.msra.mxu0 %v239
    %512 = vmatprep.subr.mxu0 %v242
    %513 = vmatpush1.msra.mxu0 %v241
    %514 = vmatprep.subr.mxu0 %v244
    %515 = vmatpush1.msra.mxu0 %v243
    %516 = vmatprep.subr.mxu0 %v246
    %517 = vmatpush1.msra.mxu0 %v245
    %518 = vmatprep.subr.mxu0 %v248
    %519 = vmatpush1.msra.mxu0 %v247
    %520 = vmatprep.mubr.f32.mxu0 %v178
    %521 = vmatmul.mubr.f32.gmra.mrb[0].mxu0 %v177
    %v522 = vpop.f32.mrb[0].mxu0
    %v523 = vadd.f32 %v434, %v522
    %v524 = vpop.f32.mrb[0].mxu0
    %v525 = vadd.f32 %v436, %v524
    %526 = vmatprep.mubr.f32.mxu0 %v180
    %527 = vmatmul.mubr.f32.gmra.mrb[0].mxu0 %v179
    %v528 = vpop.f32.mrb[0].mxu0
    %v529 = vadd.f32 %v440, %v528
    %v530 = vpop.f32.mrb[0].mxu0
    %v531 = vadd.f32 %v442, %v530
    %532 = vmatprep.mubr.f32.mxu0 %v182
    %533 = vmatmul.mubr.f32.gmra.mrb[0].mxu0 %v181
    %v534 = vpop.f32.mrb[0].mxu0
    %v535 = vadd.f32 %v446, %v534
    %v536 = vpop.f32.mrb[0].mxu0
    %v537 = vadd.f32 %v448, %v536
    %538 = vmatprep.mubr.f32.mxu0 %v184
    %539 = vmatmul.mubr.f32.gmra.mrb[0].mxu0 %v183
    %v540 = vpop.f32.mrb[0].mxu0
    %v541 = vadd.f32 %v452, %v540
    %v542 = vpop.f32.mrb[0].mxu0
    %v543 = vadd.f32 %v454, %v542
    %544 = vdwg.mxu0
    %v545 = vld [vmem:[#allocation2] sm:$0xfc]
    %v546 = vld [vmem:[#allocation2 + $0x8] sm:$0xfc]
    %v547 = vld [vmem:[#allocation2 + $0x20] sm:$0x3]
    %v548 = vld [vmem:[#allocation2 + $0x28] sm:$0x3]
    %v549 = vld [vmem:[#allocation2 + $0x30] sm:$0xfc]
    %v550 = vld [vmem:[#allocation2 + $0x38] sm:$0xfc]
    %v551 = vld [vmem:[#allocation2 + $0x50] sm:$0x3]
    %v552 = vld [vmem:[#allocation2 + $0x58] sm:$0x3]
    %vm561 = vcmask 1045504
    %v562 = vrot.slane %v545, 2
    %v563 = vrot.slane %v251, 2
    %v564 = vsel %vm561, %v562, %v563
    %v565 = vrot.slane %v546, 2
    %v566 = vrot.slane %v252, 2
    %v567 = vsel %vm561, %v565, %v566
    %v568 = vrot.slane %v547, 2
    %v569 = vsel %vm561, %v563, %v568
    %v570 = vrot.slane %v548, 2
    %v571 = vsel %vm561, %v566, %v570
    %v572 = vrot.slane %v549, 2
    %v573 = vrot.slane %v257, 2
    %v574 = vsel %vm561, %v572, %v573
    %v575 = vrot.slane %v550, 2
    %v576 = vrot.slane %v258, 2
    %v577 = vsel %vm561, %v575, %v576
    %v578 = vrot.slane %v551, 2
    %v579 = vsel %vm561, %v573, %v578
    %v580 = vrot.slane %v552, 2
    %v581 = vsel %vm561, %v576, %v580
    %s590 = scalar_lea.vmem [#allocation7], 1024
    %v591 = vld [vmem:[%s590] sm:$0xff]
    %v592 = vld [vmem:[%s590 + $0x8] sm:$0xff]
    %v593 = vld [vmem:[%s590 + $0x10] sm:$0xff]
    %v594 = vld [vmem:[%s590 + $0x18] sm:$0xff]
    %v595 = vld [vmem:[%s590 + $0x20] sm:$0xff]
    %v596 = vld [vmem:[%s590 + $0x28] sm:$0xff]
    %v597 = vld [vmem:[%s590 + $0x30] sm:$0xff]
    %v598 = vld [vmem:[%s590 + $0x38] sm:$0xff]
    %v599 = vld [vmem:[%s590 + $0x40] sm:$0xff]
    %v600 = vld [vmem:[%s590 + $0x48] sm:$0xff]
    %v601 = vld [vmem:[%s590 + $0x50] sm:$0xff]
    %v602 = vld [vmem:[%s590 + $0x58] sm:$0xff]
    %v603 = vld [vmem:[%s590 + $0x60] sm:$0xff]
    %v604 = vld [vmem:[%s590 + $0x68] sm:$0xff]
    %v605 = vld [vmem:[%s590 + $0x70] sm:$0xff]
    %v606 = vld [vmem:[%s590 + $0x78] sm:$0xff]
    %v607 = vld [vmem:[%s590 + $0x80] sm:$0xff]
    %v608 = vld [vmem:[%s590 + $0x88] sm:$0xff]
    %v609 = vld [vmem:[%s590 + $0x90] sm:$0xff]
    %v610 = vld [vmem:[%s590 + $0x98] sm:$0xff]
    %v611 = vld [vmem:[%s590 + $0xa0] sm:$0xff]
    %v612 = vld [vmem:[%s590 + $0xa8] sm:$0xff]
    %v613 = vld [vmem:[%s590 + $0xb0] sm:$0xff]
    %v614 = vld [vmem:[%s590 + $0xb8] sm:$0xff]
    %v615 = vld [vmem:[%s590 + $0xc0] sm:$0xff]
    %v616 = vld [vmem:[%s590 + $0xc8] sm:$0xff]
    %v617 = vld [vmem:[%s590 + $0xd0] sm:$0xff]
    %v618 = vld [vmem:[%s590 + $0xd8] sm:$0xff]
    %v619 = vld [vmem:[%s590 + $0xe0] sm:$0xff]
    %v620 = vld [vmem:[%s590 + $0xe8] sm:$0xff]
    %v621 = vld [vmem:[%s590 + $0xf0] sm:$0xff]
    %v622 = vld [vmem:[%s590 + $0xf8] sm:$0xff]
    %v623 = vld [vmem:[%s590 + $0x100] sm:$0xff]
    %v624 = vld [vmem:[%s590 + $0x108] sm:$0xff]
    %v625 = vld [vmem:[%s590 + $0x110] sm:$0xff]
    %v626 = vld [vmem:[%s590 + $0x118] sm:$0xff]
    %v627 = vld [vmem:[%s590 + $0x120] sm:$0xff]
    %v628 = vld [vmem:[%s590 + $0x128] sm:$0xff]
    %v629 = vld [vmem:[%s590 + $0x130] sm:$0xff]
    %v630 = vld [vmem:[%s590 + $0x138] sm:$0xff]
    %v631 = vld [vmem:[%s590 + $0x140] sm:$0xff]
    %v632 = vld [vmem:[%s590 + $0x148] sm:$0xff]
    %v633 = vld [vmem:[%s590 + $0x150] sm:$0xff]
    %v634 = vld [vmem:[%s590 + $0x158] sm:$0xff]
    %v635 = vld [vmem:[%s590 + $0x160] sm:$0xff]
    %v636 = vld [vmem:[%s590 + $0x168] sm:$0xff]
    %v637 = vld [vmem:[%s590 + $0x170] sm:$0xff]
    %v638 = vld [vmem:[%s590 + $0x178] sm:$0xff]
    %v639 = vld [vmem:[%s590 + $0x180] sm:$0xff]
    %v640 = vld [vmem:[%s590 + $0x188] sm:$0xff]
    %v641 = vld [vmem:[%s590 + $0x190] sm:$0xff]
    %v642 = vld [vmem:[%s590 + $0x198] sm:$0xff]
    %v643 = vld [vmem:[%s590 + $0x1a0] sm:$0xff]
    %v644 = vld [vmem:[%s590 + $0x1a8] sm:$0xff]
    %v645 = vld [vmem:[%s590 + $0x1b0] sm:$0xff]
    %v646 = vld [vmem:[%s590 + $0x1b8] sm:$0xff]
    %v647 = vld [vmem:[%s590 + $0x1c0] sm:$0xff]
    %v648 = vld [vmem:[%s590 + $0x1c8] sm:$0xff]
    %v649 = vld [vmem:[%s590 + $0x1d0] sm:$0xff]
    %v650 = vld [vmem:[%s590 + $0x1d8] sm:$0xff]
    %v651 = vld [vmem:[%s590 + $0x1e0] sm:$0xff]
    %v652 = vld [vmem:[%s590 + $0x1e8] sm:$0xff]
    %v653 = vld [vmem:[%s590 + $0x1f0] sm:$0xff]
    %v654 = vld [vmem:[%s590 + $0x1f8] sm:$0xff]
    %655 = vmatprep.subr.mxu0 %v592
    %656 = vmatpush1.msra.mxu0 %v591
    %657 = vmatprep.subr.mxu0 %v594
    %658 = vmatpush1.msra.mxu0 %v593
    %659 = vmatprep.subr.mxu0 %v596
    %660 = vmatpush1.msra.mxu0 %v595
    %661 = vmatprep.subr.mxu0 %v598
    %662 = vmatpush1.msra.mxu0 %v597
    %663 = vmatprep.subr.mxu0 %v600
    %664 = vmatpush1.msra.mxu0 %v599
    %665 = vmatprep.subr.mxu0 %v602
    %666 = vmatpush1.msra.mxu0 %v601
    %667 = vmatprep.subr.mxu0 %v604
    %668 = vmatpush1.msra.mxu0 %v603
    %669 = vmatprep.subr.mxu0 %v606
    %670 = vmatpush1.msra.mxu0 %v605
    %671 = vmatprep.subr.mxu0 %v608
    %672 = vmatpush1.msra.mxu0 %v607
    %673 = vmatprep.subr.mxu0 %v610
    %674 = vmatpush1.msra.mxu0 %v609
    %675 = vmatprep.subr.mxu0 %v612
    %676 = vmatpush1.msra.mxu0 %v611
    %677 = vmatprep.subr.mxu0 %v614
    %678 = vmatpush1.msra.mxu0 %v613
    %679 = vmatprep.subr.mxu0 %v616
    %680 = vmatpush1.msra.mxu0 %v615
    %681 = vmatprep.subr.mxu0 %v618
    %682 = vmatpush1.msra.mxu0 %v617
    %683 = vmatprep.subr.mxu0 %v620
    %684 = vmatpush1.msra.mxu0 %v619
    %685 = vmatprep.subr.mxu0 %v622
    %686 = vmatpush1.msra.mxu0 %v621
    %687 = vmatprep.subr.mxu0 %v624
    %688 = vmatpush1.msra.mxu0 %v623
    %689 = vmatprep.subr.mxu0 %v626
    %690 = vmatpush1.msra.mxu0 %v625
    %691 = vmatprep.subr.mxu0 %v628
    %692 = vmatpush1.msra.mxu0 %v627
    %693 = vmatprep.subr.mxu0 %v630
    %694 = vmatpush1.msra.mxu0 %v629
    %695 = vmatprep.subr.mxu0 %v632
    %696 = vmatpush1.msra.mxu0 %v631
    %697 = vmatprep.subr.mxu0 %v634
    %698 = vmatpush1.msra.mxu0 %v633
    %699 = vmatprep.subr.mxu0 %v636
    %700 = vmatpush1.msra.mxu0 %v635
    %701 = vmatprep.subr.mxu0 %v638
    %702 = vmatpush1.msra.mxu0 %v637
    %703 = vmatprep.subr.mxu0 %v640
    %704 = vmatpush1.msra.mxu0 %v639
    %705 = vmatprep.subr.mxu0 %v642
    %706 = vmatpush1.msra.mxu0 %v641
    %707 = vmatprep.subr.mxu0 %v644
    %708 = vmatpush1.msra.mxu0 %v643
    %709 = vmatprep.subr.mxu0 %v646
    %710 = vmatpush1.msra.mxu0 %v645
    %711 = vmatprep.subr.mxu0 %v648
    %712 = vmatpush1.msra.mxu0 %v647
    %713 = vmatprep.subr.mxu0 %v650
    %714 = vmatpush1.msra.mxu0 %v649
    %715 = vmatprep.subr.mxu0 %v652
    %716 = vmatpush1.msra.mxu0 %v651
    %717 = vmatprep.subr.mxu0 %v654
    %718 = vmatpush1.msra.mxu0 %v653
    %719 = vmatprep.mubr.f32.mxu0 %v567
    %720 = vmatmul.mubr.f32.gmra.mrb[0].mxu0 %v564
    %v721 = vpop.f32.mrb[0].mxu0
    %v722 = vadd.f32 0.0, %v721
    %v723 = vpop.f32.mrb[0].mxu0
    %v724 = vadd.f32 0.0, %v723
    %725 = vmatprep.mubr.f32.mxu0 %v571
    %726 = vmatmul.mubr.f32.gmra.mrb[0].mxu0 %v569
    %v727 = vpop.f32.mrb[0].mxu0
    %v728 = vadd.f32 0.0, %v727
    %v729 = vpop.f32.mrb[0].mxu0
    %v730 = vadd.f32 0.0, %v729
    %731 = vmatprep.mubr.f32.mxu0 %v577
    %732 = vmatmul.mubr.f32.gmra.mrb[0].mxu0 %v574
    %v733 = vpop.f32.mrb[0].mxu0
    %v734 = vadd.f32 0.0, %v733
    %v735 = vpop.f32.mrb[0].mxu0
    %v736 = vadd.f32 0.0, %v735
    %737 = vmatprep.mubr.f32.mxu0 %v581
    %738 = vmatmul.mubr.f32.gmra.mrb[0].mxu0 %v579
    %v739 = vpop.f32.mrb[0].mxu0
    %v740 = vadd.f32 0.0, %v739
    %v741 = vpop.f32.mrb[0].mxu0
    %v742 = vadd.f32 0.0, %v741
    %743 = vdwg.mxu0
    %v744 = vadd.f32 %v523, %v722
    %v745 = vadd.f32 %v525, %v724
    %v746 = vadd.f32 %v529, %v728
    %v747 = vadd.f32 %v531, %v730
    %v748 = vadd.f32 %v535, %v734
    %v749 = vadd.f32 %v537, %v736
    %v750 = vadd.f32 %v541, %v740
    %v751 = vadd.f32 %v543, %v742
    %v752 = vmax.f32 %v744, 0.0
    %v753 = vmax.f32 %v745, 0.0
    %v754 = vmax.f32 %v746, 0.0
    %v755 = vmax.f32 %v747, 0.0
    %v756 = vmax.f32 %v748, 0.0
    %v757 = vmax.f32 %v749, 0.0
    %v758 = vmax.f32 %v750, 0.0
    %v759 = vmax.f32 %v751, 0.0
    %v768 = vrot.slane %v752, 7
    %v769 = vrot.slane %v753, 7
    %v770 = vrot.slane %v754, 7
    %v771 = vsel %vm140, %v768, %v770
    %v772 = vrot.slane %v755, 7
    %v773 = vsel %vm140, %v769, %v772
    %v774 = vrot.slane %v756, 7
    %v775 = vrot.slane %v757, 7
    %v776 = vrot.slane %v758, 7
    %v777 = vsel %vm140, %v774, %v776
    %v778 = vrot.slane %v759, 7
    %v779 = vsel %vm140, %v775, %v778
    %792 = vst [vmem:[#allocation2] sm:$0xfe] %v768
    %793 = vst [vmem:[#allocation2 + $0x8] sm:$0xfe] %v769
    %794 = vst [vmem:[#allocation2 + $0x10] sm:$0xff] %v771
    %795 = vst [vmem:[#allocation2 + $0x18] sm:$0xff] %v773
    %796 = vst [vmem:[#allocation2 + $0x20] sm:$0x1] %v770
    %797 = vst [vmem:[#allocation2 + $0x28] sm:$0x1] %v772
    %798 = vst [vmem:[#allocation2 + $0x30] sm:$0xfe] %v774
    %799 = vst [vmem:[#allocation2 + $0x38] sm:$0xfe] %v775
    %800 = vst [vmem:[#allocation2 + $0x40] sm:$0xff] %v777
    %801 = vst [vmem:[#allocation2 + $0x48] sm:$0xff] %v779
    %802 = vst [vmem:[#allocation2 + $0x50] sm:$0x1] %v776
    %803 = vst [vmem:[#allocation2 + $0x58] sm:$0x1] %v778
    %v804 = vld [vmem:[#allocation2] sm:$0xff]
    %v805 = vld [vmem:[#allocation2 + $0x8] sm:$0xff]
    %v806 = vld [vmem:[#allocation2 + $0x10] sm:$0xff]
    %v807 = vld [vmem:[#allocation2 + $0x18] sm:$0xff]
    %v808 = vld [vmem:[#allocation2 + $0x30] sm:$0xff]
    %v809 = vld [vmem:[#allocation2 + $0x38] sm:$0xff]
    %v810 = vld [vmem:[#allocation2 + $0x40] sm:$0xff]
    %v811 = vld [vmem:[#allocation2 + $0x48] sm:$0xff]
    %v812 = vld [vmem:[#allocation9] sm:$0xff]
    %v813 = vld [vmem:[#allocation9 + $0x8] sm:$0xff]
    %v814 = vld [vmem:[#allocation9 + $0x10] sm:$0xff]
    %v815 = vld [vmem:[#allocation9 + $0x18] sm:$0xff]
    %v816 = vld [vmem:[#allocation9 + $0x20] sm:$0xff]
    %v817 = vld [vmem:[#allocation9 + $0x28] sm:$0xff]
    %v818 = vld [vmem:[#allocation9 + $0x30] sm:$0xff]
    %v819 = vld [vmem:[#allocation9 + $0x38] sm:$0xff]
    %v820 = vld [vmem:[#allocation9 + $0x40] sm:$0xff]
    %v821 = vld [vmem:[#allocation9 + $0x48] sm:$0xff]
    %v822 = vld [vmem:[#allocation9 + $0x50] sm:$0xff]
    %v823 = vld [vmem:[#allocation9 + $0x58] sm:$0xff]
    %v824 = vld [vmem:[#allocation9 + $0x60] sm:$0xff]
    %v825 = vld [vmem:[#allocation9 + $0x68] sm:$0xff]
    %v826 = vld [vmem:[#allocation9 + $0x70] sm:$0xff]
    %v827 = vld [vmem:[#allocation9 + $0x78] sm:$0xff]
    %v828 = vld [vmem:[#allocation9 + $0x80] sm:$0xff]
    %v829 = vld [vmem:[#allocation9 + $0x88] sm:$0xff]
    %v830 = vld [vmem:[#allocation9 + $0x90] sm:$0xff]
    %v831 = vld [vmem:[#allocation9 + $0x98] sm:$0xff]
    %v832 = vld [vmem:[#allocation9 + $0xa0] sm:$0xff]
    %v833 = vld [vmem:[#allocation9 + $0xa8] sm:$0xff]
    %v834 = vld [vmem:[#allocation9 + $0xb0] sm:$0xff]
    %v835 = vld [vmem:[#allocation9 + $0xb8] sm:$0xff]
    %v836 = vld [vmem:[#allocation9 + $0xc0] sm:$0xff]
    %v837 = vld [vmem:[#allocation9 + $0xc8] sm:$0xff]
    %v838 = vld [vmem:[#allocation9 + $0xd0] sm:$0xff]
    %v839 = vld [vmem:[#allocation9 + $0xd8] sm:$0xff]
    %v840 = vld [vmem:[#allocation9 + $0xe0] sm:$0xff]
    %v841 = vld [vmem:[#allocation9 + $0xe8] sm:$0xff]
    %v842 = vld [vmem:[#allocation9 + $0xf0] sm:$0xff]
    %v843 = vld [vmem:[#allocation9 + $0xf8] sm:$0xff]
    %v844 = vld [vmem:[#allocation9 + $0x100] sm:$0xff]
    %v845 = vld [vmem:[#allocation9 + $0x108] sm:$0xff]
    %v846 = vld [vmem:[#allocation9 + $0x110] sm:$0xff]
    %v847 = vld [vmem:[#allocation9 + $0x118] sm:$0xff]
    %v848 = vld [vmem:[#allocation9 + $0x120] sm:$0xff]
    %v849 = vld [vmem:[#allocation9 + $0x128] sm:$0xff]
    %v850 = vld [vmem:[#allocation9 + $0x130] sm:$0xff]
    %v851 = vld [vmem:[#allocation9 + $0x138] sm:$0xff]
    %v852 = vld [vmem:[#allocation9 + $0x140] sm:$0xff]
    %v853 = vld [vmem:[#allocation9 + $0x148] sm:$0xff]
    %v854 = vld [vmem:[#allocation9 + $0x150] sm:$0xff]
    %v855 = vld [vmem:[#allocation9 + $0x158] sm:$0xff]
    %v856 = vld [vmem:[#allocation9 + $0x160] sm:$0xff]
    %v857 = vld [vmem:[#allocation9 + $0x168] sm:$0xff]
    %v858 = vld [vmem:[#allocation9 + $0x170] sm:$0xff]
    %v859 = vld [vmem:[#allocation9 + $0x178] sm:$0xff]
    %v860 = vld [vmem:[#allocation9 + $0x180] sm:$0xff]
    %v861 = vld [vmem:[#allocation9 + $0x188] sm:$0xff]
    %v862 = vld [vmem:[#allocation9 + $0x190] sm:$0xff]
    %v863 = vld [vmem:[#allocation9 + $0x198] sm:$0xff]
    %v864 = vld [vmem:[#allocation9 + $0x1a0] sm:$0xff]
    %v865 = vld [vmem:[#allocation9 + $0x1a8] sm:$0xff]
    %v866 = vld [vmem:[#allocation9 + $0x1b0] sm:$0xff]
    %v867 = vld [vmem:[#allocation9 + $0x1b8] sm:$0xff]
    %v868 = vld [vmem:[#allocation9 + $0x1c0] sm:$0xff]
    %v869 = vld [vmem:[#allocation9 + $0x1c8] sm:$0xff]
    %v870 = vld [vmem:[#allocation9 + $0x1d0] sm:$0xff]
    %v871 = vld [vmem:[#allocation9 + $0x1d8] sm:$0xff]
    %v872 = vld [vmem:[#allocation9 + $0x1e0] sm:$0xff]
    %v873 = vld [vmem:[#allocation9 + $0x1e8] sm:$0xff]
    %v874 = vld [vmem:[#allocation9 + $0x1f0] sm:$0xff]
    %v875 = vld [vmem:[#allocation9 + $0x1f8] sm:$0xff]
    %v876 = vld [vmem:[#allocation2] sm:$0xfe]
    %v877 = vld [vmem:[#allocation2 + $0x8] sm:$0xfe]
    %v878 = vld [vmem:[#allocation2 + $0x10] sm:$0xff]
    %v879 = vld [vmem:[#allocation2 + $0x18] sm:$0xff]
    %v880 = vld [vmem:[#allocation2 + $0x20] sm:$0x1]
    %v881 = vld [vmem:[#allocation2 + $0x28] sm:$0x1]
    %v882 = vld [vmem:[#allocation2 + $0x30] sm:$0xfe]
    %v883 = vld [vmem:[#allocation2 + $0x38] sm:$0xfe]
    %v884 = vld [vmem:[#allocation2 + $0x40] sm:$0xff]
    %v885 = vld [vmem:[#allocation2 + $0x48] sm:$0xff]
    %v886 = vld [vmem:[#allocation2 + $0x50] sm:$0x1]
    %v887 = vld [vmem:[#allocation2 + $0x58] sm:$0x1]
    %v900 = vrot.slane %v876, 1
    %v901 = vrot.slane %v878, 1
    %v902 = vsel %vm273, %v900, %v901
    %v903 = vrot.slane %v877, 1
    %v904 = vrot.slane %v879, 1
    %v905 = vsel %vm273, %v903, %v904
    %v906 = vrot.slane %v880, 1
    %v907 = vsel %vm273, %v901, %v906
    %v908 = vrot.slane %v881, 1
    %v909 = vsel %vm273, %v904, %v908
    %v910 = vrot.slane %v882, 1
    %v911 = vrot.slane %v884, 1
    %v912 = vsel %vm273, %v910, %v911
    %v913 = vrot.slane %v883, 1
    %v914 = vrot.slane %v885, 1
    %v915 = vsel %vm273, %v913, %v914
    %v916 = vrot.slane %v886, 1
    %v917 = vsel %vm273, %v911, %v916
    %v918 = vrot.slane %v887, 1
    %v919 = vsel %vm273, %v914, %v918
    %s928 = scalar_lea.vmem [#allocation9], 512
    %v929 = vld [vmem:[%s928] sm:$0xff]
    %v930 = vld [vmem:[%s928 + $0x8] sm:$0xff]
    %v931 = vld [vmem:[%s928 + $0x10] sm:$0xff]
    %v932 = vld [vmem:[%s928 + $0x18] sm:$0xff]
    %v933 = vld [vmem:[%s928 + $0x20] sm:$0xff]
    %v934 = vld [vmem:[%s928 + $0x28] sm:$0xff]
    %v935 = vld [vmem:[%s928 + $0x30] sm:$0xff]
    %v936 = vld [vmem:[%s928 + $0x38] sm:$0xff]
    %v937 = vld [vmem:[%s928 + $0x40] sm:$0xff]
    %v938 = vld [vmem:[%s928 + $0x48] sm:$0xff]
    %v939 = vld [vmem:[%s928 + $0x50] sm:$0xff]
    %v940 = vld [vmem:[%s928 + $0x58] sm:$0xff]
    %v941 = vld [vmem:[%s928 + $0x60] sm:$0xff]
    %v942 = vld [vmem:[%s928 + $0x68] sm:$0xff]
    %v943 = vld [vmem:[%s928 + $0x70] sm:$0xff]
    %v944 = vld [vmem:[%s928 + $0x78] sm:$0xff]
    %v945 = vld [vmem:[%s928 + $0x80] sm:$0xff]
    %v946 = vld [vmem:[%s928 + $0x88] sm:$0xff]
    %v947 = vld [vmem:[%s928 + $0x90] sm:$0xff]
    %v948 = vld [vmem:[%s928 + $0x98] sm:$0xff]
    %v949 = vld [vmem:[%s928 + $0xa0] sm:$0xff]
    %v950 = vld [vmem:[%s928 + $0xa8] sm:$0xff]
    %v951 = vld [vmem:[%s928 + $0xb0] sm:$0xff]
    %v952 = vld [vmem:[%s928 + $0xb8] sm:$0xff]
    %v953 = vld [vmem:[%s928 + $0xc0] sm:$0xff]
    %v954 = vld [vmem:[%s928 + $0xc8] sm:$0xff]
    %v955 = vld [vmem:[%s928 + $0xd0] sm:$0xff]
    %v956 = vld [vmem:[%s928 + $0xd8] sm:$0xff]
    %v957 = vld [vmem:[%s928 + $0xe0] sm:$0xff]
    %v958 = vld [vmem:[%s928 + $0xe8] sm:$0xff]
    %v959 = vld [vmem:[%s928 + $0xf0] sm:$0xff]
    %v960 = vld [vmem:[%s928 + $0xf8] sm:$0xff]
    %v961 = vld [vmem:[%s928 + $0x100] sm:$0xff]
    %v962 = vld [vmem:[%s928 + $0x108] sm:$0xff]
    %v963 = vld [vmem:[%s928 + $0x110] sm:$0xff]
    %v964 = vld [vmem:[%s928 + $0x118] sm:$0xff]
    %v965 = vld [vmem:[%s928 + $0x120] sm:$0xff]
    %v966 = vld [vmem:[%s928 + $0x128] sm:$0xff]
    %v967 = vld [vmem:[%s928 + $0x130] sm:$0xff]
    %v968 = vld [vmem:[%s928 + $0x138] sm:$0xff]
    %v969 = vld [vmem:[%s928 + $0x140] sm:$0xff]
    %v970 = vld [vmem:[%s928 + $0x148] sm:$0xff]
    %v971 = vld [vmem:[%s928 + $0x150] sm:$0xff]
    %v972 = vld [vmem:[%s928 + $0x158] sm:$0xff]
    %v973 = vld [vmem:[%s928 + $0x160] sm:$0xff]
    %v974 = vld [vmem:[%s928 + $0x168] sm:$0xff]
    %v975 = vld [vmem:[%s928 + $0x170] sm:$0xff]
    %v976 = vld [vmem:[%s928 + $0x178] sm:$0xff]
    %v977 = vld [vmem:[%s928 + $0x180] sm:$0xff]
    %v978 = vld [vmem:[%s928 + $0x188] sm:$0xff]
    %v979 = vld [vmem:[%s928 + $0x190] sm:$0xff]
    %v980 = vld [vmem:[%s928 + $0x198] sm:$0xff]
    %v981 = vld [vmem:[%s928 + $0x1a0] sm:$0xff]
    %v982 = vld [vmem:[%s928 + $0x1a8] sm:$0xff]
    %v983 = vld [vmem:[%s928 + $0x1b0] sm:$0xff]
    %v984 = vld [vmem:[%s928 + $0x1b8] sm:$0xff]
    %v985 = vld [vmem:[%s928 + $0x1c0] sm:$0xff]
    %v986 = vld [vmem:[%s928 + $0x1c8] sm:$0xff]
    %v987 = vld [vmem:[%s928 + $0x1d0] sm:$0xff]
    %v988 = vld [vmem:[%s928 + $0x1d8] sm:$0xff]
    %v989 = vld [vmem:[%s928 + $0x1e0] sm:$0xff]
    %v990 = vld [vmem:[%s928 + $0x1e8] sm:$0xff]
    %v991 = vld [vmem:[%s928 + $0x1f0] sm:$0xff]
    %v992 = vld [vmem:[%s928 + $0x1f8] sm:$0xff]
    %993 = vmatprep.subr.mxu0 %v930
    %994 = vmatpush1.msra.mxu0 %v929
    %995 = vmatprep.subr.mxu0 %v932
    %996 = vmatpush1.msra.mxu0 %v931
    %997 = vmatprep.subr.mxu0 %v934
    %998 = vmatpush1.msra.mxu0 %v933
    %999 = vmatprep.subr.mxu0 %v936
    %1000 = vmatpush1.msra.mxu0 %v935
    %1001 = vmatprep.subr.mxu0 %v938
    %1002 = vmatpush1.msra.mxu0 %v937
    %1003 = vmatprep.subr.mxu0 %v940
    %1004 = vmatpush1.msra.mxu0 %v939
    %1005 = vmatprep.subr.mxu0 %v942
    %1006 = vmatpush1.msra.mxu0 %v941
    %1007 = vmatprep.subr.mxu0 %v944
    %1008 = vmatpush1.msra.mxu0 %v943
    %1009 = vmatprep.subr.mxu0 %v946
    %1010 = vmatpush1.msra.mxu0 %v945
    %1011 = vmatprep.subr.mxu0 %v948
    %1012 = vmatpush1.msra.mxu0 %v947
    %1013 = vmatprep.subr.mxu0 %v950
    %1014 = vmatpush1.msra.mxu0 %v949
    %1015 = vmatprep.subr.mxu0 %v952
    %1016 = vmatpush1.msra.mxu0 %v951
    %1017 = vmatprep.subr.mxu0 %v954
    %1018 = vmatpush1.msra.mxu0 %v953
    %1019 = vmatprep.subr.mxu0 %v956
    %1020 = vmatpush1.msra.mxu0 %v955
    %1021 = vmatprep.subr.mxu0 %v958
    %1022 = vmatpush1.msra.mxu0 %v957
    %1023 = vmatprep.subr.mxu0 %v960
    %1024 = vmatpush1.msra.mxu0 %v959
    %1025 = vmatprep.subr.mxu0 %v962
    %1026 = vmatpush1.msra.mxu0 %v961
    %1027 = vmatprep.subr.mxu0 %v964
    %1028 = vmatpush1.msra.mxu0 %v963
    %1029 = vmatprep.subr.mxu0 %v966
    %1030 = vmatpush1.msra.mxu0 %v965
    %1031 = vmatprep.subr.mxu0 %v968
    %1032 = vmatpush1.msra.mxu0 %v967
    %1033 = vmatprep.subr.mxu0 %v970
    %1034 = vmatpush1.msra.mxu0 %v969
    %1035 = vmatprep.subr.mxu0 %v972
    %1036 = vmatpush1.msra.mxu0 %v971
    %1037 = vmatprep.subr.mxu0 %v974
    %1038 = vmatpush1.msra.mxu0 %v973
    %1039 = vmatprep.subr.mxu0 %v976
    %1040 = vmatpush1.msra.mxu0 %v975
    %1041 = vmatprep.subr.mxu0 %v978
    %1042 = vmatpush1.msra.mxu0 %v977
    %1043 = vmatprep.subr.mxu0 %v980
    %1044 = vmatpush1.msra.mxu0 %v979
    %1045 = vmatprep.subr.mxu0 %v982
    %1046 = vmatpush1.msra.mxu0 %v981
    %1047 = vmatprep.subr.mxu0 %v984
    %1048 = vmatpush1.msra.mxu0 %v983
    %1049 = vmatprep.subr.mxu0 %v986
    %1050 = vmatpush1.msra.mxu0 %v985
    %1051 = vmatprep.subr.mxu0 %v988
    %1052 = vmatpush1.msra.mxu0 %v987
    %1053 = vmatprep.subr.mxu0 %v990
    %1054 = vmatpush1.msra.mxu0 %v989
    %1055 = vmatprep.subr.mxu0 %v992
    %1056 = vmatpush1.msra.mxu0 %v991
    %1057 = vmatprep.mubr.f32.mxu0 %v905
    %1058 = vmatmul.mubr.f32.gmra.mrb[0].mxu0 %v902
    %v1059 = vpop.f32.mrb[0].mxu0
    %v1060 = vadd.f32 0.0, %v1059
    %v1061 = vpop.f32.mrb[0].mxu0
    %v1062 = vadd.f32 0.0, %v1061
    %1063 = vmatprep.mubr.f32.mxu0 %v909
    %1064 = vmatmul.mubr.f32.gmra.mrb[0].mxu0 %v907
    %v1065 = vpop.f32.mrb[0].mxu0
    %v1066 = vadd.f32 0.0, %v1065
    %v1067 = vpop.f32.mrb[0].mxu0
    %v1068 = vadd.f32 0.0, %v1067
    %1069 = vmatprep.mubr.f32.mxu0 %v915
    %1070 = vmatmul.mubr.f32.gmra.mrb[0].mxu0 %v912
    %v1071 = vpop.f32.mrb[0].mxu0
    %v1072 = vadd.f32 0.0, %v1071
    %v1073 = vpop.f32.mrb[0].mxu0
    %v1074 = vadd.f32 0.0, %v1073
    %1075 = vmatprep.mubr.f32.mxu0 %v919
    %1076 = vmatmul.mubr.f32.gmra.mrb[0].mxu0 %v917
    %v1077 = vpop.f32.mrb[0].mxu0
    %v1078 = vadd.f32 0.0, %v1077
    %v1079 = vpop.f32.mrb[0].mxu0
    %v1080 = vadd.f32 0.0, %v1079
    %1081 = vdwg.mxu0
    %1082 = vmatprep.subr.mxu0 %v813
    %1083 = vmatpush1.msra.mxu0 %v812
    %1084 = vmatprep.subr.mxu0 %v815
    %1085 = vmatpush1.msra.mxu0 %v814
    %1086 = vmatprep.subr.mxu0 %v817
    %1087 = vmatpush1.msra.mxu0 %v816
    %1088 = vmatprep.subr.mxu0 %v819
    %1089 = vmatpush1.msra.mxu0 %v818
    %1090 = vmatprep.subr.mxu0 %v821
    %1091 = vmatpush1.msra.mxu0 %v820
    %1092 = vmatprep.subr.mxu0 %v823
    %1093 = vmatpush1.msra.mxu0 %v822
    %1094 = vmatprep.subr.mxu0 %v825
    %1095 = vmatpush1.msra.mxu0 %v824
    %1096 = vmatprep.subr.mxu0 %v827
    %1097 = vmatpush1.msra.mxu0 %v826
    %1098 = vmatprep.subr.mxu0 %v829
    %1099 = vmatpush1.msra.mxu0 %v828
    %1100 = vmatprep.subr.mxu0 %v831
    %1101 = vmatpush1.msra.mxu0 %v830
    %1102 = vmatprep.subr.mxu0 %v833
    %1103 = vmatpush1.msra.mxu0 %v832
    %1104 = vmatprep.subr.mxu0 %v835
    %1105 = vmatpush1.msra.mxu0 %v834
    %1106 = vmatprep.subr.mxu0 %v837
    %1107 = vmatpush1.msra.mxu0 %v836
    %1108 = vmatprep.subr.mxu0 %v839
    %1109 = vmatpush1.msra.mxu0 %v838
    %1110 = vmatprep.subr.mxu0 %v841
    %1111 = vmatpush1.msra.mxu0 %v840
    %1112 = vmatprep.subr.mxu0 %v843
    %1113 = vmatpush1.msra.mxu0 %v842
    %1114 = vmatprep.subr.mxu0 %v845
    %1115 = vmatpush1.msra.mxu0 %v844
    %1116 = vmatprep.subr.mxu0 %v847
    %1117 = vmatpush1.msra.mxu0 %v846
    %1118 = vmatprep.subr.mxu0 %v849
    %1119 = vmatpush1.msra.mxu0 %v848
    %1120 = vmatprep.subr.mxu0 %v851
    %1121 = vmatpush1.msra.mxu0 %v850
    %1122 = vmatprep.subr.mxu0 %v853
    %1123 = vmatpush1.msra.mxu0 %v852
    %1124 = vmatprep.subr.mxu0 %v855
    %1125 = vmatpush1.msra.mxu0 %v854
    %1126 = vmatprep.subr.mxu0 %v857
    %1127 = vmatpush1.msra.mxu0 %v856
    %1128 = vmatprep.subr.mxu0 %v859
    %1129 = vmatpush1.msra.mxu0 %v858
    %1130 = vmatprep.subr.mxu0 %v861
    %1131 = vmatpush1.msra.mxu0 %v860
    %1132 = vmatprep.subr.mxu0 %v863
    %1133 = vmatpush1.msra.mxu0 %v862
    %1134 = vmatprep.subr.mxu0 %v865
    %1135 = vmatpush1.msra.mxu0 %v864
    %1136 = vmatprep.subr.mxu0 %v867
    %1137 = vmatpush1.msra.mxu0 %v866
    %1138 = vmatprep.subr.mxu0 %v869
    %1139 = vmatpush1.msra.mxu0 %v868
    %1140 = vmatprep.subr.mxu0 %v871
    %1141 = vmatpush1.msra.mxu0 %v870
    %1142 = vmatprep.subr.mxu0 %v873
    %1143 = vmatpush1.msra.mxu0 %v872
    %1144 = vmatprep.subr.mxu0 %v875
    %1145 = vmatpush1.msra.mxu0 %v874
    %1146 = vmatprep.mubr.f32.mxu0 %v805
    %1147 = vmatmul.mubr.f32.gmra.mrb[0].mxu0 %v804
    %v1148 = vpop.f32.mrb[0].mxu0
    %v1149 = vadd.f32 %v1060, %v1148
    %v1150 = vpop.f32.mrb[0].mxu0
    %v1151 = vadd.f32 %v1062, %v1150
    %1152 = vmatprep.mubr.f32.mxu0 %v807
    %1153 = vmatmul.mubr.f32.gmra.mrb[0].mxu0 %v806
    %v1154 = vpop.f32.mrb[0].mxu0
    %v1155 = vadd.f32 %v1066, %v1154
    %v1156 = vpop.f32.mrb[0].mxu0
    %v1157 = vadd.f32 %v1068, %v1156
    %1158 = vmatprep.mubr.f32.mxu0 %v809
    %1159 = vmatmul.mubr.f32.gmra.mrb[0].mxu0 %v808
    %v1160 = vpop.f32.mrb[0].mxu0
    %v1161 = vadd.f32 %v1072, %v1160
    %v1162 = vpop.f32.mrb[0].mxu0
    %v1163 = vadd.f32 %v1074, %v1162
    %1164 = vmatprep.mubr.f32.mxu0 %v811
    %1165 = vmatmul.mubr.f32.gmra.mrb[0].mxu0 %v810
    %v1166 = vpop.f32.mrb[0].mxu0
    %v1167 = vadd.f32 %v1078, %v1166
    %v1168 = vpop.f32.mrb[0].mxu0
    %v1169 = vadd.f32 %v1080, %v1168
    %1170 = vdwg.mxu0
    %v1171 = vld [vmem:[#allocation2] sm:$0xfc]
    %v1172 = vld [vmem:[#allocation2 + $0x8] sm:$0xfc]
    %v1173 = vld [vmem:[#allocation2 + $0x20] sm:$0x3]
    %v1174 = vld [vmem:[#allocation2 + $0x28] sm:$0x3]
    %v1175 = vld [vmem:[#allocation2 + $0x30] sm:$0xfc]
    %v1176 = vld [vmem:[#allocation2 + $0x38] sm:$0xfc]
    %v1177 = vld [vmem:[#allocation2 + $0x50] sm:$0x3]
    %v1178 = vld [vmem:[#allocation2 + $0x58] sm:$0x3]
    %v1187 = vrot.slane %v1171, 2
    %v1188 = vrot.slane %v878, 2
    %v1189 = vsel %vm561, %v1187, %v1188
    %v1190 = vrot.slane %v1172, 2
    %v1191 = vrot.slane %v879, 2
    %v1192 = vsel %vm561, %v1190, %v1191
    %v1193 = vrot.slane %v1173, 2
    %v1194 = vsel %vm561, %v1188, %v1193
    %v1195 = vrot.slane %v1174, 2
    %v1196 = vsel %vm561, %v1191, %v1195
    %v1197 = vrot.slane %v1175, 2
    %v1198 = vrot.slane %v884, 2
    %v1199 = vsel %vm561, %v1197, %v1198
    %v1200 = vrot.slane %v1176, 2
    %v1201 = vrot.slane %v885, 2
    %v1202 = vsel %vm561, %v1200, %v1201
    %v1203 = vrot.slane %v1177, 2
    %v1204 = vsel %vm561, %v1198, %v1203
    %v1205 = vrot.slane %v1178, 2
    %v1206 = vsel %vm561, %v1201, %v1205
    %s1215 = scalar_lea.vmem [#allocation9], 1024
    %v1216 = vld [vmem:[%s1215] sm:$0xff]
    %v1217 = vld [vmem:[%s1215 + $0x8] sm:$0xff]
    %v1218 = vld [vmem:[%s1215 + $0x10] sm:$0xff]
    %v1219 = vld [vmem:[%s1215 + $0x18] sm:$0xff]
    %v1220 = vld [vmem:[%s1215 + $0x20] sm:$0xff]
    %v1221 = vld [vmem:[%s1215 + $0x28] sm:$0xff]
    %v1222 = vld [vmem:[%s1215 + $0x30] sm:$0xff]
    %v1223 = vld [vmem:[%s1215 + $0x38] sm:$0xff]
    %v1224 = vld [vmem:[%s1215 + $0x40] sm:$0xff]
    %v1225 = vld [vmem:[%s1215 + $0x48] sm:$0xff]
    %v1226 = vld [vmem:[%s1215 + $0x50] sm:$0xff]
    %v1227 = vld [vmem:[%s1215 + $0x58] sm:$0xff]
    %v1228 = vld [vmem:[%s1215 + $0x60] sm:$0xff]
    %v1229 = vld [vmem:[%s1215 + $0x68] sm:$0xff]
    %v1230 = vld [vmem:[%s1215 + $0x70] sm:$0xff]
    %v1231 = vld [vmem:[%s1215 + $0x78] sm:$0xff]
    %v1232 = vld [vmem:[%s1215 + $0x80] sm:$0xff]
    %v1233 = vld [vmem:[%s1215 + $0x88] sm:$0xff]
    %v1234 = vld [vmem:[%s1215 + $0x90] sm:$0xff]
    %v1235 = vld [vmem:[%s1215 + $0x98] sm:$0xff]
    %v1236 = vld [vmem:[%s1215 + $0xa0] sm:$0xff]
    %v1237 = vld [vmem:[%s1215 + $0xa8] sm:$0xff]
    %v1238 = vld [vmem:[%s1215 + $0xb0] sm:$0xff]
    %v1239 = vld [vmem:[%s1215 + $0xb8] sm:$0xff]
    %v1240 = vld [vmem:[%s1215 + $0xc0] sm:$0xff]
    %v1241 = vld [vmem:[%s1215 + $0xc8] sm:$0xff]
    %v1242 = vld [vmem:[%s1215 + $0xd0] sm:$0xff]
    %v1243 = vld [vmem:[%s1215 + $0xd8] sm:$0xff]
    %v1244 = vld [vmem:[%s1215 + $0xe0] sm:$0xff]
    %v1245 = vld [vmem:[%s1215 + $0xe8] sm:$0xff]
    %v1246 = vld [vmem:[%s1215 + $0xf0] sm:$0xff]
    %v1247 = vld [vmem:[%s1215 + $0xf8] sm:$0xff]
    %v1248 = vld [vmem:[%s1215 + $0x100] sm:$0xff]
    %v1249 = vld [vmem:[%s1215 + $0x108] sm:$0xff]
    %v1250 = vld [vmem:[%s1215 + $0x110] sm:$0xff]
    %v1251 = vld [vmem:[%s1215 + $0x118] sm:$0xff]
    %v1252 = vld [vmem:[%s1215 + $0x120] sm:$0xff]
    %v1253 = vld [vmem:[%s1215 + $0x128] sm:$0xff]
    %v1254 = vld [vmem:[%s1215 + $0x130] sm:$0xff]
    %v1255 = vld [vmem:[%s1215 + $0x138] sm:$0xff]
    %v1256 = vld [vmem:[%s1215 + $0x140] sm:$0xff]
    %v1257 = vld [vmem:[%s1215 + $0x148] sm:$0xff]
    %v1258 = vld [vmem:[%s1215 + $0x150] sm:$0xff]
    %v1259 = vld [vmem:[%s1215 + $0x158] sm:$0xff]
    %v1260 = vld [vmem:[%s1215 + $0x160] sm:$0xff]
    %v1261 = vld [vmem:[%s1215 + $0x168] sm:$0xff]
    %v1262 = vld [vmem:[%s1215 + $0x170] sm:$0xff]
    %v1263 = vld [vmem:[%s1215 + $0x178] sm:$0xff]
    %v1264 = vld [vmem:[%s1215 + $0x180] sm:$0xff]
    %v1265 = vld [vmem:[%s1215 + $0x188] sm:$0xff]
    %v1266 = vld [vmem:[%s1215 + $0x190] sm:$0xff]
    %v1267 = vld [vmem:[%s1215 + $0x198] sm:$0xff]
    %v1268 = vld [vmem:[%s1215 + $0x1a0] sm:$0xff]
    %v1269 = vld [vmem:[%s1215 + $0x1a8] sm:$0xff]
    %v1270 = vld [vmem:[%s1215 + $0x1b0] sm:$0xff]
    %v1271 = vld [vmem:[%s1215 + $0x1b8] sm:$0xff]
    %v1272 = vld [vmem:[%s1215 + $0x1c0] sm:$0xff]
    %v1273 = vld [vmem:[%s1215 + $0x1c8] sm:$0xff]
    %v1274 = vld [vmem:[%s1215 + $0x1d0] sm:$0xff]
    %v1275 = vld [vmem:[%s1215 + $0x1d8] sm:$0xff]
    %v1276 = vld [vmem:[%s1215 + $0x1e0] sm:$0xff]
    %v1277 = vld [vmem:[%s1215 + $0x1e8] sm:$0xff]
    %v1278 = vld [vmem:[%s1215 + $0x1f0] sm:$0xff]
    %v1279 = vld [vmem:[%s1215 + $0x1f8] sm:$0xff]
    %1280 = vmatprep.subr.mxu0 %v1217
    %1281 = vmatpush1.msra.mxu0 %v1216
    %1282 = vmatprep.subr.mxu0 %v1219
    %1283 = vmatpush1.msra.mxu0 %v1218
    %1284 = vmatprep.subr.mxu0 %v1221
    %1285 = vmatpush1.msra.mxu0 %v1220
    %1286 = vmatprep.subr.mxu0 %v1223
    %1287 = vmatpush1.msra.mxu0 %v1222
    %1288 = vmatprep.subr.mxu0 %v1225
    %1289 = vmatpush1.msra.mxu0 %v1224
    %1290 = vmatprep.subr.mxu0 %v1227
    %1291 = vmatpush1.msra.mxu0 %v1226
    %1292 = vmatprep.subr.mxu0 %v1229
    %1293 = vmatpush1.msra.mxu0 %v1228
    %1294 = vmatprep.subr.mxu0 %v1231
    %1295 = vmatpush1.msra.mxu0 %v1230
    %1296 = vmatprep.subr.mxu0 %v1233
    %1297 = vmatpush1.msra.mxu0 %v1232
    %1298 = vmatprep.subr.mxu0 %v1235
    %1299 = vmatpush1.msra.mxu0 %v1234
    %1300 = vmatprep.subr.mxu0 %v1237
    %1301 = vmatpush1.msra.mxu0 %v1236
    %1302 = vmatprep.subr.mxu0 %v1239
    %1303 = vmatpush1.msra.mxu0 %v1238
    %1304 = vmatprep.subr.mxu0 %v1241
    %1305 = vmatpush1.msra.mxu0 %v1240
    %1306 = vmatprep.subr.mxu0 %v1243
    %1307 = vmatpush1.msra.mxu0 %v1242
    %1308 = vmatprep.subr.mxu0 %v1245
    %1309 = vmatpush1.msra.mxu0 %v1244
    %1310 = vmatprep.subr.mxu0 %v1247
    %1311 = vmatpush1.msra.mxu0 %v1246
    %1312 = vmatprep.subr.mxu0 %v1249
    %1313 = vmatpush1.msra.mxu0 %v1248
    %1314 = vmatprep.subr.mxu0 %v1251
    %1315 = vmatpush1.msra.mxu0 %v1250
    %1316 = vmatprep.subr.mxu0 %v1253
    %1317 = vmatpush1.msra.mxu0 %v1252
    %1318 = vmatprep.subr.mxu0 %v1255
    %1319 = vmatpush1.msra.mxu0 %v1254
    %1320 = vmatprep.subr.mxu0 %v1257
    %1321 = vmatpush1.msra.mxu0 %v1256
    %1322 = vmatprep.subr.mxu0 %v1259
    %1323 = vmatpush1.msra.mxu0 %v1258
    %1324 = vmatprep.subr.mxu0 %v1261
    %1325 = vmatpush1.msra.mxu0 %v1260
    %1326 = vmatprep.subr.mxu0 %v1263
    %1327 = vmatpush1.msra.mxu0 %v1262
    %1328 = vmatprep.subr.mxu0 %v1265
    %1329 = vmatpush1.msra.mxu0 %v1264
    %1330 = vmatprep.subr.mxu0 %v1267
    %1331 = vmatpush1.msra.mxu0 %v1266
    %1332 = vmatprep.subr.mxu0 %v1269
    %1333 = vmatpush1.msra.mxu0 %v1268
    %1334 = vmatprep.subr.mxu0 %v1271
    %1335 = vmatpush1.msra.mxu0 %v1270
    %1336 = vmatprep.subr.mxu0 %v1273
    %1337 = vmatpush1.msra.mxu0 %v1272
    %1338 = vmatprep.subr.mxu0 %v1275
    %1339 = vmatpush1.msra.mxu0 %v1274
    %1340 = vmatprep.subr.mxu0 %v1277
    %1341 = vmatpush1.msra.mxu0 %v1276
    %1342 = vmatprep.subr.mxu0 %v1279
    %1343 = vmatpush1.msra.mxu0 %v1278
    %1344 = vmatprep.mubr.f32.mxu0 %v1192
    %1345 = vmatmul.mubr.f32.gmra.mrb[0].mxu0 %v1189
    %v1346 = vpop.f32.mrb[0].mxu0
    %v1347 = vadd.f32 0.0, %v1346
    %v1348 = vpop.f32.mrb[0].mxu0
    %v1349 = vadd.f32 0.0, %v1348
    %1350 = vmatprep.mubr.f32.mxu0 %v1196
    %1351 = vmatmul.mubr.f32.gmra.mrb[0].mxu0 %v1194
    %v1352 = vpop.f32.mrb[0].mxu0
    %v1353 = vadd.f32 0.0, %v1352
    %v1354 = vpop.f32.mrb[0].mxu0
    %v1355 = vadd.f32 0.0, %v1354
    %1356 = vmatprep.mubr.f32.mxu0 %v1202
    %1357 = vmatmul.mubr.f32.gmra.mrb[0].mxu0 %v1199
    %v1358 = vpop.f32.mrb[0].mxu0
    %v1359 = vadd.f32 0.0, %v1358
    %v1360 = vpop.f32.mrb[0].mxu0
    %v1361 = vadd.f32 0.0, %v1360
    %1362 = vmatprep.mubr.f32.mxu0 %v1206
    %1363 = vmatmul.mubr.f32.gmra.mrb[0].mxu0 %v1204
    %v1364 = vpop.f32.mrb[0].mxu0
    %v1365 = vadd.f32 0.0, %v1364
    %v1366 = vpop.f32.mrb[0].mxu0
    %v1367 = vadd.f32 0.0, %v1366
    %1368 = vdwg.mxu0
    %v1369 = vadd.f32 %v1149, %v1347
    %v1370 = vadd.f32 %v1151, %v1349
    %v1371 = vadd.f32 %v1155, %v1353
    %v1372 = vadd.f32 %v1157, %v1355
    %v1373 = vadd.f32 %v1161, %v1359
    %v1374 = vadd.f32 %v1163, %v1361
    %v1375 = vadd.f32 %v1167, %v1365
    %v1376 = vadd.f32 %v1169, %v1367
    %1381 = vrot.lane.b32.xlu0 %v1369, 112
    %v1382 = vpop.permute.xlu0 %1381
    %1383 = vrot.lane.b32.xlu0 %v1371, 112
    %v1384 = vpop.permute.xlu0 %1383
    %1385 = vrot.lane.b32.xlu0 %v1373, 112
    %v1386 = vpop.permute.xlu0 %1385
    %1387 = vrot.lane.b32.xlu0 %v1375, 112
    %v1388 = vpop.permute.xlu0 %1387
    %1393 = vrot.lane.b32.xlu0 %v1369, 96
    %v1394 = vpop.permute.xlu0 %1393
    %1395 = vrot.lane.b32.xlu0 %v1371, 96
    %v1396 = vpop.permute.xlu0 %1395
    %1397 = vrot.lane.b32.xlu0 %v1373, 96
    %v1398 = vpop.permute.xlu0 %1397
    %1399 = vrot.lane.b32.xlu0 %v1375, 96
    %v1400 = vpop.permute.xlu0 %1399
    %1405 = vrot.lane.b32.xlu0 %v1369, 80
    %v1406 = vpop.permute.xlu0 %1405
    %1407 = vrot.lane.b32.xlu0 %v1371, 80
    %v1408 = vpop.permute.xlu0 %1407
    %1409 = vrot.lane.b32.xlu0 %v1373, 80
    %v1410 = vpop.permute.xlu0 %1409
    %1411 = vrot.lane.b32.xlu0 %v1375, 80
    %v1412 = vpop.permute.xlu0 %1411
    %1417 = vrot.lane.b32.xlu0 %v1369, 64
    %v1418 = vpop.permute.xlu0 %1417
    %1419 = vrot.lane.b32.xlu0 %v1371, 64
    %v1420 = vpop.permute.xlu0 %1419
    %1421 = vrot.lane.b32.xlu0 %v1373, 64
    %v1422 = vpop.permute.xlu0 %1421
    %1423 = vrot.lane.b32.xlu0 %v1375, 64
    %v1424 = vpop.permute.xlu0 %1423
    %1429 = vrot.lane.b32.xlu0 %v1369, 48
    %v1430 = vpop.permute.xlu0 %1429
    %1431 = vrot.lane.b32.xlu0 %v1371, 48
    %v1432 = vpop.permute.xlu0 %1431
    %1433 = vrot.lane.b32.xlu0 %v1373, 48
    %v1434 = vpop.permute.xlu0 %1433
    %1435 = vrot.lane.b32.xlu0 %v1375, 48
    %v1436 = vpop.permute.xlu0 %1435
    %1441 = vrot.lane.b32.xlu0 %v1369, 32
    %v1442 = vpop.permute.xlu0 %1441
    %1443 = vrot.lane.b32.xlu0 %v1371, 32
    %v1444 = vpop.permute.xlu0 %1443
    %1445 = vrot.lane.b32.xlu0 %v1373, 32
    %v1446 = vpop.permute.xlu0 %1445
    %1447 = vrot.lane.b32.xlu0 %v1375, 32
    %v1448 = vpop.permute.xlu0 %1447
    %1453 = vrot.lane.b32.xlu0 %v1369, 16
    %v1454 = vpop.permute.xlu0 %1453
    %1455 = vrot.lane.b32.xlu0 %v1371, 16
    %v1456 = vpop.permute.xlu0 %1455
    %1457 = vrot.lane.b32.xlu0 %v1373, 16
    %v1458 = vpop.permute.xlu0 %1457
    %1459 = vrot.lane.b32.xlu0 %v1375, 16
    %v1460 = vpop.permute.xlu0 %1459
    %1469 = vrot.lane.b32.xlu0 %v1370, 112
    %v1470 = vpop.permute.xlu0 %1469
    %1471 = vrot.lane.b32.xlu0 %v1372, 112
    %v1472 = vpop.permute.xlu0 %1471
    %1473 = vrot.lane.b32.xlu0 %v1374, 112
    %v1474 = vpop.permute.xlu0 %1473
    %1475 = vrot.lane.b32.xlu0 %v1376, 112
    %v1476 = vpop.permute.xlu0 %1475
    %1481 = vrot.lane.b32.xlu0 %v1370, 96
    %v1482 = vpop.permute.xlu0 %1481
    %1483 = vrot.lane.b32.xlu0 %v1372, 96
    %v1484 = vpop.permute.xlu0 %1483
    %1485 = vrot.lane.b32.xlu0 %v1374, 96
    %v1486 = vpop.permute.xlu0 %1485
    %1487 = vrot.lane.b32.xlu0 %v1376, 96
    %v1488 = vpop.permute.xlu0 %1487
    %1493 = vrot.lane.b32.xlu0 %v1370, 80
    %v1494 = vpop.permute.xlu0 %1493
    %1495 = vrot.lane.b32.xlu0 %v1372, 80
    %v1496 = vpop.permute.xlu0 %1495
    %1497 = vrot.lane.b32.xlu0 %v1374, 80
    %v1498 = vpop.permute.xlu0 %1497
    %1499 = vrot.lane.b32.xlu0 %v1376, 80
    %v1500 = vpop.permute.xlu0 %1499
    %1505 = vrot.lane.b32.xlu0 %v1370, 64
    %v1506 = vpop.permute.xlu0 %1505
    %1507 = vrot.lane.b32.xlu0 %v1372, 64
    %v1508 = vpop.permute.xlu0 %1507
    %1509 = vrot.lane.b32.xlu0 %v1374, 64
    %v1510 = vpop.permute.xlu0 %1509
    %1511 = vrot.lane.b32.xlu0 %v1376, 64
    %v1512 = vpop.permute.xlu0 %1511
    %1517 = vrot.lane.b32.xlu0 %v1370, 48
    %v1518 = vpop.permute.xlu0 %1517
    %1519 = vrot.lane.b32.xlu0 %v1372, 48
    %v1520 = vpop.permute.xlu0 %1519
    %1521 = vrot.lane.b32.xlu0 %v1374, 48
    %v1522 = vpop.permute.xlu0 %1521
    %1523 = vrot.lane.b32.xlu0 %v1376, 48
    %v1524 = vpop.permute.xlu0 %1523
    %1529 = vrot.lane.b32.xlu0 %v1370, 32
    %v1530 = vpop.permute.xlu0 %1529
    %1531 = vrot.lane.b32.xlu0 %v1372, 32
    %v1532 = vpop.permute.xlu0 %1531
    %1533 = vrot.lane.b32.xlu0 %v1374, 32
    %v1534 = vpop.permute.xlu0 %1533
    %1535 = vrot.lane.b32.xlu0 %v1376, 32
    %v1536 = vpop.permute.xlu0 %1535
    %1541 = vrot.lane.b32.xlu0 %v1370, 16
    %v1542 = vpop.permute.xlu0 %1541
    %1543 = vrot.lane.b32.xlu0 %v1372, 16
    %v1544 = vpop.permute.xlu0 %1543
    %1545 = vrot.lane.b32.xlu0 %v1374, 16
    %v1546 = vpop.permute.xlu0 %1545
    %1547 = vrot.lane.b32.xlu0 %v1376, 16
    %v1548 = vpop.permute.xlu0 %1547
    %v1553 = vcombine.low %v1369, %v1394
    %v1554 = vcombine.high %v1369, %v1394
    %v1556 = vunpack.c.l.s4 1983009808
    %v1557 = vunpack.c.0.s8 %v1556
    %v1558 = vlaneseq
    %v1559 = vshrl.u32 %v1558, 7
    %v1560 = vsub.s32 %v1557, %v1559
    %v1561 = vrot.slane %v1553, %v1560
    %v1563 = vunpack.c.l.s4 1983009808
    %v1564 = vunpack.c.0.s8 %v1563
    %v1565 = vlaneseq
    %v1566 = vshrl.u32 %v1565, 7
    %v1567 = vsub.s32 %v1564, %v1566
    %v1568 = vrot.slane %v1554, %v1567
    %v1569 = vcombine.low %v1382, %v1406
    %v1570 = vcombine.high %v1382, %v1406
    %v1572 = vunpack.c.l.s4 1983009808
    %v1573 = vunpack.c.0.s8 %v1572
    %v1574 = vlaneseq
    %v1575 = vshrl.u32 %v1574, 7
    %v1576 = vsub.s32 %v1573, %v1575
    %v1577 = vrot.slane %v1569, %v1576
    %v1579 = vunpack.c.l.s4 1983009808
    %v1580 = vunpack.c.0.s8 %v1579
    %v1581 = vlaneseq
    %v1582 = vshrl.u32 %v1581, 7
    %v1583 = vsub.s32 %v1580, %v1582
    %v1584 = vrot.slane %v1570, %v1583
    %v1585 = vcombine.low %v1418, %v1442
    %v1586 = vcombine.high %v1418, %v1442
    %v1588 = vunpack.c.l.s4 1983009808
    %v1589 = vunpack.c.0.s8 %v1588
    %v1590 = vlaneseq
    %v1591 = vshrl.u32 %v1590, 7
    %v1592 = vsub.s32 %v1589, %v1591
    %v1593 = vrot.slane %v1585, %v1592
    %v1595 = vunpack.c.l.s4 1983009808
    %v1596 = vunpack.c.0.s8 %v1595
    %v1597 = vlaneseq
    %v1598 = vshrl.u32 %v1597, 7
    %v1599 = vsub.s32 %v1596, %v1598
    %v1600 = vrot.slane %v1586, %v1599
    %v1601 = vcombine.low %v1430, %v1454
    %v1602 = vcombine.high %v1430, %v1454
    %v1604 = vunpack.c.l.s4 1983009808
    %v1605 = vunpack.c.0.s8 %v1604
    %v1606 = vlaneseq
    %v1607 = vshrl.u32 %v1606, 7
    %v1608 = vsub.s32 %v1605, %v1607
    %v1609 = vrot.slane %v1601, %v1608
    %v1611 = vunpack.c.l.s4 1983009808
    %v1612 = vunpack.c.0.s8 %v1611
    %v1613 = vlaneseq
    %v1614 = vshrl.u32 %v1613, 7
    %v1615 = vsub.s32 %v1612, %v1614
    %v1616 = vrot.slane %v1602, %v1615
    %v1617 = vcombine.low %v1561, %v1577
    %v1618 = vcombine.high %v1561, %v1577
    %v1620 = vunpack.c.l.s4 1934713408
    %v1621 = vunpack.c.0.s8 %v1620
    %v1622 = vlaneseq
    %v1623 = vshrl.u32 %v1622, 7
    %v1624 = vsub.s32 %v1621, %v1623
    %v1625 = vrot.slane %v1617, %v1624
    %v1627 = vunpack.c.l.s4 1934713408
    %v1628 = vunpack.c.0.s8 %v1627
    %v1629 = vlaneseq
    %v1630 = vshrl.u32 %v1629, 7
    %v1631 = vsub.s32 %v1628, %v1630
    %v1632 = vrot.slane %v1618, %v1631
    %v1633 = vcombine.low %v1568, %v1584
    %v1634 = vcombine.high %v1568, %v1584
    %v1636 = vunpack.c.l.s4 1934713408
    %v1637 = vunpack.c.0.s8 %v1636
    %v1638 = vlaneseq
    %v1639 = vshrl.u32 %v1638, 7
    %v1640 = vsub.s32 %v1637, %v1639
    %v1641 = vrot.slane %v1633, %v1640
    %v1643 = vunpack.c.l.s4 1934713408
    %v1644 = vunpack.c.0.s8 %v1643
    %v1645 = vlaneseq
    %v1646 = vshrl.u32 %v1645, 7
    %v1647 = vsub.s32 %v1644, %v1646
    %v1648 = vrot.slane %v1634, %v1647
    %v1649 = vcombine.low %v1593, %v1609
    %v1650 = vcombine.high %v1593, %v1609
    %v1652 = vunpack.c.l.s4 1934713408
    %v1653 = vunpack.c.0.s8 %v1652
    %v1654 = vlaneseq
    %v1655 = vshrl.u32 %v1654, 7
    %v1656 = vsub.s32 %v1653, %v1655
    %v1657 = vrot.slane %v1649, %v1656
    %v1659 = vunpack.c.l.s4 1934713408
    %v1660 = vunpack.c.0.s8 %v1659
    %v1661 = vlaneseq
    %v1662 = vshrl.u32 %v1661, 7
    %v1663 = vsub.s32 %v1660, %v1662
    %v1664 = vrot.slane %v1650, %v1663
    %v1665 = vcombine.low %v1600, %v1616
    %v1666 = vcombine.high %v1600, %v1616
    %v1668 = vunpack.c.l.s4 1934713408
    %v1669 = vunpack.c.0.s8 %v1668
    %v1670 = vlaneseq
    %v1671 = vshrl.u32 %v1670, 7
    %v1672 = vsub.s32 %v1669, %v1671
    %v1673 = vrot.slane %v1665, %v1672
    %v1675 = vunpack.c.l.s4 1934713408
    %v1676 = vunpack.c.0.s8 %v1675
    %v1677 = vlaneseq
    %v1678 = vshrl.u32 %v1677, 7
    %v1679 = vsub.s32 %v1676, %v1678
    %v1680 = vrot.slane %v1666, %v1679
    %v1681 = vcombine.low %v1625, %v1657
    %v1682 = vcombine.high %v1625, %v1657
    %v1683 = vcombine.low %v1632, %v1664
    %v1684 = vcombine.high %v1632, %v1664
    %v1685 = vcombine.low %v1641, %v1673
    %v1686 = vcombine.high %v1641, %v1673
    %v1687 = vcombine.low %v1648, %v1680
    %v1688 = vcombine.high %v1648, %v1680
    %v1689 = vcombine.low %v1370, %v1482
    %v1690 = vcombine.high %v1370, %v1482
    %v1692 = vunpack.c.l.s4 1983009808
    %v1693 = vunpack.c.0.s8 %v1692
    %v1694 = vlaneseq
    %v1695 = vshrl.u32 %v1694, 7
    %v1696 = vsub.s32 %v1693, %v1695
    %v1697 = vrot.slane %v1689, %v1696
    %v1699 = vunpack.c.l.s4 1983009808
    %v1700 = vunpack.c.0.s8 %v1699
    %v1701 = vlaneseq
    %v1702 = vshrl.u32 %v1701, 7
    %v1703 = vsub.s32 %v1700, %v1702
    %v1704 = vrot.slane %v1690, %v1703
    %v1705 = vcombine.low %v1470, %v1494
    %v1706 = vcombine.high %v1470, %v1494
    %v1708 = vunpack.c.l.s4 1983009808
    %v1709 = vunpack.c.0.s8 %v1708
    %v1710 = vlaneseq
    %v1711 = vshrl.u32 %v1710, 7
    %v1712 = vsub.s32 %v1709, %v1711
    %v1713 = vrot.slane %v1705, %v1712
    %v1715 = vunpack.c.l.s4 1983009808
    %v1716 = vunpack.c.0.s8 %v1715
    %v1717 = vlaneseq
    %v1718 = vshrl.u32 %v1717, 7
    %v1719 = vsub.s32 %v1716, %v1718
    %v1720 = vrot.slane %v1706, %v1719
    %v1721 = vcombine.low %v1506, %v1530
    %v1722 = vcombine.high %v1506, %v1530
    %v1724 = vunpack.c.l.s4 1983009808
    %v1725 = vunpack.c.0.s8 %v1724
    %v1726 = vlaneseq
    %v1727 = vshrl.u32 %v1726, 7
    %v1728 = vsub.s32 %v1725, %v1727
    %v1729 = vrot.slane %v1721, %v1728
    %v1731 = vunpack.c.l.s4 1983009808
    %v1732 = vunpack.c.0.s8 %v1731
    %v1733 = vlaneseq
    %v1734 = vshrl.u32 %v1733, 7
    %v1735 = vsub.s32 %v1732, %v1734
    %v1736 = vrot.slane %v1722, %v1735
    %v1737 = vcombine.low %v1518, %v1542
    %v1738 = vcombine.high %v1518, %v1542
    %v1740 = vunpack.c.l.s4 1983009808
    %v1741 = vunpack.c.0.s8 %v1740
    %v1742 = vlaneseq
    %v1743 = vshrl.u32 %v1742, 7
    %v1744 = vsub.s32 %v1741, %v1743
    %v1745 = vrot.slane %v1737, %v1744
    %v1747 = vunpack.c.l.s4 1983009808
    %v1748 = vunpack.c.0.s8 %v1747
    %v1749 = vlaneseq
    %v1750 = vshrl.u32 %v1749, 7
    %v1751 = vsub.s32 %v1748, %v1750
    %v1752 = vrot.slane %v1738, %v1751
    %v1753 = vcombine.low %v1697, %v1713
    %v1754 = vcombine.high %v1697, %v1713
    %v1756 = vunpack.c.l.s4 1934713408
    %v1757 = vunpack.c.0.s8 %v1756
    %v1758 = vlaneseq
    %v1759 = vshrl.u32 %v1758, 7
    %v1760 = vsub.s32 %v1757, %v1759
    %v1761 = vrot.slane %v1753, %v1760
    %v1763 = vunpack.c.l.s4 1934713408
    %v1764 = vunpack.c.0.s8 %v1763
    %v1765 = vlaneseq
    %v1766 = vshrl.u32 %v1765, 7
    %v1767 = vsub.s32 %v1764, %v1766
    %v1768 = vrot.slane %v1754, %v1767
    %v1769 = vcombine.low %v1704, %v1720
    %v1770 = vcombine.high %v1704, %v1720
    %v1772 = vunpack.c.l.s4 1934713408
    %v1773 = vunpack.c.0.s8 %v1772
    %v1774 = vlaneseq
    %v1775 = vshrl.u32 %v1774, 7
    %v1776 = vsub.s32 %v1773, %v1775
    %v1777 = vrot.slane %v1769, %v1776
    %v1779 = vunpack.c.l.s4 1934713408
    %v1780 = vunpack.c.0.s8 %v1779
    %v1781 = vlaneseq
    %v1782 = vshrl.u32 %v1781, 7
    %v1783 = vsub.s32 %v1780, %v1782
    %v1784 = vrot.slane %v1770, %v1783
    %v1785 = vcombine.low %v1729, %v1745
    %v1786 = vcombine.high %v1729, %v1745
    %v1788 = vunpack.c.l.s4 1934713408
    %v1789 = vunpack.c.0.s8 %v1788
    %v1790 = vlaneseq
    %v1791 = vshrl.u32 %v1790, 7
    %v1792 = vsub.s32 %v1789, %v1791
    %v1793 = vrot.slane %v1785, %v1792
    %v1795 = vunpack.c.l.s4 1934713408
    %v1796 = vunpack.c.0.s8 %v1795
    %v1797 = vlaneseq
    %v1798 = vshrl.u32 %v1797, 7
    %v1799 = vsub.s32 %v1796, %v1798
    %v1800 = vrot.slane %v1786, %v1799
    %v1801 = vcombine.low %v1736, %v1752
    %v1802 = vcombine.high %v1736, %v1752
    %v1804 = vunpack.c.l.s4 1934713408
    %v1805 = vunpack.c.0.s8 %v1804
    %v1806 = vlaneseq
    %v1807 = vshrl.u32 %v1806, 7
    %v1808 = vsub.s32 %v1805, %v1807
    %v1809 = vrot.slane %v1801, %v1808
    %v1811 = vunpack.c.l.s4 1934713408
    %v1812 = vunpack.c.0.s8 %v1811
    %v1813 = vlaneseq
    %v1814 = vshrl.u32 %v1813, 7
    %v1815 = vsub.s32 %v1812, %v1814
    %v1816 = vrot.slane %v1802, %v1815
    %v1817 = vcombine.low %v1761, %v1793
    %v1818 = vcombine.high %v1761, %v1793
    %v1819 = vcombine.low %v1768, %v1800
    %v1820 = vcombine.high %v1768, %v1800
    %v1821 = vcombine.low %v1777, %v1809
    %v1822 = vcombine.high %v1777, %v1809
    %v1823 = vcombine.low %v1784, %v1816
    %v1824 = vcombine.high %v1784, %v1816
    %v1825 = vcombine.low %v1371, %v1396
    %v1826 = vcombine.high %v1371, %v1396
    %v1828 = vunpack.c.l.s4 1983009808
    %v1829 = vunpack.c.0.s8 %v1828
    %v1830 = vlaneseq
    %v1831 = vshrl.u32 %v1830, 7
    %v1832 = vsub.s32 %v1829, %v1831
    %v1833 = vrot.slane %v1825, %v1832
    %v1835 = vunpack.c.l.s4 1983009808
    %v1836 = vunpack.c.0.s8 %v1835
    %v1837 = vlaneseq
    %v1838 = vshrl.u32 %v1837, 7
    %v1839 = vsub.s32 %v1836, %v1838
    %v1840 = vrot.slane %v1826, %v1839
    %v1841 = vcombine.low %v1384, %v1408
    %v1842 = vcombine.high %v1384, %v1408
    %v1844 = vunpack.c.l.s4 1983009808
    %v1845 = vunpack.c.0.s8 %v1844
    %v1846 = vlaneseq
    %v1847 = vshrl.u32 %v1846, 7
    %v1848 = vsub.s32 %v1845, %v1847
    %v1849 = vrot.slane %v1841, %v1848
    %v1851 = vunpack.c.l.s4 1983009808
    %v1852 = vunpack.c.0.s8 %v1851
    %v1853 = vlaneseq
    %v1854 = vshrl.u32 %v1853, 7
    %v1855 = vsub.s32 %v1852, %v1854
    %v1856 = vrot.slane %v1842, %v1855
    %v1857 = vcombine.low %v1420, %v1444
    %v1858 = vcombine.high %v1420, %v1444
    %v1860 = vunpack.c.l.s4 1983009808
    %v1861 = vunpack.c.0.s8 %v1860
    %v1862 = vlaneseq
    %v1863 = vshrl.u32 %v1862, 7
    %v1864 = vsub.s32 %v1861, %v1863
    %v1865 = vrot.slane %v1857, %v1864
    %v1867 = vunpack.c.l.s4 1983009808
    %v1868 = vunpack.c.0.s8 %v1867
    %v1869 = vlaneseq
    %v1870 = vshrl.u32 %v1869, 7
    %v1871 = vsub.s32 %v1868, %v1870
    %v1872 = vrot.slane %v1858, %v1871
    %v1873 = vcombine.low %v1432, %v1456
    %v1874 = vcombine.high %v1432, %v1456
    %v1876 = vunpack.c.l.s4 1983009808
    %v1877 = vunpack.c.0.s8 %v1876
    %v1878 = vlaneseq
    %v1879 = vshrl.u32 %v1878, 7
    %v1880 = vsub.s32 %v1877, %v1879
    %v1881 = vrot.slane %v1873, %v1880
    %v1883 = vunpack.c.l.s4 1983009808
    %v1884 = vunpack.c.0.s8 %v1883
    %v1885 = vlaneseq
    %v1886 = vshrl.u32 %v1885, 7
    %v1887 = vsub.s32 %v1884, %v1886
    %v1888 = vrot.slane %v1874, %v1887
    %v1889 = vcombine.low %v1833, %v1849
    %v1890 = vcombine.high %v1833, %v1849
    %v1892 = vunpack.c.l.s4 1934713408
    %v1893 = vunpack.c.0.s8 %v1892
    %v1894 = vlaneseq
    %v1895 = vshrl.u32 %v1894, 7
    %v1896 = vsub.s32 %v1893, %v1895
    %v1897 = vrot.slane %v1889, %v1896
    %v1899 = vunpack.c.l.s4 1934713408
    %v1900 = vunpack.c.0.s8 %v1899
    %v1901 = vlaneseq
    %v1902 = vshrl.u32 %v1901, 7
    %v1903 = vsub.s32 %v1900, %v1902
    %v1904 = vrot.slane %v1890, %v1903
    %v1905 = vcombine.low %v1840, %v1856
    %v1906 = vcombine.high %v1840, %v1856
    %v1908 = vunpack.c.l.s4 1934713408
    %v1909 = vunpack.c.0.s8 %v1908
    %v1910 = vlaneseq
    %v1911 = vshrl.u32 %v1910, 7
    %v1912 = vsub.s32 %v1909, %v1911
    %v1913 = vrot.slane %v1905, %v1912
    %v1915 = vunpack.c.l.s4 1934713408
    %v1916 = vunpack.c.0.s8 %v1915
    %v1917 = vlaneseq
    %v1918 = vshrl.u32 %v1917, 7
    %v1919 = vsub.s32 %v1916, %v1918
    %v1920 = vrot.slane %v1906, %v1919
    %v1921 = vcombine.low %v1865, %v1881
    %v1922 = vcombine.high %v1865, %v1881
    %v1924 = vunpack.c.l.s4 1934713408
    %v1925 = vunpack.c.0.s8 %v1924
    %v1926 = vlaneseq
    %v1927 = vshrl.u32 %v1926, 7
    %v1928 = vsub.s32 %v1925, %v1927
    %v1929 = vrot.slane %v1921, %v1928
    %v1931 = vunpack.c.l.s4 1934713408
    %v1932 = vunpack.c.0.s8 %v1931
    %v1933 = vlaneseq
    %v1934 = vshrl.u32 %v1933, 7
    %v1935 = vsub.s32 %v1932, %v1934
    %v1936 = vrot.slane %v1922, %v1935
    %v1937 = vcombine.low %v1872, %v1888
    %v1938 = vcombine.high %v1872, %v1888
    %v1940 = vunpack.c.l.s4 1934713408
    %v1941 = vunpack.c.0.s8 %v1940
    %v1942 = vlaneseq
    %v1943 = vshrl.u32 %v1942, 7
    %v1944 = vsub.s32 %v1941, %v1943
    %v1945 = vrot.slane %v1937, %v1944
    %v1947 = vunpack.c.l.s4 1934713408
    %v1948 = vunpack.c.0.s8 %v1947
    %v1949 = vlaneseq
    %v1950 = vshrl.u32 %v1949, 7
    %v1951 = vsub.s32 %v1948, %v1950
    %v1952 = vrot.slane %v1938, %v1951
    %v1953 = vcombine.low %v1897, %v1929
    %v1954 = vcombine.high %v1897, %v1929
    %v1955 = vcombine.low %v1904, %v1936
    %v1956 = vcombine.high %v1904, %v1936
    %v1957 = vcombine.low %v1913, %v1945
    %v1958 = vcombine.high %v1913, %v1945
    %v1959 = vcombine.low %v1920, %v1952
    %v1960 = vcombine.high %v1920, %v1952
    %v1961 = vcombine.low %v1372, %v1484
    %v1962 = vcombine.high %v1372, %v1484
    %v1964 = vunpack.c.l.s4 1983009808
    %v1965 = vunpack.c.0.s8 %v1964
    %v1966 = vlaneseq
    %v1967 = vshrl.u32 %v1966, 7
    %v1968 = vsub.s32 %v1965, %v1967
    %v1969 = vrot.slane %v1961, %v1968
    %v1971 = vunpack.c.l.s4 1983009808
    %v1972 = vunpack.c.0.s8 %v1971
    %v1973 = vlaneseq
    %v1974 = vshrl.u32 %v1973, 7
    %v1975 = vsub.s32 %v1972, %v1974
    %v1976 = vrot.slane %v1962, %v1975
    %v1977 = vcombine.low %v1472, %v1496
    %v1978 = vcombine.high %v1472, %v1496
    %v1980 = vunpack.c.l.s4 1983009808
    %v1981 = vunpack.c.0.s8 %v1980
    %v1982 = vlaneseq
    %v1983 = vshrl.u32 %v1982, 7
    %v1984 = vsub.s32 %v1981, %v1983
    %v1985 = vrot.slane %v1977, %v1984
    %v1987 = vunpack.c.l.s4 1983009808
    %v1988 = vunpack.c.0.s8 %v1987
    %v1989 = vlaneseq
    %v1990 = vshrl.u32 %v1989, 7
    %v1991 = vsub.s32 %v1988, %v1990
    %v1992 = vrot.slane %v1978, %v1991
    %v1993 = vcombine.low %v1508, %v1532
    %v1994 = vcombine.high %v1508, %v1532
    %v1996 = vunpack.c.l.s4 1983009808
    %v1997 = vunpack.c.0.s8 %v1996
    %v1998 = vlaneseq
    %v1999 = vshrl.u32 %v1998, 7
    %v2000 = vsub.s32 %v1997, %v1999
    %v2001 = vrot.slane %v1993, %v2000
    %v2003 = vunpack.c.l.s4 1983009808
    %v2004 = vunpack.c.0.s8 %v2003
    %v2005 = vlaneseq
    %v2006 = vshrl.u32 %v2005, 7
    %v2007 = vsub.s32 %v2004, %v2006
    %v2008 = vrot.slane %v1994, %v2007
    %v2009 = vcombine.low %v1520, %v1544
    %v2010 = vcombine.high %v1520, %v1544
    %v2012 = vunpack.c.l.s4 1983009808
    %v2013 = vunpack.c.0.s8 %v2012
    %v2014 = vlaneseq
    %v2015 = vshrl.u32 %v2014, 7
    %v2016 = vsub.s32 %v2013, %v2015
    %v2017 = vrot.slane %v2009, %v2016
    %v2019 = vunpack.c.l.s4 1983009808
    %v2020 = vunpack.c.0.s8 %v2019
    %v2021 = vlaneseq
    %v2022 = vshrl.u32 %v2021, 7
    %v2023 = vsub.s32 %v2020, %v2022
    %v2024 = vrot.slane %v2010, %v2023
    %v2025 = vcombine.low %v1969, %v1985
    %v2026 = vcombine.high %v1969, %v1985
    %v2028 = vunpack.c.l.s4 1934713408
    %v2029 = vunpack.c.0.s8 %v2028
    %v2030 = vlaneseq
    %v2031 = vshrl.u32 %v2030, 7
    %v2032 = vsub.s32 %v2029, %v2031
    %v2033 = vrot.slane %v2025, %v2032
    %v2035 = vunpack.c.l.s4 1934713408
    %v2036 = vunpack.c.0.s8 %v2035
    %v2037 = vlaneseq
    %v2038 = vshrl.u32 %v2037, 7
    %v2039 = vsub.s32 %v2036, %v2038
    %v2040 = vrot.slane %v2026, %v2039
    %v2041 = vcombine.low %v1976, %v1992
    %v2042 = vcombine.high %v1976, %v1992
    %v2044 = vunpack.c.l.s4 1934713408
    %v2045 = vunpack.c.0.s8 %v2044
    %v2046 = vlaneseq
    %v2047 = vshrl.u32 %v2046, 7
    %v2048 = vsub.s32 %v2045, %v2047
    %v2049 = vrot.slane %v2041, %v2048
    %v2051 = vunpack.c.l.s4 1934713408
    %v2052 = vunpack.c.0.s8 %v2051
    %v2053 = vlaneseq
    %v2054 = vshrl.u32 %v2053, 7
    %v2055 = vsub.s32 %v2052, %v2054
    %v2056 = vrot.slane %v2042, %v2055
    %v2057 = vcombine.low %v2001, %v2017
    %v2058 = vcombine.high %v2001, %v2017
    %v2060 = vunpack.c.l.s4 1934713408
    %v2061 = vunpack.c.0.s8 %v2060
    %v2062 = vlaneseq
    %v2063 = vshrl.u32 %v2062, 7
    %v2064 = vsub.s32 %v2061, %v2063
    %v2065 = vrot.slane %v2057, %v2064
    %v2067 = vunpack.c.l.s4 1934713408
    %v2068 = vunpack.c.0.s8 %v2067
    %v2069 = vlaneseq
    %v2070 = vshrl.u32 %v2069, 7
    %v2071 = vsub.s32 %v2068, %v2070
    %v2072 = vrot.slane %v2058, %v2071
    %v2073 = vcombine.low %v2008, %v2024
    %v2074 = vcombine.high %v2008, %v2024
    %v2076 = vunpack.c.l.s4 1934713408
    %v2077 = vunpack.c.0.s8 %v2076
    %v2078 = vlaneseq
    %v2079 = vshrl.u32 %v2078, 7
    %v2080 = vsub.s32 %v2077, %v2079
    %v2081 = vrot.slane %v2073, %v2080
    %v2083 = vunpack.c.l.s4 1934713408
    %v2084 = vunpack.c.0.s8 %v2083
    %v2085 = vlaneseq
    %v2086 = vshrl.u32 %v2085, 7
    %v2087 = vsub.s32 %v2084, %v2086
    %v2088 = vrot.slane %v2074, %v2087
    %v2089 = vcombine.low %v2033, %v2065
    %v2090 = vcombine.high %v2033, %v2065
    %v2091 = vcombine.low %v2040, %v2072
    %v2092 = vcombine.high %v2040, %v2072
    %v2093 = vcombine.low %v2049, %v2081
    %v2094 = vcombine.high %v2049, %v2081
    %v2095 = vcombine.low %v2056, %v2088
    %v2096 = vcombine.high %v2056, %v2088
    %v2097 = vcombine.low %v1373, %v1398
    %v2098 = vcombine.high %v1373, %v1398
    %v2100 = vunpack.c.l.s4 1983009808
    %v2101 = vunpack.c.0.s8 %v2100
    %v2102 = vlaneseq
    %v2103 = vshrl.u32 %v2102, 7
    %v2104 = vsub.s32 %v2101, %v2103
    %v2105 = vrot.slane %v2097, %v2104
    %v2107 = vunpack.c.l.s4 1983009808
    %v2108 = vunpack.c.0.s8 %v2107
    %v2109 = vlaneseq
    %v2110 = vshrl.u32 %v2109, 7
    %v2111 = vsub.s32 %v2108, %v2110
    %v2112 = vrot.slane %v2098, %v2111
    %v2113 = vcombine.low %v1386, %v1410
    %v2114 = vcombine.high %v1386, %v1410
    %v2116 = vunpack.c.l.s4 1983009808
    %v2117 = vunpack.c.0.s8 %v2116
    %v2118 = vlaneseq
    %v2119 = vshrl.u32 %v2118, 7
    %v2120 = vsub.s32 %v2117, %v2119
    %v2121 = vrot.slane %v2113, %v2120
    %v2123 = vunpack.c.l.s4 1983009808
    %v2124 = vunpack.c.0.s8 %v2123
    %v2125 = vlaneseq
    %v2126 = vshrl.u32 %v2125, 7
    %v2127 = vsub.s32 %v2124, %v2126
    %v2128 = vrot.slane %v2114, %v2127
    %v2129 = vcombine.low %v1422, %v1446
    %v2130 = vcombine.high %v1422, %v1446
    %v2132 = vunpack.c.l.s4 1983009808
    %v2133 = vunpack.c.0.s8 %v2132
    %v2134 = vlaneseq
    %v2135 = vshrl.u32 %v2134, 7
    %v2136 = vsub.s32 %v2133, %v2135
    %v2137 = vrot.slane %v2129, %v2136
    %v2139 = vunpack.c.l.s4 1983009808
    %v2140 = vunpack.c.0.s8 %v2139
    %v2141 = vlaneseq
    %v2142 = vshrl.u32 %v2141, 7
    %v2143 = vsub.s32 %v2140, %v2142
    %v2144 = vrot.slane %v2130, %v2143
    %v2145 = vcombine.low %v1434, %v1458
    %v2146 = vcombine.high %v1434, %v1458
    %v2148 = vunpack.c.l.s4 1983009808
    %v2149 = vunpack.c.0.s8 %v2148
    %v2150 = vlaneseq
    %v2151 = vshrl.u32 %v2150, 7
    %v2152 = vsub.s32 %v2149, %v2151
    %v2153 = vrot.slane %v2145, %v2152
    %v2155 = vunpack.c.l.s4 1983009808
    %v2156 = vunpack.c.0.s8 %v2155
    %v2157 = vlaneseq
    %v2158 = vshrl.u32 %v2157, 7
    %v2159 = vsub.s32 %v2156, %v2158
    %v2160 = vrot.slane %v2146, %v2159
    %v2161 = vcombine.low %v2105, %v2121
    %v2162 = vcombine.high %v2105, %v2121
    %v2164 = vunpack.c.l.s4 1934713408
    %v2165 = vunpack.c.0.s8 %v2164
    %v2166 = vlaneseq
    %v2167 = vshrl.u32 %v2166, 7
    %v2168 = vsub.s32 %v2165, %v2167
    %v2169 = vrot.slane %v2161, %v2168
    %v2171 = vunpack.c.l.s4 1934713408
    %v2172 = vunpack.c.0.s8 %v2171
    %v2173 = vlaneseq
    %v2174 = vshrl.u32 %v2173, 7
    %v2175 = vsub.s32 %v2172, %v2174
    %v2176 = vrot.slane %v2162, %v2175
    %v2177 = vcombine.low %v2112, %v2128
    %v2178 = vcombine.high %v2112, %v2128
    %v2180 = vunpack.c.l.s4 1934713408
    %v2181 = vunpack.c.0.s8 %v2180
    %v2182 = vlaneseq
    %v2183 = vshrl.u32 %v2182, 7
    %v2184 = vsub.s32 %v2181, %v2183
    %v2185 = vrot.slane %v2177, %v2184
    %v2187 = vunpack.c.l.s4 1934713408
    %v2188 = vunpack.c.0.s8 %v2187
    %v2189 = vlaneseq
    %v2190 = vshrl.u32 %v2189, 7
    %v2191 = vsub.s32 %v2188, %v2190
    %v2192 = vrot.slane %v2178, %v2191
    %v2193 = vcombine.low %v2137, %v2153
    %v2194 = vcombine.high %v2137, %v2153
    %v2196 = vunpack.c.l.s4 1934713408
    %v2197 = vunpack.c.0.s8 %v2196
    %v2198 = vlaneseq
    %v2199 = vshrl.u32 %v2198, 7
    %v2200 = vsub.s32 %v2197, %v2199
    %v2201 = vrot.slane %v2193, %v2200
    %v2203 = vunpack.c.l.s4 1934713408
    %v2204 = vunpack.c.0.s8 %v2203
    %v2205 = vlaneseq
    %v2206 = vshrl.u32 %v2205, 7
    %v2207 = vsub.s32 %v2204, %v2206
    %v2208 = vrot.slane %v2194, %v2207
    %v2209 = vcombine.low %v2144, %v2160
    %v2210 = vcombine.high %v2144, %v2160
    %v2212 = vunpack.c.l.s4 1934713408
    %v2213 = vunpack.c.0.s8 %v2212
    %v2214 = vlaneseq
    %v2215 = vshrl.u32 %v2214, 7
    %v2216 = vsub.s32 %v2213, %v2215
    %v2217 = vrot.slane %v2209, %v2216
    %v2219 = vunpack.c.l.s4 1934713408
    %v2220 = vunpack.c.0.s8 %v2219
    %v2221 = vlaneseq
    %v2222 = vshrl.u32 %v2221, 7
    %v2223 = vsub.s32 %v2220, %v2222
    %v2224 = vrot.slane %v2210, %v2223
    %v2225 = vcombine.low %v2169, %v2201
    %v2226 = vcombine.high %v2169, %v2201
    %v2227 = vcombine.low %v2176, %v2208
    %v2228 = vcombine.high %v2176, %v2208
    %v2229 = vcombine.low %v2185, %v2217
    %v2230 = vcombine.high %v2185, %v2217
    %v2231 = vcombine.low %v2192, %v2224
    %v2232 = vcombine.high %v2192, %v2224
    %v2233 = vcombine.low %v1374, %v1486
    %v2234 = vcombine.high %v1374, %v1486
    %v2236 = vunpack.c.l.s4 1983009808
    %v2237 = vunpack.c.0.s8 %v2236
    %v2238 = vlaneseq
    %v2239 = vshrl.u32 %v2238, 7
    %v2240 = vsub.s32 %v2237, %v2239
    %v2241 = vrot.slane %v2233, %v2240
    %v2243 = vunpack.c.l.s4 1983009808
    %v2244 = vunpack.c.0.s8 %v2243
    %v2245 = vlaneseq
    %v2246 = vshrl.u32 %v2245, 7
    %v2247 = vsub.s32 %v2244, %v2246
    %v2248 = vrot.slane %v2234, %v2247
    %v2249 = vcombine.low %v1474, %v1498
    %v2250 = vcombine.high %v1474, %v1498
    %v2252 = vunpack.c.l.s4 1983009808
    %v2253 = vunpack.c.0.s8 %v2252
    %v2254 = vlaneseq
    %v2255 = vshrl.u32 %v2254, 7
    %v2256 = vsub.s32 %v2253, %v2255
    %v2257 = vrot.slane %v2249, %v2256
    %v2259 = vunpack.c.l.s4 1983009808
    %v2260 = vunpack.c.0.s8 %v2259
    %v2261 = vlaneseq
    %v2262 = vshrl.u32 %v2261, 7
    %v2263 = vsub.s32 %v2260, %v2262
    %v2264 = vrot.slane %v2250, %v2263
    %v2265 = vcombine.low %v1510, %v1534
    %v2266 = vcombine.high %v1510, %v1534
    %v2268 = vunpack.c.l.s4 1983009808
    %v2269 = vunpack.c.0.s8 %v2268
    %v2270 = vlaneseq
    %v2271 = vshrl.u32 %v2270, 7
    %v2272 = vsub.s32 %v2269, %v2271
    %v2273 = vrot.slane %v2265, %v2272
    %v2275 = vunpack.c.l.s4 1983009808
    %v2276 = vunpack.c.0.s8 %v2275
    %v2277 = vlaneseq
    %v2278 = vshrl.u32 %v2277, 7
    %v2279 = vsub.s32 %v2276, %v2278
    %v2280 = vrot.slane %v2266, %v2279
    %v2281 = vcombine.low %v1522, %v1546
    %v2282 = vcombine.high %v1522, %v1546
    %v2284 = vunpack.c.l.s4 1983009808
    %v2285 = vunpack.c.0.s8 %v2284
    %v2286 = vlaneseq
    %v2287 = vshrl.u32 %v2286, 7
    %v2288 = vsub.s32 %v2285, %v2287
    %v2289 = vrot.slane %v2281, %v2288
    %v2291 = vunpack.c.l.s4 1983009808
    %v2292 = vunpack.c.0.s8 %v2291
    %v2293 = vlaneseq
    %v2294 = vshrl.u32 %v2293, 7
    %v2295 = vsub.s32 %v2292, %v2294
    %v2296 = vrot.slane %v2282, %v2295
    %v2297 = vcombine.low %v2241, %v2257
    %v2298 = vcombine.high %v2241, %v2257
    %v2300 = vunpack.c.l.s4 1934713408
    %v2301 = vunpack.c.0.s8 %v2300
    %v2302 = vlaneseq
    %v2303 = vshrl.u32 %v2302, 7
    %v2304 = vsub.s32 %v2301, %v2303
    %v2305 = vrot.slane %v2297, %v2304
    %v2307 = vunpack.c.l.s4 1934713408
    %v2308 = vunpack.c.0.s8 %v2307
    %v2309 = vlaneseq
    %v2310 = vshrl.u32 %v2309, 7
    %v2311 = vsub.s32 %v2308, %v2310
    %v2312 = vrot.slane %v2298, %v2311
    %v2313 = vcombine.low %v2248, %v2264
    %v2314 = vcombine.high %v2248, %v2264
    %v2316 = vunpack.c.l.s4 1934713408
    %v2317 = vunpack.c.0.s8 %v2316
    %v2318 = vlaneseq
    %v2319 = vshrl.u32 %v2318, 7
    %v2320 = vsub.s32 %v2317, %v2319
    %v2321 = vrot.slane %v2313, %v2320
    %v2323 = vunpack.c.l.s4 1934713408
    %v2324 = vunpack.c.0.s8 %v2323
    %v2325 = vlaneseq
    %v2326 = vshrl.u32 %v2325, 7
    %v2327 = vsub.s32 %v2324, %v2326
    %v2328 = vrot.slane %v2314, %v2327
    %v2329 = vcombine.low %v2273, %v2289
    %v2330 = vcombine.high %v2273, %v2289
    %v2332 = vunpack.c.l.s4 1934713408
    %v2333 = vunpack.c.0.s8 %v2332
    %v2334 = vlaneseq
    %v2335 = vshrl.u32 %v2334, 7
    %v2336 = vsub.s32 %v2333, %v2335
    %v2337 = vrot.slane %v2329, %v2336
    %v2339 = vunpack.c.l.s4 1934713408
    %v2340 = vunpack.c.0.s8 %v2339
    %v2341 = vlaneseq
    %v2342 = vshrl.u32 %v2341, 7
    %v2343 = vsub.s32 %v2340, %v2342
    %v2344 = vrot.slane %v2330, %v2343
    %v2345 = vcombine.low %v2280, %v2296
    %v2346 = vcombine.high %v2280, %v2296
    %v2348 = vunpack.c.l.s4 1934713408
    %v2349 = vunpack.c.0.s8 %v2348
    %v2350 = vlaneseq
    %v2351 = vshrl.u32 %v2350, 7
    %v2352 = vsub.s32 %v2349, %v2351
    %v2353 = vrot.slane %v2345, %v2352
    %v2355 = vunpack.c.l.s4 1934713408
    %v2356 = vunpack.c.0.s8 %v2355
    %v2357 = vlaneseq
    %v2358 = vshrl.u32 %v2357, 7
    %v2359 = vsub.s32 %v2356, %v2358
    %v2360 = vrot.slane %v2346, %v2359
    %v2361 = vcombine.low %v2305, %v2337
    %v2362 = vcombine.high %v2305, %v2337
    %v2363 = vcombine.low %v2312, %v2344
    %v2364 = vcombine.high %v2312, %v2344
    %v2365 = vcombine.low %v2321, %v2353
    %v2366 = vcombine.high %v2321, %v2353
    %v2367 = vcombine.low %v2328, %v2360
    %v2368 = vcombine.high %v2328, %v2360
    %v2369 = vcombine.low %v1375, %v1400
    %v2370 = vcombine.high %v1375, %v1400
    %v2372 = vunpack.c.l.s4 1983009808
    %v2373 = vunpack.c.0.s8 %v2372
    %v2374 = vlaneseq
    %v2375 = vshrl.u32 %v2374, 7
    %v2376 = vsub.s32 %v2373, %v2375
    %v2377 = vrot.slane %v2369, %v2376
    %v2379 = vunpack.c.l.s4 1983009808
    %v2380 = vunpack.c.0.s8 %v2379
    %v2381 = vlaneseq
    %v2382 = vshrl.u32 %v2381, 7
    %v2383 = vsub.s32 %v2380, %v2382
    %v2384 = vrot.slane %v2370, %v2383
    %v2385 = vcombine.low %v1388, %v1412
    %v2386 = vcombine.high %v1388, %v1412
    %v2388 = vunpack.c.l.s4 1983009808
    %v2389 = vunpack.c.0.s8 %v2388
    %v2390 = vlaneseq
    %v2391 = vshrl.u32 %v2390, 7
    %v2392 = vsub.s32 %v2389, %v2391
    %v2393 = vrot.slane %v2385, %v2392
    %v2395 = vunpack.c.l.s4 1983009808
    %v2396 = vunpack.c.0.s8 %v2395
    %v2397 = vlaneseq
    %v2398 = vshrl.u32 %v2397, 7
    %v2399 = vsub.s32 %v2396, %v2398
    %v2400 = vrot.slane %v2386, %v2399
    %v2401 = vcombine.low %v1424, %v1448
    %v2402 = vcombine.high %v1424, %v1448
    %v2404 = vunpack.c.l.s4 1983009808
    %v2405 = vunpack.c.0.s8 %v2404
    %v2406 = vlaneseq
    %v2407 = vshrl.u32 %v2406, 7
    %v2408 = vsub.s32 %v2405, %v2407
    %v2409 = vrot.slane %v2401, %v2408
    %v2411 = vunpack.c.l.s4 1983009808
    %v2412 = vunpack.c.0.s8 %v2411
    %v2413 = vlaneseq
    %v2414 = vshrl.u32 %v2413, 7
    %v2415 = vsub.s32 %v2412, %v2414
    %v2416 = vrot.slane %v2402, %v2415
    %v2417 = vcombine.low %v1436, %v1460
    %v2418 = vcombine.high %v1436, %v1460
    %v2420 = vunpack.c.l.s4 1983009808
    %v2421 = vunpack.c.0.s8 %v2420
    %v2422 = vlaneseq
    %v2423 = vshrl.u32 %v2422, 7
    %v2424 = vsub.s32 %v2421, %v2423
    %v2425 = vrot.slane %v2417, %v2424
    %v2427 = vunpack.c.l.s4 1983009808
    %v2428 = vunpack.c.0.s8 %v2427
    %v2429 = vlaneseq
    %v2430 = vshrl.u32 %v2429, 7
    %v2431 = vsub.s32 %v2428, %v2430
    %v2432 = vrot.slane %v2418, %v2431
    %v2433 = vcombine.low %v2377, %v2393
    %v2434 = vcombine.high %v2377, %v2393
    %v2436 = vunpack.c.l.s4 1934713408
    %v2437 = vunpack.c.0.s8 %v2436
    %v2438 = vlaneseq
    %v2439 = vshrl.u32 %v2438, 7
    %v2440 = vsub.s32 %v2437, %v2439
    %v2441 = vrot.slane %v2433, %v2440
    %v2443 = vunpack.c.l.s4 1934713408
    %v2444 = vunpack.c.0.s8 %v2443
    %v2445 = vlaneseq
    %v2446 = vshrl.u32 %v2445, 7
    %v2447 = vsub.s32 %v2444, %v2446
    %v2448 = vrot.slane %v2434, %v2447
    %v2449 = vcombine.low %v2384, %v2400
    %v2450 = vcombine.high %v2384, %v2400
    %v2452 = vunpack.c.l.s4 1934713408
    %v2453 = vunpack.c.0.s8 %v2452
    %v2454 = vlaneseq
    %v2455 = vshrl.u32 %v2454, 7
    %v2456 = vsub.s32 %v2453, %v2455
    %v2457 = vrot.slane %v2449, %v2456
    %v2459 = vunpack.c.l.s4 1934713408
    %v2460 = vunpack.c.0.s8 %v2459
    %v2461 = vlaneseq
    %v2462 = vshrl.u32 %v2461, 7
    %v2463 = vsub.s32 %v2460, %v2462
    %v2464 = vrot.slane %v2450, %v2463
    %v2465 = vcombine.low %v2409, %v2425
    %v2466 = vcombine.high %v2409, %v2425
    %v2468 = vunpack.c.l.s4 1934713408
    %v2469 = vunpack.c.0.s8 %v2468
    %v2470 = vlaneseq
    %v2471 = vshrl.u32 %v2470, 7
    %v2472 = vsub.s32 %v2469, %v2471
    %v2473 = vrot.slane %v2465, %v2472
    %v2475 = vunpack.c.l.s4 1934713408
    %v2476 = vunpack.c.0.s8 %v2475
    %v2477 = vlaneseq
    %v2478 = vshrl.u32 %v2477, 7
    %v2479 = vsub.s32 %v2476, %v2478
    %v2480 = vrot.slane %v2466, %v2479
    %v2481 = vcombine.low %v2416, %v2432
    %v2482 = vcombine.high %v2416, %v2432
    %v2484 = vunpack.c.l.s4 1934713408
    %v2485 = vunpack.c.0.s8 %v2484
    %v2486 = vlaneseq
    %v2487 = vshrl.u32 %v2486, 7
    %v2488 = vsub.s32 %v2485, %v2487
    %v2489 = vrot.slane %v2481, %v2488
    %v2491 = vunpack.c.l.s4 1934713408
    %v2492 = vunpack.c.0.s8 %v2491
    %v2493 = vlaneseq
    %v2494 = vshrl.u32 %v2493, 7
    %v2495 = vsub.s32 %v2492, %v2494
    %v2496 = vrot.slane %v2482, %v2495
    %v2497 = vcombine.low %v2441, %v2473
    %v2498 = vcombine.high %v2441, %v2473
    %v2499 = vcombine.low %v2448, %v2480
    %v2500 = vcombine.high %v2448, %v2480
    %v2501 = vcombine.low %v2457, %v2489
    %v2502 = vcombine.high %v2457, %v2489
    %v2503 = vcombine.low %v2464, %v2496
    %v2504 = vcombine.high %v2464, %v2496
    %v2505 = vcombine.low %v1376, %v1488
    %v2506 = vcombine.high %v1376, %v1488
    %v2508 = vunpack.c.l.s4 1983009808
    %v2509 = vunpack.c.0.s8 %v2508
    %v2510 = vlaneseq
    %v2511 = vshrl.u32 %v2510, 7
    %v2512 = vsub.s32 %v2509, %v2511
    %v2513 = vrot.slane %v2505, %v2512
    %v2515 = vunpack.c.l.s4 1983009808
    %v2516 = vunpack.c.0.s8 %v2515
    %v2517 = vlaneseq
    %v2518 = vshrl.u32 %v2517, 7
    %v2519 = vsub.s32 %v2516, %v2518
    %v2520 = vrot.slane %v2506, %v2519
    %v2521 = vcombine.low %v1476, %v1500
    %v2522 = vcombine.high %v1476, %v1500
    %v2524 = vunpack.c.l.s4 1983009808
    %v2525 = vunpack.c.0.s8 %v2524
    %v2526 = vlaneseq
    %v2527 = vshrl.u32 %v2526, 7
    %v2528 = vsub.s32 %v2525, %v2527
    %v2529 = vrot.slane %v2521, %v2528
    %v2531 = vunpack.c.l.s4 1983009808
    %v2532 = vunpack.c.0.s8 %v2531
    %v2533 = vlaneseq
    %v2534 = vshrl.u32 %v2533, 7
    %v2535 = vsub.s32 %v2532, %v2534
    %v2536 = vrot.slane %v2522, %v2535
    %v2537 = vcombine.low %v1512, %v1536
    %v2538 = vcombine.high %v1512, %v1536
    %v2540 = vunpack.c.l.s4 1983009808
    %v2541 = vunpack.c.0.s8 %v2540
    %v2542 = vlaneseq
    %v2543 = vshrl.u32 %v2542, 7
    %v2544 = vsub.s32 %v2541, %v2543
    %v2545 = vrot.slane %v2537, %v2544
    %v2547 = vunpack.c.l.s4 1983009808
    %v2548 = vunpack.c.0.s8 %v2547
    %v2549 = vlaneseq
    %v2550 = vshrl.u32 %v2549, 7
    %v2551 = vsub.s32 %v2548, %v2550
    %v2552 = vrot.slane %v2538, %v2551
    %v2553 = vcombine.low %v1524, %v1548
    %v2554 = vcombine.high %v1524, %v1548
    %v2556 = vunpack.c.l.s4 1983009808
    %v2557 = vunpack.c.0.s8 %v2556
    %v2558 = vlaneseq
    %v2559 = vshrl.u32 %v2558, 7
    %v2560 = vsub.s32 %v2557, %v2559
    %v2561 = vrot.slane %v2553, %v2560
    %v2563 = vunpack.c.l.s4 1983009808
    %v2564 = vunpack.c.0.s8 %v2563
    %v2565 = vlaneseq
    %v2566 = vshrl.u32 %v2565, 7
    %v2567 = vsub.s32 %v2564, %v2566
    %v2568 = vrot.slane %v2554, %v2567
    %v2569 = vcombine.low %v2513, %v2529
    %v2570 = vcombine.high %v2513, %v2529
    %v2572 = vunpack.c.l.s4 1934713408
    %v2573 = vunpack.c.0.s8 %v2572
    %v2574 = vlaneseq
    %v2575 = vshrl.u32 %v2574, 7
    %v2576 = vsub.s32 %v2573, %v2575
    %v2577 = vrot.slane %v2569, %v2576
    %v2579 = vunpack.c.l.s4 1934713408
    %v2580 = vunpack.c.0.s8 %v2579
    %v2581 = vlaneseq
    %v2582 = vshrl.u32 %v2581, 7
    %v2583 = vsub.s32 %v2580, %v2582
    %v2584 = vrot.slane %v2570, %v2583
    %v2585 = vcombine.low %v2520, %v2536
    %v2586 = vcombine.high %v2520, %v2536
    %v2588 = vunpack.c.l.s4 1934713408
    %v2589 = vunpack.c.0.s8 %v2588
    %v2590 = vlaneseq
    %v2591 = vshrl.u32 %v2590, 7
    %v2592 = vsub.s32 %v2589, %v2591
    %v2593 = vrot.slane %v2585, %v2592
    %v2595 = vunpack.c.l.s4 1934713408
    %v2596 = vunpack.c.0.s8 %v2595
    %v2597 = vlaneseq
    %v2598 = vshrl.u32 %v2597, 7
    %v2599 = vsub.s32 %v2596, %v2598
    %v2600 = vrot.slane %v2586, %v2599
    %v2601 = vcombine.low %v2545, %v2561
    %v2602 = vcombine.high %v2545, %v2561
    %v2604 = vunpack.c.l.s4 1934713408
    %v2605 = vunpack.c.0.s8 %v2604
    %v2606 = vlaneseq
    %v2607 = vshrl.u32 %v2606, 7
    %v2608 = vsub.s32 %v2605, %v2607
    %v2609 = vrot.slane %v2601, %v2608
    %v2611 = vunpack.c.l.s4 1934713408
    %v2612 = vunpack.c.0.s8 %v2611
    %v2613 = vlaneseq
    %v2614 = vshrl.u32 %v2613, 7
    %v2615 = vsub.s32 %v2612, %v2614
    %v2616 = vrot.slane %v2602, %v2615
    %v2617 = vcombine.low %v2552, %v2568
    %v2618 = vcombine.high %v2552, %v2568
    %v2620 = vunpack.c.l.s4 1934713408
    %v2621 = vunpack.c.0.s8 %v2620
    %v2622 = vlaneseq
    %v2623 = vshrl.u32 %v2622, 7
    %v2624 = vsub.s32 %v2621, %v2623
    %v2625 = vrot.slane %v2617, %v2624
    %v2627 = vunpack.c.l.s4 1934713408
    %v2628 = vunpack.c.0.s8 %v2627
    %v2629 = vlaneseq
    %v2630 = vshrl.u32 %v2629, 7
    %v2631 = vsub.s32 %v2628, %v2630
    %v2632 = vrot.slane %v2618, %v2631
    %v2633 = vcombine.low %v2577, %v2609
    %v2634 = vcombine.high %v2577, %v2609
    %v2635 = vcombine.low %v2584, %v2616
    %v2636 = vcombine.high %v2584, %v2616
    %v2637 = vcombine.low %v2593, %v2625
    %v2638 = vcombine.high %v2593, %v2625
    %v2639 = vcombine.low %v2600, %v2632
    %v2640 = vcombine.high %v2600, %v2632
    %vm2641 = vcmask 130048
    %v2642 = vsel %vm2641, %v1681, -inf
    %2643 = vmax.xlane.f32.xlu0 %v2642
    %v2644 = vpop.xlane.xlu0 %2643
    %v2645 = vsel %vm2641, %v1817, -inf
    %2646 = vmax.xlane.f32.xlu0 %v2645
    %v2647 = vpop.xlane.xlu0 %2646
    %v2648 = vsel %vm2641, %v1682, -inf
    %2649 = vmax.xlane.f32.xlu0 %v2648
    %v2650 = vpop.xlane.xlu0 %2649
    %v2651 = vsel %vm2641, %v1818, -inf
    %2652 = vmax.xlane.f32.xlu0 %v2651
    %v2653 = vpop.xlane.xlu0 %2652
    %v2654 = vsel %vm2641, %v1683, -inf
    %2655 = vmax.xlane.f32.xlu0 %v2654
    %v2656 = vpop.xlane.xlu0 %2655
    %v2657 = vsel %vm2641, %v1819, -inf
    %2658 = vmax.xlane.f32.xlu0 %v2657
    %v2659 = vpop.xlane.xlu0 %2658
    %v2660 = vsel %vm2641, %v1684, -inf
    %2661 = vmax.xlane.f32.xlu0 %v2660
    %v2662 = vpop.xlane.xlu0 %2661
    %v2663 = vsel %vm2641, %v1820, -inf
    %2664 = vmax.xlane.f32.xlu0 %v2663
    %v2665 = vpop.xlane.xlu0 %2664
    %v2666 = vsel %vm2641, %v1685, -inf
    %2667 = vmax.xlane.f32.xlu0 %v2666
    %v2668 = vpop.xlane.xlu0 %2667
    %v2669 = vsel %vm2641, %v1821, -inf
    %2670 = vmax.xlane.f32.xlu0 %v2669
    %v2671 = vpop.xlane.xlu0 %2670
    %v2672 = vsel %vm2641, %v1686, -inf
    %2673 = vmax.xlane.f32.xlu0 %v2672
    %v2674 = vpop.xlane.xlu0 %2673
    %v2675 = vsel %vm2641, %v1822, -inf
    %2676 = vmax.xlane.f32.xlu0 %v2675
    %v2677 = vpop.xlane.xlu0 %2676
    %v2678 = vsel %vm2641, %v1687, -inf
    %2679 = vmax.xlane.f32.xlu0 %v2678
    %v2680 = vpop.xlane.xlu0 %2679
    %v2681 = vsel %vm2641, %v1823, -inf
    %2682 = vmax.xlane.f32.xlu0 %v2681
    %v2683 = vpop.xlane.xlu0 %2682
    %v2684 = vsel %vm2641, %v1688, -inf
    %2685 = vmax.xlane.f32.xlu0 %v2684
    %v2686 = vpop.xlane.xlu0 %2685
    %v2687 = vsel %vm2641, %v1824, -inf
    %2688 = vmax.xlane.f32.xlu0 %v2687
    %v2689 = vpop.xlane.xlu0 %2688
    %v2690 = vsel %vm2641, %v1953, -inf
    %2691 = vmax.xlane.f32.xlu0 %v2690
    %v2692 = vpop.xlane.xlu0 %2691
    %v2693 = vsel %vm2641, %v2089, -inf
    %2694 = vmax.xlane.f32.xlu0 %v2693
    %v2695 = vpop.xlane.xlu0 %2694
    %v2696 = vsel %vm2641, %v1954, -inf
    %2697 = vmax.xlane.f32.xlu0 %v2696
    %v2698 = vpop.xlane.xlu0 %2697
    %v2699 = vsel %vm2641, %v2090, -inf
    %2700 = vmax.xlane.f32.xlu0 %v2699
    %v2701 = vpop.xlane.xlu0 %2700
    %v2702 = vsel %vm2641, %v1955, -inf
    %2703 = vmax.xlane.f32.xlu0 %v2702
    %v2704 = vpop.xlane.xlu0 %2703
    %v2705 = vsel %vm2641, %v2091, -inf
    %2706 = vmax.xlane.f32.xlu0 %v2705
    %v2707 = vpop.xlane.xlu0 %2706
    %v2708 = vsel %vm2641, %v1956, -inf
    %2709 = vmax.xlane.f32.xlu0 %v2708
    %v2710 = vpop.xlane.xlu0 %2709
    %v2711 = vsel %vm2641, %v2092, -inf
    %2712 = vmax.xlane.f32.xlu0 %v2711
    %v2713 = vpop.xlane.xlu0 %2712
    %v2714 = vsel %vm2641, %v1957, -inf
    %2715 = vmax.xlane.f32.xlu0 %v2714
    %v2716 = vpop.xlane.xlu0 %2715
    %v2717 = vsel %vm2641, %v2093, -inf
    %2718 = vmax.xlane.f32.xlu0 %v2717
    %v2719 = vpop.xlane.xlu0 %2718
    %v2720 = vsel %vm2641, %v1958, -inf
    %2721 = vmax.xlane.f32.xlu0 %v2720
    %v2722 = vpop.xlane.xlu0 %2721
    %v2723 = vsel %vm2641, %v2094, -inf
    %2724 = vmax.xlane.f32.xlu0 %v2723
    %v2725 = vpop.xlane.xlu0 %2724
    %v2726 = vsel %vm2641, %v1959, -inf
    %2727 = vmax.xlane.f32.xlu0 %v2726
    %v2728 = vpop.xlane.xlu0 %2727
    %v2729 = vsel %vm2641, %v2095, -inf
    %2730 = vmax.xlane.f32.xlu0 %v2729
    %v2731 = vpop.xlane.xlu0 %2730
    %v2732 = vsel %vm2641, %v1960, -inf
    %2733 = vmax.xlane.f32.xlu0 %v2732
    %v2734 = vpop.xlane.xlu0 %2733
    %v2735 = vsel %vm2641, %v2096, -inf
    %2736 = vmax.xlane.f32.xlu0 %v2735
    %v2737 = vpop.xlane.xlu0 %2736
    %v2738 = vsel %vm2641, %v2225, -inf
    %2739 = vmax.xlane.f32.xlu0 %v2738
    %v2740 = vpop.xlane.xlu0 %2739
    %v2741 = vsel %vm2641, %v2361, -inf
    %2742 = vmax.xlane.f32.xlu0 %v2741
    %v2743 = vpop.xlane.xlu0 %2742
    %v2744 = vsel %vm2641, %v2226, -inf
    %2745 = vmax.xlane.f32.xlu0 %v2744
    %v2746 = vpop.xlane.xlu0 %2745
    %v2747 = vsel %vm2641, %v2362, -inf
    %2748 = vmax.xlane.f32.xlu0 %v2747
    %v2749 = vpop.xlane.xlu0 %2748
    %v2750 = vsel %vm2641, %v2227, -inf
    %2751 = vmax.xlane.f32.xlu0 %v2750
    %v2752 = vpop.xlane.xlu0 %2751
    %v2753 = vsel %vm2641, %v2363, -inf
    %2754 = vmax.xlane.f32.xlu0 %v2753
    %v2755 = vpop.xlane.xlu0 %2754
    %v2756 = vsel %vm2641, %v2228, -inf
    %2757 = vmax.xlane.f32.xlu0 %v2756
    %v2758 = vpop.xlane.xlu0 %2757
    %v2759 = vsel %vm2641, %v2364, -inf
    %2760 = vmax.xlane.f32.xlu0 %v2759
    %v2761 = vpop.xlane.xlu0 %2760
    %v2762 = vsel %vm2641, %v2229, -inf
    %2763 = vmax.xlane.f32.xlu0 %v2762
    %v2764 = vpop.xlane.xlu0 %2763
    %v2765 = vsel %vm2641, %v2365, -inf
    %2766 = vmax.xlane.f32.xlu0 %v2765
    %v2767 = vpop.xlane.xlu0 %2766
    %v2768 = vsel %vm2641, %v2230, -inf
    %2769 = vmax.xlane.f32.xlu0 %v2768
    %v2770 = vpop.xlane.xlu0 %2769
    %v2771 = vsel %vm2641, %v2366, -inf
    %2772 = vmax.xlane.f32.xlu0 %v2771
    %v2773 = vpop.xlane.xlu0 %2772
    %v2774 = vsel %vm2641, %v2231, -inf
    %2775 = vmax.xlane.f32.xlu0 %v2774
    %v2776 = vpop.xlane.xlu0 %2775
    %v2777 = vsel %vm2641, %v2367, -inf
    %2778 = vmax.xlane.f32.xlu0 %v2777
    %v2779 = vpop.xlane.xlu0 %2778
    %v2780 = vsel %vm2641, %v2232, -inf
    %2781 = vmax.xlane.f32.xlu0 %v2780
    %v2782 = vpop.xlane.xlu0 %2781
    %v2783 = vsel %vm2641, %v2368, -inf
    %2784 = vmax.xlane.f32.xlu0 %v2783
    %v2785 = vpop.xlane.xlu0 %2784
    %v2786 = vsel %vm2641, %v2497, -inf
    %2787 = vmax.xlane.f32.xlu0 %v2786
    %v2788 = vpop.xlane.xlu0 %2787
    %v2789 = vsel %vm2641, %v2633, -inf
    %2790 = vmax.xlane.f32.xlu0 %v2789
    %v2791 = vpop.xlane.xlu0 %2790
    %v2792 = vsel %vm2641, %v2498, -inf
    %2793 = vmax.xlane.f32.xlu0 %v2792
    %v2794 = vpop.xlane.xlu0 %2793
    %v2795 = vsel %vm2641, %v2634, -inf
    %2796 = vmax.xlane.f32.xlu0 %v2795
    %v2797 = vpop.xlane.xlu0 %2796
    %v2798 = vsel %vm2641, %v2499, -inf
    %2799 = vmax.xlane.f32.xlu0 %v2798
    %v2800 = vpop.xlane.xlu0 %2799
    %v2801 = vsel %vm2641, %v2635, -inf
    %2802 = vmax.xlane.f32.xlu0 %v2801
    %v2803 = vpop.xlane.xlu0 %2802
    %v2804 = vsel %vm2641, %v2500, -inf
    %2805 = vmax.xlane.f32.xlu0 %v2804
    %v2806 = vpop.xlane.xlu0 %2805
    %v2807 = vsel %vm2641, %v2636, -inf
    %2808 = vmax.xlane.f32.xlu0 %v2807
    %v2809 = vpop.xlane.xlu0 %2808
    %v2810 = vsel %vm2641, %v2501, -inf
    %2811 = vmax.xlane.f32.xlu0 %v2810
    %v2812 = vpop.xlane.xlu0 %2811
    %v2813 = vsel %vm2641, %v2637, -inf
    %2814 = vmax.xlane.f32.xlu0 %v2813
    %v2815 = vpop.xlane.xlu0 %2814
    %v2816 = vsel %vm2641, %v2502, -inf
    %2817 = vmax.xlane.f32.xlu0 %v2816
    %v2818 = vpop.xlane.xlu0 %2817
    %v2819 = vsel %vm2641, %v2638, -inf
    %2820 = vmax.xlane.f32.xlu0 %v2819
    %v2821 = vpop.xlane.xlu0 %2820
    %v2822 = vsel %vm2641, %v2503, -inf
    %2823 = vmax.xlane.f32.xlu0 %v2822
    %v2824 = vpop.xlane.xlu0 %2823
    %v2825 = vsel %vm2641, %v2639, -inf
    %2826 = vmax.xlane.f32.xlu0 %v2825
    %v2827 = vpop.xlane.xlu0 %2826
    %v2828 = vsel %vm2641, %v2504, -inf
    %2829 = vmax.xlane.f32.xlu0 %v2828
    %v2830 = vpop.xlane.xlu0 %2829
    %v2831 = vsel %vm2641, %v2640, -inf
    %2832 = vmax.xlane.f32.xlu0 %v2831
    %v2833 = vpop.xlane.xlu0 %2832
    %v2834 = vsel %vm2641, %v1681, 0.0
    %2835 = vadd.xlane.f32.xlu0 %v2834
    %v2836 = vpop.xlane.xlu0 %2835
    %v2837 = vsel %vm2641, %v1817, 0.0
    %2838 = vadd.xlane.f32.xlu0 %v2837
    %v2839 = vpop.xlane.xlu0 %2838
    %v2840 = vsel %vm2641, %v1682, 0.0
    %2841 = vadd.xlane.f32.xlu0 %v2840
    %v2842 = vpop.xlane.xlu0 %2841
    %v2843 = vsel %vm2641, %v1818, 0.0
    %2844 = vadd.xlane.f32.xlu0 %v2843
    %v2845 = vpop.xlane.xlu0 %2844
    %v2846 = vsel %vm2641, %v1683, 0.0
    %2847 = vadd.xlane.f32.xlu0 %v2846
    %v2848 = vpop.xlane.xlu0 %2847
    %v2849 = vsel %vm2641, %v1819, 0.0
    %2850 = vadd.xlane.f32.xlu0 %v2849
    %v2851 = vpop.xlane.xlu0 %2850
    %v2852 = vsel %vm2641, %v1684, 0.0
    %2853 = vadd.xlane.f32.xlu0 %v2852
    %v2854 = vpop.xlane.xlu0 %2853
    %v2855 = vsel %vm2641, %v1820, 0.0
    %2856 = vadd.xlane.f32.xlu0 %v2855
    %v2857 = vpop.xlane.xlu0 %2856
    %v2858 = vsel %vm2641, %v1685, 0.0
    %2859 = vadd.xlane.f32.xlu0 %v2858
    %v2860 = vpop.xlane.xlu0 %2859
    %v2861 = vsel %vm2641, %v1821, 0.0
    %2862 = vadd.xlane.f32.xlu0 %v2861
    %v2863 = vpop.xlane.xlu0 %2862
    %v2864 = vsel %vm2641, %v1686, 0.0
    %2865 = vadd.xlane.f32.xlu0 %v2864
    %v2866 = vpop.xlane.xlu0 %2865
    %v2867 = vsel %vm2641, %v1822, 0.0
    %2868 = vadd.xlane.f32.xlu0 %v2867
    %v2869 = vpop.xlane.xlu0 %2868
    %v2870 = vsel %vm2641, %v1687, 0.0
    %2871 = vadd.xlane.f32.xlu0 %v2870
    %v2872 = vpop.xlane.xlu0 %2871
    %v2873 = vsel %vm2641, %v1823, 0.0
    %2874 = vadd.xlane.f32.xlu0 %v2873
    %v2875 = vpop.xlane.xlu0 %2874
    %v2876 = vsel %vm2641, %v1688, 0.0
    %2877 = vadd.xlane.f32.xlu0 %v2876
    %v2878 = vpop.xlane.xlu0 %2877
    %v2879 = vsel %vm2641, %v1824, 0.0
    %2880 = vadd.xlane.f32.xlu0 %v2879
    %v2881 = vpop.xlane.xlu0 %2880
    %v2882 = vsel %vm2641, %v1953, 0.0
    %2883 = vadd.xlane.f32.xlu0 %v2882
    %v2884 = vpop.xlane.xlu0 %2883
    %v2885 = vsel %vm2641, %v2089, 0.0
    %2886 = vadd.xlane.f32.xlu0 %v2885
    %v2887 = vpop.xlane.xlu0 %2886
    %v2888 = vsel %vm2641, %v1954, 0.0
    %2889 = vadd.xlane.f32.xlu0 %v2888
    %v2890 = vpop.xlane.xlu0 %2889
    %v2891 = vsel %vm2641, %v2090, 0.0
    %2892 = vadd.xlane.f32.xlu0 %v2891
    %v2893 = vpop.xlane.xlu0 %2892
    %v2894 = vsel %vm2641, %v1955, 0.0
    %2895 = vadd.xlane.f32.xlu0 %v2894
    %v2896 = vpop.xlane.xlu0 %2895
    %v2897 = vsel %vm2641, %v2091, 0.0
    %2898 = vadd.xlane.f32.xlu0 %v2897
    %v2899 = vpop.xlane.xlu0 %2898
    %v2900 = vsel %vm2641, %v1956, 0.0
    %2901 = vadd.xlane.f32.xlu0 %v2900
    %v2902 = vpop.xlane.xlu0 %2901
    %v2903 = vsel %vm2641, %v2092, 0.0
    %2904 = vadd.xlane.f32.xlu0 %v2903
    %v2905 = vpop.xlane.xlu0 %2904
    %v2906 = vsel %vm2641, %v1957, 0.0
    %2907 = vadd.xlane.f32.xlu0 %v2906
    %v2908 = vpop.xlane.xlu0 %2907
    %v2909 = vsel %vm2641, %v2093, 0.0
    %2910 = vadd.xlane.f32.xlu0 %v2909
    %v2911 = vpop.xlane.xlu0 %2910
    %v2912 = vsel %vm2641, %v1958, 0.0
    %2913 = vadd.xlane.f32.xlu0 %v2912
    %v2914 = vpop.xlane.xlu0 %2913
    %v2915 = vsel %vm2641, %v2094, 0.0
    %2916 = vadd.xlane.f32.xlu0 %v2915
    %v2917 = vpop.xlane.xlu0 %2916
    %v2918 = vsel %vm2641, %v1959, 0.0
    %2919 = vadd.xlane.f32.xlu0 %v2918
    %v2920 = vpop.xlane.xlu0 %2919
    %v2921 = vsel %vm2641, %v2095, 0.0
    %2922 = vadd.xlane.f32.xlu0 %v2921
    %v2923 = vpop.xlane.xlu0 %2922
    %v2924 = vsel %vm2641, %v1960, 0.0
    %2925 = vadd.xlane.f32.xlu0 %v2924
    %v2926 = vpop.xlane.xlu0 %2925
    %v2927 = vsel %vm2641, %v2096, 0.0
    %2928 = vadd.xlane.f32.xlu0 %v2927
    %v2929 = vpop.xlane.xlu0 %2928
    %v2930 = vsel %vm2641, %v2225, 0.0
    %2931 = vadd.xlane.f32.xlu0 %v2930
    %v2932 = vpop.xlane.xlu0 %2931
    %v2933 = vsel %vm2641, %v2361, 0.0
    %2934 = vadd.xlane.f32.xlu0 %v2933
    %v2935 = vpop.xlane.xlu0 %2934
    %v2936 = vsel %vm2641, %v2226, 0.0
    %2937 = vadd.xlane.f32.xlu0 %v2936
    %v2938 = vpop.xlane.xlu0 %2937
    %v2939 = vsel %vm2641, %v2362, 0.0
    %2940 = vadd.xlane.f32.xlu0 %v2939
    %v2941 = vpop.xlane.xlu0 %2940
    %v2942 = vsel %vm2641, %v2227, 0.0
    %2943 = vadd.xlane.f32.xlu0 %v2942
    %v2944 = vpop.xlane.xlu0 %2943
    %v2945 = vsel %vm2641, %v2363, 0.0
    %2946 = vadd.xlane.f32.xlu0 %v2945
    %v2947 = vpop.xlane.xlu0 %2946
    %v2948 = vsel %vm2641, %v2228, 0.0
    %2949 = vadd.xlane.f32.xlu0 %v2948
    %v2950 = vpop.xlane.xlu0 %2949
    %v2951 = vsel %vm2641, %v2364, 0.0
    %2952 = vadd.xlane.f32.xlu0 %v2951
    %v2953 = vpop.xlane.xlu0 %2952
    %v2954 = vsel %vm2641, %v2229, 0.0
    %2955 = vadd.xlane.f32.xlu0 %v2954
    %v2956 = vpop.xlane.xlu0 %2955
    %v2957 = vsel %vm2641, %v2365, 0.0
    %2958 = vadd.xlane.f32.xlu0 %v2957
    %v2959 = vpop.xlane.xlu0 %2958
    %v2960 = vsel %vm2641, %v2230, 0.0
    %2961 = vadd.xlane.f32.xlu0 %v2960
    %v2962 = vpop.xlane.xlu0 %2961
    %v2963 = vsel %vm2641, %v2366, 0.0
    %2964 = vadd.xlane.f32.xlu0 %v2963
    %v2965 = vpop.xlane.xlu0 %2964
    %v2966 = vsel %vm2641, %v2231, 0.0
    %2967 = vadd.xlane.f32.xlu0 %v2966
    %v2968 = vpop.xlane.xlu0 %2967
    %v2969 = vsel %vm2641, %v2367, 0.0
    %2970 = vadd.xlane.f32.xlu0 %v2969
    %v2971 = vpop.xlane.xlu0 %2970
    %v2972 = vsel %vm2641, %v2232, 0.0
    %2973 = vadd.xlane.f32.xlu0 %v2972
    %v2974 = vpop.xlane.xlu0 %2973
    %v2975 = vsel %vm2641, %v2368, 0.0
    %2976 = vadd.xlane.f32.xlu0 %v2975
    %v2977 = vpop.xlane.xlu0 %2976
    %v2978 = vsel %vm2641, %v2497, 0.0
    %2979 = vadd.xlane.f32.xlu0 %v2978
    %v2980 = vpop.xlane.xlu0 %2979
    %v2981 = vsel %vm2641, %v2633, 0.0
    %2982 = vadd.xlane.f32.xlu0 %v2981
    %v2983 = vpop.xlane.xlu0 %2982
    %v2984 = vsel %vm2641, %v2498, 0.0
    %2985 = vadd.xlane.f32.xlu0 %v2984
    %v2986 = vpop.xlane.xlu0 %2985
    %v2987 = vsel %vm2641, %v2634, 0.0
    %2988 = vadd.xlane.f32.xlu0 %v2987
    %v2989 = vpop.xlane.xlu0 %2988
    %v2990 = vsel %vm2641, %v2499, 0.0
    %2991 = vadd.xlane.f32.xlu0 %v2990
    %v2992 = vpop.xlane.xlu0 %2991
    %v2993 = vsel %vm2641, %v2635, 0.0
    %2994 = vadd.xlane.f32.xlu0 %v2993
    %v2995 = vpop.xlane.xlu0 %2994
    %v2996 = vsel %vm2641, %v2500, 0.0
    %2997 = vadd.xlane.f32.xlu0 %v2996
    %v2998 = vpop.xlane.xlu0 %2997
    %v2999 = vsel %vm2641, %v2636, 0.0
    %3000 = vadd.xlane.f32.xlu0 %v2999
    %v3001 = vpop.xlane.xlu0 %3000
    %v3002 = vsel %vm2641, %v2501, 0.0
    %3003 = vadd.xlane.f32.xlu0 %v3002
    %v3004 = vpop.xlane.xlu0 %3003
    %v3005 = vsel %vm2641, %v2637, 0.0
    %3006 = vadd.xlane.f32.xlu0 %v3005
    %v3007 = vpop.xlane.xlu0 %3006
    %v3008 = vsel %vm2641, %v2502, 0.0
    %3009 = vadd.xlane.f32.xlu0 %v3008
    %v3010 = vpop.xlane.xlu0 %3009
    %v3011 = vsel %vm2641, %v2638, 0.0
    %3012 = vadd.xlane.f32.xlu0 %v3011
    %v3013 = vpop.xlane.xlu0 %3012
    %v3014 = vsel %vm2641, %v2503, 0.0
    %3015 = vadd.xlane.f32.xlu0 %v3014
    %v3016 = vpop.xlane.xlu0 %3015
    %v3017 = vsel %vm2641, %v2639, 0.0
    %3018 = vadd.xlane.f32.xlu0 %v3017
    %v3019 = vpop.xlane.xlu0 %3018
    %v3020 = vsel %vm2641, %v2504, 0.0
    %3021 = vadd.xlane.f32.xlu0 %v3020
    %v3022 = vpop.xlane.xlu0 %3021
    %v3023 = vsel %vm2641, %v2640, 0.0
    %3024 = vadd.xlane.f32.xlu0 %v3023
    %v3025 = vpop.xlane.xlu0 %3024
    %v3026 = vrcp.pop 16.0
    %v3027 = vmul.f32 %v2836, %v3026
    %v3028 = vmul.f32 %v2839, %v3026
    %v3029 = vmul.f32 %v2842, %v3026
    %v3030 = vmul.f32 %v2845, %v3026
    %v3031 = vmul.f32 %v2848, %v3026
    %v3032 = vmul.f32 %v2851, %v3026
    %v3033 = vmul.f32 %v2854, %v3026
    %v3034 = vmul.f32 %v2857, %v3026
    %v3035 = vmul.f32 %v2860, %v3026
    %v3036 = vmul.f32 %v2863, %v3026
    %v3037 = vmul.f32 %v2866, %v3026
    %v3038 = vmul.f32 %v2869, %v3026
    %v3039 = vmul.f32 %v2872, %v3026
    %v3040 = vmul.f32 %v2875, %v3026
    %v3041 = vmul.f32 %v2878, %v3026
    %v3042 = vmul.f32 %v2881, %v3026
    %v3043 = vmul.f32 %v2884, %v3026
    %v3044 = vmul.f32 %v2887, %v3026
    %v3045 = vmul.f32 %v2890, %v3026
    %v3046 = vmul.f32 %v2893, %v3026
    %v3047 = vmul.f32 %v2896, %v3026
    %v3048 = vmul.f32 %v2899, %v3026
    %v3049 = vmul.f32 %v2902, %v3026
    %v3050 = vmul.f32 %v2905, %v3026
    %v3051 = vmul.f32 %v2908, %v3026
    %v3052 = vmul.f32 %v2911, %v3026
    %v3053 = vmul.f32 %v2914, %v3026
    %v3054 = vmul.f32 %v2917, %v3026
    %v3055 = vmul.f32 %v2920, %v3026
    %v3056 = vmul.f32 %v2923, %v3026
    %v3057 = vmul.f32 %v2926, %v3026
    %v3058 = vmul.f32 %v2929, %v3026
    %v3059 = vmul.f32 %v2932, %v3026
    %v3060 = vmul.f32 %v2935, %v3026
    %v3061 = vmul.f32 %v2938, %v3026
    %v3062 = vmul.f32 %v2941, %v3026
    %v3063 = vmul.f32 %v2944, %v3026
    %v3064 = vmul.f32 %v2947, %v3026
    %v3065 = vmul.f32 %v2950, %v3026
    %v3066 = vmul.f32 %v2953, %v3026
    %v3067 = vmul.f32 %v2956, %v3026
    %v3068 = vmul.f32 %v2959, %v3026
    %v3069 = vmul.f32 %v2962, %v3026
    %v3070 = vmul.f32 %v2965, %v3026
    %v3071 = vmul.f32 %v2968, %v3026
    %v3072 = vmul.f32 %v2971, %v3026
    %v3073 = vmul.f32 %v2974, %v3026
    %v3074 = vmul.f32 %v2977, %v3026
    %v3075 = vmul.f32 %v2980, %v3026
    %v3076 = vmul.f32 %v2983, %v3026
    %v3077 = vmul.f32 %v2986, %v3026
    %v3078 = vmul.f32 %v2989, %v3026
    %v3079 = vmul.f32 %v2992, %v3026
    %v3080 = vmul.f32 %v2995, %v3026
    %v3081 = vmul.f32 %v2998, %v3026
    %v3082 = vmul.f32 %v3001, %v3026
    %v3083 = vmul.f32 %v3004, %v3026
    %v3084 = vmul.f32 %v3007, %v3026
    %v3085 = vmul.f32 %v3010, %v3026
    %v3086 = vmul.f32 %v3013, %v3026
    %v3087 = vmul.f32 %v3016, %v3026
    %v3088 = vmul.f32 %v3019, %v3026
    %v3089 = vmul.f32 %v3022, %v3026
    %v3090 = vmul.f32 %v3025, %v3026
    %v3155 = vlaneseq
    %v3156 = vand.u32 %v3155, 127
    %v3157 = vlaneseq
    %v3158 = vshrl.u32 %v3157, 7
    %v3159 = vsub.s32 %v3156, %v3158
    %v3160 = vrot.slane %v2644, %v3159
    %v3161 = vadd.s32 %v3156, 4294967288
    %v3162 = vlaneseq
    %v3163 = vshrl.u32 %v3162, 7
    %v3164 = vsub.s32 %v3161, %v3163
    %v3165 = vrot.slane %v2647, %v3164
    %vm3166 = vcmask 130112
    %v3167 = vsel %vm3166, %v3165, %v3160
    %v3168 = vlaneseq
    %v3169 = vshrl.u32 %v3168, 7
    %v3170 = vsub.s32 %v3156, %v3169
    %v3171 = vrot.slane %v2650, %v3170
    %v3172 = vlaneseq
    %v3173 = vshrl.u32 %v3172, 7
    %v3174 = vsub.s32 %v3161, %v3173
    %v3175 = vrot.slane %v2653, %v3174
    %v3176 = vsel %vm3166, %v3175, %v3171
    %v3177 = vlaneseq
    %v3178 = vshrl.u32 %v3177, 7
    %v3179 = vsub.s32 %v3156, %v3178
    %v3180 = vrot.slane %v2656, %v3179
    %v3181 = vlaneseq
    %v3182 = vshrl.u32 %v3181, 7
    %v3183 = vsub.s32 %v3161, %v3182
    %v3184 = vrot.slane %v2659, %v3183
    %v3185 = vsel %vm3166, %v3184, %v3180
    %v3186 = vlaneseq
    %v3187 = vshrl.u32 %v3186, 7
    %v3188 = vsub.s32 %v3156, %v3187
    %v3189 = vrot.slane %v2662, %v3188
    %v3190 = vlaneseq
    %v3191 = vshrl.u32 %v3190, 7
    %v3192 = vsub.s32 %v3161, %v3191
    %v3193 = vrot.slane %v2665, %v3192
    %v3194 = vsel %vm3166, %v3193, %v3189
    %v3195 = vlaneseq
    %v3196 = vshrl.u32 %v3195, 7
    %v3197 = vsub.s32 %v3156, %v3196
    %v3198 = vrot.slane %v2668, %v3197
    %v3199 = vlaneseq
    %v3200 = vshrl.u32 %v3199, 7
    %v3201 = vsub.s32 %v3161, %v3200
    %v3202 = vrot.slane %v2671, %v3201
    %v3203 = vsel %vm3166, %v3202, %v3198
    %v3204 = vlaneseq
    %v3205 = vshrl.u32 %v3204, 7
    %v3206 = vsub.s32 %v3156, %v3205
    %v3207 = vrot.slane %v2674, %v3206
    %v3208 = vlaneseq
    %v3209 = vshrl.u32 %v3208, 7
    %v3210 = vsub.s32 %v3161, %v3209
    %v3211 = vrot.slane %v2677, %v3210
    %v3212 = vsel %vm3166, %v3211, %v3207
    %v3213 = vlaneseq
    %v3214 = vshrl.u32 %v3213, 7
    %v3215 = vsub.s32 %v3156, %v3214
    %v3216 = vrot.slane %v2680, %v3215
    %v3217 = vlaneseq
    %v3218 = vshrl.u32 %v3217, 7
    %v3219 = vsub.s32 %v3161, %v3218
    %v3220 = vrot.slane %v2683, %v3219
    %v3221 = vsel %vm3166, %v3220, %v3216
    %v3222 = vlaneseq
    %v3223 = vshrl.u32 %v3222, 7
    %v3224 = vsub.s32 %v3156, %v3223
    %v3225 = vrot.slane %v2686, %v3224
    %v3226 = vlaneseq
    %v3227 = vshrl.u32 %v3226, 7
    %v3228 = vsub.s32 %v3161, %v3227
    %v3229 = vrot.slane %v2689, %v3228
    %v3230 = vsel %vm3166, %v3229, %v3225
    %v3231 = vlaneseq
    %v3232 = vshrl.u32 %v3231, 7
    %v3233 = vsub.s32 %v3156, %v3232
    %v3234 = vrot.slane %v2692, %v3233
    %v3235 = vlaneseq
    %v3236 = vshrl.u32 %v3235, 7
    %v3237 = vsub.s32 %v3161, %v3236
    %v3238 = vrot.slane %v2695, %v3237
    %v3239 = vsel %vm3166, %v3238, %v3234
    %v3240 = vlaneseq
    %v3241 = vshrl.u32 %v3240, 7
    %v3242 = vsub.s32 %v3156, %v3241
    %v3243 = vrot.slane %v2698, %v3242
    %v3244 = vlaneseq
    %v3245 = vshrl.u32 %v3244, 7
    %v3246 = vsub.s32 %v3161, %v3245
    %v3247 = vrot.slane %v2701, %v3246
    %v3248 = vsel %vm3166, %v3247, %v3243
    %v3249 = vlaneseq
    %v3250 = vshrl.u32 %v3249, 7
    %v3251 = vsub.s32 %v3156, %v3250
    %v3252 = vrot.slane %v2704, %v3251
    %v3253 = vlaneseq
    %v3254 = vshrl.u32 %v3253, 7
    %v3255 = vsub.s32 %v3161, %v3254
    %v3256 = vrot.slane %v2707, %v3255
    %v3257 = vsel %vm3166, %v3256, %v3252
    %v3258 = vlaneseq
    %v3259 = vshrl.u32 %v3258, 7
    %v3260 = vsub.s32 %v3156, %v3259
    %v3261 = vrot.slane %v2710, %v3260
    %v3262 = vlaneseq
    %v3263 = vshrl.u32 %v3262, 7
    %v3264 = vsub.s32 %v3161, %v3263
    %v3265 = vrot.slane %v2713, %v3264
    %v3266 = vsel %vm3166, %v3265, %v3261
    %v3267 = vlaneseq
    %v3268 = vshrl.u32 %v3267, 7
    %v3269 = vsub.s32 %v3156, %v3268
    %v3270 = vrot.slane %v2716, %v3269
    %v3271 = vlaneseq
    %v3272 = vshrl.u32 %v3271, 7
    %v3273 = vsub.s32 %v3161, %v3272
    %v3274 = vrot.slane %v2719, %v3273
    %v3275 = vsel %vm3166, %v3274, %v3270
    %v3276 = vlaneseq
    %v3277 = vshrl.u32 %v3276, 7
    %v3278 = vsub.s32 %v3156, %v3277
    %v3279 = vrot.slane %v2722, %v3278
    %v3280 = vlaneseq
    %v3281 = vshrl.u32 %v3280, 7
    %v3282 = vsub.s32 %v3161, %v3281
    %v3283 = vrot.slane %v2725, %v3282
    %v3284 = vsel %vm3166, %v3283, %v3279
    %v3285 = vlaneseq
    %v3286 = vshrl.u32 %v3285, 7
    %v3287 = vsub.s32 %v3156, %v3286
    %v3288 = vrot.slane %v2728, %v3287
    %v3289 = vlaneseq
    %v3290 = vshrl.u32 %v3289, 7
    %v3291 = vsub.s32 %v3161, %v3290
    %v3292 = vrot.slane %v2731, %v3291
    %v3293 = vsel %vm3166, %v3292, %v3288
    %v3294 = vlaneseq
    %v3295 = vshrl.u32 %v3294, 7
    %v3296 = vsub.s32 %v3156, %v3295
    %v3297 = vrot.slane %v2734, %v3296
    %v3298 = vlaneseq
    %v3299 = vshrl.u32 %v3298, 7
    %v3300 = vsub.s32 %v3161, %v3299
    %v3301 = vrot.slane %v2737, %v3300
    %v3302 = vsel %vm3166, %v3301, %v3297
    %v3303 = vlaneseq
    %v3304 = vshrl.u32 %v3303, 7
    %v3305 = vsub.s32 %v3156, %v3304
    %v3306 = vrot.slane %v2740, %v3305
    %v3307 = vlaneseq
    %v3308 = vshrl.u32 %v3307, 7
    %v3309 = vsub.s32 %v3161, %v3308
    %v3310 = vrot.slane %v2743, %v3309
    %v3311 = vsel %vm3166, %v3310, %v3306
    %v3312 = vlaneseq
    %v3313 = vshrl.u32 %v3312, 7
    %v3314 = vsub.s32 %v3156, %v3313
    %v3315 = vrot.slane %v2746, %v3314
    %v3316 = vlaneseq
    %v3317 = vshrl.u32 %v3316, 7
    %v3318 = vsub.s32 %v3161, %v3317
    %v3319 = vrot.slane %v2749, %v3318
    %v3320 = vsel %vm3166, %v3319, %v3315
    %v3321 = vlaneseq
    %v3322 = vshrl.u32 %v3321, 7
    %v3323 = vsub.s32 %v3156, %v3322
    %v3324 = vrot.slane %v2752, %v3323
    %v3325 = vlaneseq
    %v3326 = vshrl.u32 %v3325, 7
    %v3327 = vsub.s32 %v3161, %v3326
    %v3328 = vrot.slane %v2755, %v3327
    %v3329 = vsel %vm3166, %v3328, %v3324
    %v3330 = vlaneseq
    %v3331 = vshrl.u32 %v3330, 7
    %v3332 = vsub.s32 %v3156, %v3331
    %v3333 = vrot.slane %v2758, %v3332
    %v3334 = vlaneseq
    %v3335 = vshrl.u32 %v3334, 7
    %v3336 = vsub.s32 %v3161, %v3335
    %v3337 = vrot.slane %v2761, %v3336
    %v3338 = vsel %vm3166, %v3337, %v3333
    %v3339 = vlaneseq
    %v3340 = vshrl.u32 %v3339, 7
    %v3341 = vsub.s32 %v3156, %v3340
    %v3342 = vrot.slane %v2764, %v3341
    %v3343 = vlaneseq
    %v3344 = vshrl.u32 %v3343, 7
    %v3345 = vsub.s32 %v3161, %v3344
    %v3346 = vrot.slane %v2767, %v3345
    %v3347 = vsel %vm3166, %v3346, %v3342
    %v3348 = vlaneseq
    %v3349 = vshrl.u32 %v3348, 7
    %v3350 = vsub.s32 %v3156, %v3349
    %v3351 = vrot.slane %v2770, %v3350
    %v3352 = vlaneseq
    %v3353 = vshrl.u32 %v3352, 7
    %v3354 = vsub.s32 %v3161, %v3353
    %v3355 = vrot.slane %v2773, %v3354
    %v3356 = vsel %vm3166, %v3355, %v3351
    %v3357 = vlaneseq
    %v3358 = vshrl.u32 %v3357, 7
    %v3359 = vsub.s32 %v3156, %v3358
    %v3360 = vrot.slane %v2776, %v3359
    %v3361 = vlaneseq
    %v3362 = vshrl.u32 %v3361, 7
    %v3363 = vsub.s32 %v3161, %v3362
    %v3364 = vrot.slane %v2779, %v3363
    %v3365 = vsel %vm3166, %v3364, %v3360
    %v3366 = vlaneseq
    %v3367 = vshrl.u32 %v3366, 7
    %v3368 = vsub.s32 %v3156, %v3367
    %v3369 = vrot.slane %v2782, %v3368
    %v3370 = vlaneseq
    %v3371 = vshrl.u32 %v3370, 7
    %v3372 = vsub.s32 %v3161, %v3371
    %v3373 = vrot.slane %v2785, %v3372
    %v3374 = vsel %vm3166, %v3373, %v3369
    %v3375 = vlaneseq
    %v3376 = vshrl.u32 %v3375, 7
    %v3377 = vsub.s32 %v3156, %v3376
    %v3378 = vrot.slane %v2788, %v3377
    %v3379 = vlaneseq
    %v3380 = vshrl.u32 %v3379, 7
    %v3381 = vsub.s32 %v3161, %v3380
    %v3382 = vrot.slane %v2791, %v3381
    %v3383 = vsel %vm3166, %v3382, %v3378
    %v3384 = vlaneseq
    %v3385 = vshrl.u32 %v3384, 7
    %v3386 = vsub.s32 %v3156, %v3385
    %v3387 = vrot.slane %v2794, %v3386
    %v3388 = vlaneseq
    %v3389 = vshrl.u32 %v3388, 7
    %v3390 = vsub.s32 %v3161, %v3389
    %v3391 = vrot.slane %v2797, %v3390
    %v3392 = vsel %vm3166, %v3391, %v3387
    %v3393 = vlaneseq
    %v3394 = vshrl.u32 %v3393, 7
    %v3395 = vsub.s32 %v3156, %v3394
    %v3396 = vrot.slane %v2800, %v3395
    %v3397 = vlaneseq
    %v3398 = vshrl.u32 %v3397, 7
    %v3399 = vsub.s32 %v3161, %v3398
    %v3400 = vrot.slane %v2803, %v3399
    %v3401 = vsel %vm3166, %v3400, %v3396
    %v3402 = vlaneseq
    %v3403 = vshrl.u32 %v3402, 7
    %v3404 = vsub.s32 %v3156, %v3403
    %v3405 = vrot.slane %v2806, %v3404
    %v3406 = vlaneseq
    %v3407 = vshrl.u32 %v3406, 7
    %v3408 = vsub.s32 %v3161, %v3407
    %v3409 = vrot.slane %v2809, %v3408
    %v3410 = vsel %vm3166, %v3409, %v3405
    %v3411 = vlaneseq
    %v3412 = vshrl.u32 %v3411, 7
    %v3413 = vsub.s32 %v3156, %v3412
    %v3414 = vrot.slane %v2812, %v3413
    %v3415 = vlaneseq
    %v3416 = vshrl.u32 %v3415, 7
    %v3417 = vsub.s32 %v3161, %v3416
    %v3418 = vrot.slane %v2815, %v3417
    %v3419 = vsel %vm3166, %v3418, %v3414
    %v3420 = vlaneseq
    %v3421 = vshrl.u32 %v3420, 7
    %v3422 = vsub.s32 %v3156, %v3421
    %v3423 = vrot.slane %v2818, %v3422
    %v3424 = vlaneseq
    %v3425 = vshrl.u32 %v3424, 7
    %v3426 = vsub.s32 %v3161, %v3425
    %v3427 = vrot.slane %v2821, %v3426
    %v3428 = vsel %vm3166, %v3427, %v3423
    %v3429 = vlaneseq
    %v3430 = vshrl.u32 %v3429, 7
    %v3431 = vsub.s32 %v3156, %v3430
    %v3432 = vrot.slane %v2824, %v3431
    %v3433 = vlaneseq
    %v3434 = vshrl.u32 %v3433, 7
    %v3435 = vsub.s32 %v3161, %v3434
    %v3436 = vrot.slane %v2827, %v3435
    %v3437 = vsel %vm3166, %v3436, %v3432
    %v3438 = vlaneseq
    %v3439 = vshrl.u32 %v3438, 7
    %v3440 = vsub.s32 %v3156, %v3439
    %v3441 = vrot.slane %v2830, %v3440
    %v3442 = vlaneseq
    %v3443 = vshrl.u32 %v3442, 7
    %v3444 = vsub.s32 %v3161, %v3443
    %v3445 = vrot.slane %v2833, %v3444
    %v3446 = vsel %vm3166, %v3445, %v3441
    %vm3447 = vcmask 1041409
    %v3448 = vsel %vm3447, %v3176, %v3167
    %vm3449 = vcmask 1042434
    %v3450 = vsel %vm3449, %v3185, %v3448
    %vm3451 = vcmask 1043459
    %v3452 = vsel %vm3451, %v3194, %v3450
    %vm3453 = vcmask 1044484
    %v3454 = vsel %vm3453, %v3203, %v3452
    %vm3455 = vcmask 1045509
    %v3456 = vsel %vm3455, %v3212, %v3454
    %vm3457 = vcmask 1046534
    %v3458 = vsel %vm3457, %v3221, %v3456
    %vm3459 = vcmask 1047559
    %v3460 = vsel %vm3459, %v3230, %v3458
    %v3461 = vsel %vm3447, %v3248, %v3239
    %v3462 = vsel %vm3449, %v3257, %v3461
    %v3463 = vsel %vm3451, %v3266, %v3462
    %v3464 = vsel %vm3453, %v3275, %v3463
    %v3465 = vsel %vm3455, %v3284, %v3464
    %v3466 = vsel %vm3457, %v3293, %v3465
    %v3467 = vsel %vm3459, %v3302, %v3466
    %v3468 = vsel %vm3447, %v3320, %v3311
    %v3469 = vsel %vm3449, %v3329, %v3468
    %v3470 = vsel %vm3451, %v3338, %v3469
    %v3471 = vsel %vm3453, %v3347, %v3470
    %v3472 = vsel %vm3455, %v3356, %v3471
    %v3473 = vsel %vm3457, %v3365, %v3472
    %v3474 = vsel %vm3459, %v3374, %v3473
    %v3475 = vsel %vm3447, %v3392, %v3383
    %v3476 = vsel %vm3449, %v3401, %v3475
    %v3477 = vsel %vm3451, %v3410, %v3476
    %v3478 = vsel %vm3453, %v3419, %v3477
    %v3479 = vsel %vm3455, %v3428, %v3478
    %v3480 = vsel %vm3457, %v3437, %v3479
    %v3481 = vsel %vm3459, %v3446, %v3480
    %v3550 = vadd.s32 %v3156, 4294967280
    %v3551 = vlaneseq
    %v3552 = vshrl.u32 %v3551, 7
    %v3553 = vsub.s32 %v3550, %v3552
    %v3554 = vrot.slane %v3027, %v3553
    %v3555 = vadd.s32 %v3156, 4294967272
    %v3556 = vlaneseq
    %v3557 = vshrl.u32 %v3556, 7
    %v3558 = vsub.s32 %v3555, %v3557
    %v3559 = vrot.slane %v3028, %v3558
    %vm3560 = vcmask 261312
    %v3561 = vsel %vm3560, %v3559, %v3554
    %v3562 = vlaneseq
    %v3563 = vshrl.u32 %v3562, 7
    %v3564 = vsub.s32 %v3550, %v3563
    %v3565 = vrot.slane %v3029, %v3564
    %v3566 = vlaneseq
    %v3567 = vshrl.u32 %v3566, 7
    %v3568 = vsub.s32 %v3555, %v3567
    %v3569 = vrot.slane %v3030, %v3568
    %v3570 = vsel %vm3560, %v3569, %v3565
    %v3571 = vlaneseq
    %v3572 = vshrl.u32 %v3571, 7
    %v3573 = vsub.s32 %v3550, %v3572
    %v3574 = vrot.slane %v3031, %v3573
    %v3575 = vlaneseq
    %v3576 = vshrl.u32 %v3575, 7
    %v3577 = vsub.s32 %v3555, %v3576
    %v3578 = vrot.slane %v3032, %v3577
    %v3579 = vsel %vm3560, %v3578, %v3574
    %v3580 = vlaneseq
    %v3581 = vshrl.u32 %v3580, 7
    %v3582 = vsub.s32 %v3550, %v3581
    %v3583 = vrot.slane %v3033, %v3582
    %v3584 = vlaneseq
    %v3585 = vshrl.u32 %v3584, 7
    %v3586 = vsub.s32 %v3555, %v3585
    %v3587 = vrot.slane %v3034, %v3586
    %v3588 = vsel %vm3560, %v3587, %v3583
    %v3589 = vlaneseq
    %v3590 = vshrl.u32 %v3589, 7
    %v3591 = vsub.s32 %v3550, %v3590
    %v3592 = vrot.slane %v3035, %v3591
    %v3593 = vlaneseq
    %v3594 = vshrl.u32 %v3593, 7
    %v3595 = vsub.s32 %v3555, %v3594
    %v3596 = vrot.slane %v3036, %v3595
    %v3597 = vsel %vm3560, %v3596, %v3592
    %v3598 = vlaneseq
    %v3599 = vshrl.u32 %v3598, 7
    %v3600 = vsub.s32 %v3550, %v3599
    %v3601 = vrot.slane %v3037, %v3600
    %v3602 = vlaneseq
    %v3603 = vshrl.u32 %v3602, 7
    %v3604 = vsub.s32 %v3555, %v3603
    %v3605 = vrot.slane %v3038, %v3604
    %v3606 = vsel %vm3560, %v3605, %v3601
    %v3607 = vlaneseq
    %v3608 = vshrl.u32 %v3607, 7
    %v3609 = vsub.s32 %v3550, %v3608
    %v3610 = vrot.slane %v3039, %v3609
    %v3611 = vlaneseq
    %v3612 = vshrl.u32 %v3611, 7
    %v3613 = vsub.s32 %v3555, %v3612
    %v3614 = vrot.slane %v3040, %v3613
    %v3615 = vsel %vm3560, %v3614, %v3610
    %v3616 = vlaneseq
    %v3617 = vshrl.u32 %v3616, 7
    %v3618 = vsub.s32 %v3550, %v3617
    %v3619 = vrot.slane %v3041, %v3618
    %v3620 = vlaneseq
    %v3621 = vshrl.u32 %v3620, 7
    %v3622 = vsub.s32 %v3555, %v3621
    %v3623 = vrot.slane %v3042, %v3622
    %v3624 = vsel %vm3560, %v3623, %v3619
    %v3625 = vlaneseq
    %v3626 = vshrl.u32 %v3625, 7
    %v3627 = vsub.s32 %v3550, %v3626
    %v3628 = vrot.slane %v3043, %v3627
    %v3629 = vlaneseq
    %v3630 = vshrl.u32 %v3629, 7
    %v3631 = vsub.s32 %v3555, %v3630
    %v3632 = vrot.slane %v3044, %v3631
    %v3633 = vsel %vm3560, %v3632, %v3628
    %v3634 = vlaneseq
    %v3635 = vshrl.u32 %v3634, 7
    %v3636 = vsub.s32 %v3550, %v3635
    %v3637 = vrot.slane %v3045, %v3636
    %v3638 = vlaneseq
    %v3639 = vshrl.u32 %v3638, 7
    %v3640 = vsub.s32 %v3555, %v3639
    %v3641 = vrot.slane %v3046, %v3640
    %v3642 = vsel %vm3560, %v3641, %v3637
    %v3643 = vlaneseq
    %v3644 = vshrl.u32 %v3643, 7
    %v3645 = vsub.s32 %v3550, %v3644
    %v3646 = vrot.slane %v3047, %v3645
    %v3647 = vlaneseq
    %v3648 = vshrl.u32 %v3647, 7
    %v3649 = vsub.s32 %v3555, %v3648
    %v3650 = vrot.slane %v3048, %v3649
    %v3651 = vsel %vm3560, %v3650, %v3646
    %v3652 = vlaneseq
    %v3653 = vshrl.u32 %v3652, 7
    %v3654 = vsub.s32 %v3550, %v3653
    %v3655 = vrot.slane %v3049, %v3654
    %v3656 = vlaneseq
    %v3657 = vshrl.u32 %v3656, 7
    %v3658 = vsub.s32 %v3555, %v3657
    %v3659 = vrot.slane %v3050, %v3658
    %v3660 = vsel %vm3560, %v3659, %v3655
    %v3661 = vlaneseq
    %v3662 = vshrl.u32 %v3661, 7
    %v3663 = vsub.s32 %v3550, %v3662
    %v3664 = vrot.slane %v3051, %v3663
    %v3665 = vlaneseq
    %v3666 = vshrl.u32 %v3665, 7
    %v3667 = vsub.s32 %v3555, %v3666
    %v3668 = vrot.slane %v3052, %v3667
    %v3669 = vsel %vm3560, %v3668, %v3664
    %v3670 = vlaneseq
    %v3671 = vshrl.u32 %v3670, 7
    %v3672 = vsub.s32 %v3550, %v3671
    %v3673 = vrot.slane %v3053, %v3672
    %v3674 = vlaneseq
    %v3675 = vshrl.u32 %v3674, 7
    %v3676 = vsub.s32 %v3555, %v3675
    %v3677 = vrot.slane %v3054, %v3676
    %v3678 = vsel %vm3560, %v3677, %v3673
    %v3679 = vlaneseq
    %v3680 = vshrl.u32 %v3679, 7
    %v3681 = vsub.s32 %v3550, %v3680
    %v3682 = vrot.slane %v3055, %v3681
    %v3683 = vlaneseq
    %v3684 = vshrl.u32 %v3683, 7
    %v3685 = vsub.s32 %v3555, %v3684
    %v3686 = vrot.slane %v3056, %v3685
    %v3687 = vsel %vm3560, %v3686, %v3682
    %v3688 = vlaneseq
    %v3689 = vshrl.u32 %v3688, 7
    %v3690 = vsub.s32 %v3550, %v3689
    %v3691 = vrot.slane %v3057, %v3690
    %v3692 = vlaneseq
    %v3693 = vshrl.u32 %v3692, 7
    %v3694 = vsub.s32 %v3555, %v3693
    %v3695 = vrot.slane %v3058, %v3694
    %v3696 = vsel %vm3560, %v3695, %v3691
    %v3697 = vlaneseq
    %v3698 = vshrl.u32 %v3697, 7
    %v3699 = vsub.s32 %v3550, %v3698
    %v3700 = vrot.slane %v3059, %v3699
    %v3701 = vlaneseq
    %v3702 = vshrl.u32 %v3701, 7
    %v3703 = vsub.s32 %v3555, %v3702
    %v3704 = vrot.slane %v3060, %v3703
    %v3705 = vsel %vm3560, %v3704, %v3700
    %v3706 = vlaneseq
    %v3707 = vshrl.u32 %v3706, 7
    %v3708 = vsub.s32 %v3550, %v3707
    %v3709 = vrot.slane %v3061, %v3708
    %v3710 = vlaneseq
    %v3711 = vshrl.u32 %v3710, 7
    %v3712 = vsub.s32 %v3555, %v3711
    %v3713 = vrot.slane %v3062, %v3712
    %v3714 = vsel %vm3560, %v3713, %v3709
    %v3715 = vlaneseq
    %v3716 = vshrl.u32 %v3715, 7
    %v3717 = vsub.s32 %v3550, %v3716
    %v3718 = vrot.slane %v3063, %v3717
    %v3719 = vlaneseq
    %v3720 = vshrl.u32 %v3719, 7
    %v3721 = vsub.s32 %v3555, %v3720
    %v3722 = vrot.slane %v3064, %v3721
    %v3723 = vsel %vm3560, %v3722, %v3718
    %v3724 = vlaneseq
    %v3725 = vshrl.u32 %v3724, 7
    %v3726 = vsub.s32 %v3550, %v3725
    %v3727 = vrot.slane %v3065, %v3726
    %v3728 = vlaneseq
    %v3729 = vshrl.u32 %v3728, 7
    %v3730 = vsub.s32 %v3555, %v3729
    %v3731 = vrot.slane %v3066, %v3730
    %v3732 = vsel %vm3560, %v3731, %v3727
    %v3733 = vlaneseq
    %v3734 = vshrl.u32 %v3733, 7
    %v3735 = vsub.s32 %v3550, %v3734
    %v3736 = vrot.slane %v3067, %v3735
    %v3737 = vlaneseq
    %v3738 = vshrl.u32 %v3737, 7
    %v3739 = vsub.s32 %v3555, %v3738
    %v3740 = vrot.slane %v3068, %v3739
    %v3741 = vsel %vm3560, %v3740, %v3736
    %v3742 = vlaneseq
    %v3743 = vshrl.u32 %v3742, 7
    %v3744 = vsub.s32 %v3550, %v3743
    %v3745 = vrot.slane %v3069, %v3744
    %v3746 = vlaneseq
    %v3747 = vshrl.u32 %v3746, 7
    %v3748 = vsub.s32 %v3555, %v3747
    %v3749 = vrot.slane %v3070, %v3748
    %v3750 = vsel %vm3560, %v3749, %v3745
    %v3751 = vlaneseq
    %v3752 = vshrl.u32 %v3751, 7
    %v3753 = vsub.s32 %v3550, %v3752
    %v3754 = vrot.slane %v3071, %v3753
    %v3755 = vlaneseq
    %v3756 = vshrl.u32 %v3755, 7
    %v3757 = vsub.s32 %v3555, %v3756
    %v3758 = vrot.slane %v3072, %v3757
    %v3759 = vsel %vm3560, %v3758, %v3754
    %v3760 = vlaneseq
    %v3761 = vshrl.u32 %v3760, 7
    %v3762 = vsub.s32 %v3550, %v3761
    %v3763 = vrot.slane %v3073, %v3762
    %v3764 = vlaneseq
    %v3765 = vshrl.u32 %v3764, 7
    %v3766 = vsub.s32 %v3555, %v3765
    %v3767 = vrot.slane %v3074, %v3766
    %v3768 = vsel %vm3560, %v3767, %v3763
    %v3769 = vlaneseq
    %v3770 = vshrl.u32 %v3769, 7
    %v3771 = vsub.s32 %v3550, %v3770
    %v3772 = vrot.slane %v3075, %v3771
    %v3773 = vlaneseq
    %v3774 = vshrl.u32 %v3773, 7
    %v3775 = vsub.s32 %v3555, %v3774
    %v3776 = vrot.slane %v3076, %v3775
    %v3777 = vsel %vm3560, %v3776, %v3772
    %v3778 = vlaneseq
    %v3779 = vshrl.u32 %v3778, 7
    %v3780 = vsub.s32 %v3550, %v3779
    %v3781 = vrot.slane %v3077, %v3780
    %v3782 = vlaneseq
    %v3783 = vshrl.u32 %v3782, 7
    %v3784 = vsub.s32 %v3555, %v3783
    %v3785 = vrot.slane %v3078, %v3784
    %v3786 = vsel %vm3560, %v3785, %v3781
    %v3787 = vlaneseq
    %v3788 = vshrl.u32 %v3787, 7
    %v3789 = vsub.s32 %v3550, %v3788
    %v3790 = vrot.slane %v3079, %v3789
    %v3791 = vlaneseq
    %v3792 = vshrl.u32 %v3791, 7
    %v3793 = vsub.s32 %v3555, %v3792
    %v3794 = vrot.slane %v3080, %v3793
    %v3795 = vsel %vm3560, %v3794, %v3790
    %v3796 = vlaneseq
    %v3797 = vshrl.u32 %v3796, 7
    %v3798 = vsub.s32 %v3550, %v3797
    %v3799 = vrot.slane %v3081, %v3798
    %v3800 = vlaneseq
    %v3801 = vshrl.u32 %v3800, 7
    %v3802 = vsub.s32 %v3555, %v3801
    %v3803 = vrot.slane %v3082, %v3802
    %v3804 = vsel %vm3560, %v3803, %v3799
    %v3805 = vlaneseq
    %v3806 = vshrl.u32 %v3805, 7
    %v3807 = vsub.s32 %v3550, %v3806
    %v3808 = vrot.slane %v3083, %v3807
    %v3809 = vlaneseq
    %v3810 = vshrl.u32 %v3809, 7
    %v3811 = vsub.s32 %v3555, %v3810
    %v3812 = vrot.slane %v3084, %v3811
    %v3813 = vsel %vm3560, %v3812, %v3808
    %v3814 = vlaneseq
    %v3815 = vshrl.u32 %v3814, 7
    %v3816 = vsub.s32 %v3550, %v3815
    %v3817 = vrot.slane %v3085, %v3816
    %v3818 = vlaneseq
    %v3819 = vshrl.u32 %v3818, 7
    %v3820 = vsub.s32 %v3555, %v3819
    %v3821 = vrot.slane %v3086, %v3820
    %v3822 = vsel %vm3560, %v3821, %v3817
    %v3823 = vlaneseq
    %v3824 = vshrl.u32 %v3823, 7
    %v3825 = vsub.s32 %v3550, %v3824
    %v3826 = vrot.slane %v3087, %v3825
    %v3827 = vlaneseq
    %v3828 = vshrl.u32 %v3827, 7
    %v3829 = vsub.s32 %v3555, %v3828
    %v3830 = vrot.slane %v3088, %v3829
    %v3831 = vsel %vm3560, %v3830, %v3826
    %v3832 = vlaneseq
    %v3833 = vshrl.u32 %v3832, 7
    %v3834 = vsub.s32 %v3550, %v3833
    %v3835 = vrot.slane %v3089, %v3834
    %v3836 = vlaneseq
    %v3837 = vshrl.u32 %v3836, 7
    %v3838 = vsub.s32 %v3555, %v3837
    %v3839 = vrot.slane %v3090, %v3838
    %v3840 = vsel %vm3560, %v3839, %v3835
    %v3841 = vsel %vm3447, %v3570, %v3561
    %v3842 = vsel %vm3449, %v3579, %v3841
    %v3843 = vsel %vm3451, %v3588, %v3842
    %v3844 = vsel %vm3453, %v3597, %v3843
    %v3845 = vsel %vm3455, %v3606, %v3844
    %v3846 = vsel %vm3457, %v3615, %v3845
    %v3847 = vsel %vm3459, %v3624, %v3846
    %v3848 = vsel %vm3447, %v3642, %v3633
    %v3849 = vsel %vm3449, %v3651, %v3848
    %v3850 = vsel %vm3451, %v3660, %v3849
    %v3851 = vsel %vm3453, %v3669, %v3850
    %v3852 = vsel %vm3455, %v3678, %v3851
    %v3853 = vsel %vm3457, %v3687, %v3852
    %v3854 = vsel %vm3459, %v3696, %v3853
    %v3855 = vsel %vm3447, %v3714, %v3705
    %v3856 = vsel %vm3449, %v3723, %v3855
    %v3857 = vsel %vm3451, %v3732, %v3856
    %v3858 = vsel %vm3453, %v3741, %v3857
    %v3859 = vsel %vm3455, %v3750, %v3858
    %v3860 = vsel %vm3457, %v3759, %v3859
    %v3861 = vsel %vm3459, %v3768, %v3860
    %v3862 = vsel %vm3447, %v3786, %v3777
    %v3863 = vsel %vm3449, %v3795, %v3862
    %v3864 = vsel %vm3451, %v3804, %v3863
    %v3865 = vsel %vm3453, %v3813, %v3864
    %v3866 = vsel %vm3455, %v3822, %v3865
    %v3867 = vsel %vm3457, %v3831, %v3866
    %v3868 = vsel %vm3459, %v3840, %v3867
    %v3873 = vsel %vm2641, %v3460, %v3847
    %v3874 = vsel %vm2641, %v3467, %v3854
    %v3875 = vsel %vm2641, %v3474, %v3861
    %v3876 = vsel %vm2641, %v3481, %v3868
    %3877 = vst.msk [vmem:[#allocation3 + $0x2] sm:$0xff] %vm117, %v3873
    %3878 = vst.msk [vmem:[#allocation3 + $0xa] sm:$0xff] %vm117, %v3874
    %3879 = vst.msk [vmem:[#allocation3 + $0x1a] sm:$0xff] %vm117, %v3875
    %3880 = vst.msk [vmem:[#allocation3 + $0x22] sm:$0xff] %vm117, %v3876
    %v3881 = vld [vmem:[#allocation3] sm:$0xff]
    %v3882 = vld [vmem:[#allocation3 + $0x8] sm:$0xff]
    %v3883 = vld [vmem:[#allocation3 + $0x18] sm:$0xff]
    %v3884 = vld [vmem:[#allocation3 + $0x20] sm:$0xff]
    %v3885 = vld [vmem:[%s3] sm:$0xff]
    %v3886 = vld [vmem:[%s3 + $0x8] sm:$0xff]
    %v3887 = vld [vmem:[%s3 + $0x10] sm:$0xff]
    %v3888 = vld [vmem:[%s3 + $0x18] sm:$0xff]
    %v3889 = vld [vmem:[#allocation3 + $0x1] sm:$0xff]
    %v3890 = vld [vmem:[#allocation3 + $0x9] sm:$0xff]
    %v3891 = vld [vmem:[#allocation3 + $0x19] sm:$0xff]
    %v3892 = vld [vmem:[#allocation3 + $0x21] sm:$0xff]
    %s3893 = scalar_lea.vmem %s3, 32
    %v3894 = vld [vmem:[%s3893] sm:$0xff]
    %v3895 = vld [vmem:[%s3893 + $0x8] sm:$0xff]
    %v3896 = vld [vmem:[%s3893 + $0x10] sm:$0xff]
    %v3897 = vld [vmem:[%s3893 + $0x18] sm:$0xff]
    %v3899 = vsel %vm117, %v3889, 0
    %v3902 = vsel %vm117, %v3890, 0
    %v3905 = vsel %vm117, %v3891, 0
    %v3908 = vsel %vm117, %v3892, 0
    %3910 = vmatprep.subr.mxu0 0.0
    %3911 = vmatpush1.msra.mxu0 %v3894
    %3912 = vmatprep.subr.mxu0 0.0
    %3913 = vmatpush1.msra.mxu0 %v3895
    %3914 = vmatprep.subr.mxu0 0.0
    %3915 = vmatpush1.msra.mxu0 %v3896
    %3916 = vmatprep.subr.mxu0 0.0
    %3917 = vmatpush1.msra.mxu0 %v3897
    %3918 = vmatprep.subr.mxu0 0.0
    %3919 = vmatpush1.msra.mxu0 0.0
    %3920 = vmatprep.subr.mxu0 0.0
    %3921 = vmatpush1.msra.mxu0 0.0
    %3922 = vmatprep.subr.mxu0 0.0
    %3923 = vmatpush1.msra.mxu0 0.0
    %3924 = vmatprep.subr.mxu0 0.0
    %3925 = vmatpush1.msra.mxu0 0.0
    %3926 = vmatprep.subr.mxu0 0.0
    %3927 = vmatpush1.msra.mxu0 0.0
    %3928 = vmatprep.subr.mxu0 0.0
    %3929 = vmatpush1.msra.mxu0 0.0
    %3930 = vmatprep.subr.mxu0 0.0
    %3931 = vmatpush1.msra.mxu0 0.0
    %3932 = vmatprep.subr.mxu0 0.0
    %3933 = vmatpush1.msra.mxu0 0.0
    %3934 = vmatprep.subr.mxu0 0.0
    %3935 = vmatpush1.msra.mxu0 0.0
    %3936 = vmatprep.subr.mxu0 0.0
    %3937 = vmatpush1.msra.mxu0 0.0
    %3938 = vmatprep.subr.mxu0 0.0
    %3939 = vmatpush1.msra.mxu0 0.0
    %3940 = vmatprep.subr.mxu0 0.0
    %3941 = vmatpush1.msra.mxu0 0.0
    %3942 = vmatprep.subr.mxu0 0.0
    %3943 = vmatpush1.msra.mxu0 0.0
    %3944 = vmatprep.subr.mxu0 0.0
    %3945 = vmatpush1.msra.mxu0 0.0
    %3946 = vmatprep.subr.mxu0 0.0
    %3947 = vmatpush1.msra.mxu0 0.0
    %3948 = vmatprep.subr.mxu0 0.0
    %3949 = vmatpush1.msra.mxu0 0.0
    %3950 = vmatprep.subr.mxu0 0.0
    %3951 = vmatpush1.msra.mxu0 0.0
    %3952 = vmatprep.subr.mxu0 0.0
    %3953 = vmatpush1.msra.mxu0 0.0
    %3954 = vmatprep.subr.mxu0 0.0
    %3955 = vmatpush1.msra.mxu0 0.0
    %3956 = vmatprep.subr.mxu0 0.0
    %3957 = vmatpush1.msra.mxu0 0.0
    %3958 = vmatprep.subr.mxu0 0.0
    %3959 = vmatpush1.msra.mxu0 0.0
    %3960 = vmatprep.subr.mxu0 0.0
    %3961 = vmatpush1.msra.mxu0 0.0
    %3962 = vmatprep.subr.mxu0 0.0
    %3963 = vmatpush1.msra.mxu0 0.0
    %3964 = vmatprep.subr.mxu0 0.0
    %3965 = vmatpush1.msra.mxu0 0.0
    %3966 = vmatprep.subr.mxu0 0.0
    %3967 = vmatpush1.msra.mxu0 0.0
    %3968 = vmatprep.subr.mxu0 0.0
    %3969 = vmatpush1.msra.mxu0 0.0
    %3970 = vmatprep.subr.mxu0 0.0
    %3971 = vmatpush1.msra.mxu0 0.0
    %3972 = vmatprep.subr.mxu0 0.0
    %3973 = vmatpush1.msra.mxu0 0.0
    %3974 = vmatprep.mubr.f32.mxu0 0.0
    %3975 = vmatmul.mubr.f32.gmra.mrb[0].mxu0 %v3899
    %v3976 = vpop.f32.mrb[0].mxu0
    %v3977 = vadd.f32 0.0, %v3976
    %v3978 = vpop.f32.mrb[0].mxu0
    %3979 = vmatprep.mubr.f32.mxu0 0.0
    %3980 = vmatmul.mubr.f32.gmra.mrb[0].mxu0 %v3902
    %v3981 = vpop.f32.mrb[0].mxu0
    %v3982 = vadd.f32 0.0, %v3981
    %v3983 = vpop.f32.mrb[0].mxu0
    %3984 = vmatprep.mubr.f32.mxu0 0.0
    %3985 = vmatmul.mubr.f32.gmra.mrb[0].mxu0 %v3905
    %v3986 = vpop.f32.mrb[0].mxu0
    %v3987 = vadd.f32 0.0, %v3986
    %v3988 = vpop.f32.mrb[0].mxu0
    %3989 = vmatprep.mubr.f32.mxu0 0.0
    %3990 = vmatmul.mubr.f32.gmra.mrb[0].mxu0 %v3908
    %v3991 = vpop.f32.mrb[0].mxu0
    %v3992 = vadd.f32 0.0, %v3991
    %v3993 = vpop.f32.mrb[0].mxu0
    %3994 = vdwg.mxu0
    %v3996 = vsel %vm117, %v3881, 0
    %v3999 = vsel %vm117, %v3882, 0
    %v4002 = vsel %vm117, %v3883, 0
    %v4005 = vsel %vm117, %v3884, 0
    %4007 = vmatprep.subr.mxu0 0.0
    %4008 = vmatpush1.msra.mxu0 %v3885
    %4009 = vmatprep.subr.mxu0 0.0
    %4010 = vmatpush1.msra.mxu0 %v3886
    %4011 = vmatprep.subr.mxu0 0.0
    %4012 = vmatpush1.msra.mxu0 %v3887
    %4013 = vmatprep.subr.mxu0 0.0
    %4014 = vmatpush1.msra.mxu0 %v3888
    %4015 = vmatprep.subr.mxu0 0.0
    %4016 = vmatpush1.msra.mxu0 0.0
    %4017 = vmatprep.subr.mxu0 0.0
    %4018 = vmatpush1.msra.mxu0 0.0
    %4019 = vmatprep.subr.mxu0 0.0
    %4020 = vmatpush1.msra.mxu0 0.0
    %4021 = vmatprep.subr.mxu0 0.0
    %4022 = vmatpush1.msra.mxu0 0.0
    %4023 = vmatprep.subr.mxu0 0.0
    %4024 = vmatpush1.msra.mxu0 0.0
    %4025 = vmatprep.subr.mxu0 0.0
    %4026 = vmatpush1.msra.mxu0 0.0
    %4027 = vmatprep.subr.mxu0 0.0
    %4028 = vmatpush1.msra.mxu0 0.0
    %4029 = vmatprep.subr.mxu0 0.0
    %4030 = vmatpush1.msra.mxu0 0.0
    %4031 = vmatprep.subr.mxu0 0.0
    %4032 = vmatpush1.msra.mxu0 0.0
    %4033 = vmatprep.subr.mxu0 0.0
    %4034 = vmatpush1.msra.mxu0 0.0
    %4035 = vmatprep.subr.mxu0 0.0
    %4036 = vmatpush1.msra.mxu0 0.0
    %4037 = vmatprep.subr.mxu0 0.0
    %4038 = vmatpush1.msra.mxu0 0.0
    %4039 = vmatprep.subr.mxu0 0.0
    %4040 = vmatpush1.msra.mxu0 0.0
    %4041 = vmatprep.subr.mxu0 0.0
    %4042 = vmatpush1.msra.mxu0 0.0
    %4043 = vmatprep.subr.mxu0 0.0
    %4044 = vmatpush1.msra.mxu0 0.0
    %4045 = vmatprep.subr.mxu0 0.0
    %4046 = vmatpush1.msra.mxu0 0.0
    %4047 = vmatprep.subr.mxu0 0.0
    %4048 = vmatpush1.msra.mxu0 0.0
    %4049 = vmatprep.subr.mxu0 0.0
    %4050 = vmatpush1.msra.mxu0 0.0
    %4051 = vmatprep.subr.mxu0 0.0
    %4052 = vmatpush1.msra.mxu0 0.0
    %4053 = vmatprep.subr.mxu0 0.0
    %4054 = vmatpush1.msra.mxu0 0.0
    %4055 = vmatprep.subr.mxu0 0.0
    %4056 = vmatpush1.msra.mxu0 0.0
    %4057 = vmatprep.subr.mxu0 0.0
    %4058 = vmatpush1.msra.mxu0 0.0
    %4059 = vmatprep.subr.mxu0 0.0
    %4060 = vmatpush1.msra.mxu0 0.0
    %4061 = vmatprep.subr.mxu0 0.0
    %4062 = vmatpush1.msra.mxu0 0.0
    %4063 = vmatprep.subr.mxu0 0.0
    %4064 = vmatpush1.msra.mxu0 0.0
    %4065 = vmatprep.subr.mxu0 0.0
    %4066 = vmatpush1.msra.mxu0 0.0
    %4067 = vmatprep.subr.mxu0 0.0
    %4068 = vmatpush1.msra.mxu0 0.0
    %4069 = vmatprep.subr.mxu0 0.0
    %4070 = vmatpush1.msra.mxu0 0.0
    %4071 = vmatprep.mubr.f32.mxu0 0.0
    %4072 = vmatmul.mubr.f32.gmra.mrb[0].mxu0 %v3996
    %v4073 = vpop.f32.mrb[0].mxu0
    %v4074 = vadd.f32 %v3977, %v4073
    %v4075 = vpop.f32.mrb[0].mxu0
    %4076 = vmatprep.mubr.f32.mxu0 0.0
    %4077 = vmatmul.mubr.f32.gmra.mrb[0].mxu0 %v3999
    %v4078 = vpop.f32.mrb[0].mxu0
    %v4079 = vadd.f32 %v3982, %v4078
    %v4080 = vpop.f32.mrb[0].mxu0
    %4081 = vmatprep.mubr.f32.mxu0 0.0
    %4082 = vmatmul.mubr.f32.gmra.mrb[0].mxu0 %v4002
    %v4083 = vpop.f32.mrb[0].mxu0
    %v4084 = vadd.f32 %v3987, %v4083
    %v4085 = vpop.f32.mrb[0].mxu0
    %4086 = vmatprep.mubr.f32.mxu0 0.0
    %4087 = vmatmul.mubr.f32.gmra.mrb[0].mxu0 %v4005
    %v4088 = vpop.f32.mrb[0].mxu0
    %v4089 = vadd.f32 %v3992, %v4088
    %v4090 = vpop.f32.mrb[0].mxu0
    %4091 = vdwg.mxu0
    %v4092 = vld [vmem:[#allocation3 + $0x2] sm:$0xff]
    %v4093 = vld [vmem:[#allocation3 + $0xa] sm:$0xff]
    %v4094 = vld [vmem:[#allocation3 + $0x1a] sm:$0xff]
    %v4095 = vld [vmem:[#allocation3 + $0x22] sm:$0xff]
    %s4096 = scalar_lea.vmem %s3, 64
    %v4097 = vld [vmem:[%s4096] sm:$0xff]
    %v4098 = vld [vmem:[%s4096 + $0x8] sm:$0xff]
    %v4099 = vld [vmem:[%s4096 + $0x10] sm:$0xff]
    %v4100 = vld [vmem:[%s4096 + $0x18] sm:$0xff]
    %v4102 = vsel %vm117, %v4092, 0
    %v4105 = vsel %vm117, %v4093, 0
    %v4108 = vsel %vm117, %v4094, 0
    %v4111 = vsel %vm117, %v4095, 0
    %4113 = vmatprep.subr.mxu0 0.0
    %4114 = vmatpush1.msra.mxu0 %v4097
    %4115 = vmatprep.subr.mxu0 0.0
    %4116 = vmatpush1.msra.mxu0 %v4098
    %4117 = vmatprep.subr.mxu0 0.0
    %4118 = vmatpush1.msra.mxu0 %v4099
    %4119 = vmatprep.subr.mxu0 0.0
    %4120 = vmatpush1.msra.mxu0 %v4100
    %4121 = vmatprep.subr.mxu0 0.0
    %4122 = vmatpush1.msra.mxu0 0.0
    %4123 = vmatprep.subr.mxu0 0.0
    %4124 = vmatpush1.msra.mxu0 0.0
    %4125 = vmatprep.subr.mxu0 0.0
    %4126 = vmatpush1.msra.mxu0 0.0
    %4127 = vmatprep.subr.mxu0 0.0
    %4128 = vmatpush1.msra.mxu0 0.0
    %4129 = vmatprep.subr.mxu0 0.0
    %4130 = vmatpush1.msra.mxu0 0.0
    %4131 = vmatprep.subr.mxu0 0.0
    %4132 = vmatpush1.msra.mxu0 0.0
    %4133 = vmatprep.subr.mxu0 0.0
    %4134 = vmatpush1.msra.mxu0 0.0
    %4135 = vmatprep.subr.mxu0 0.0
    %4136 = vmatpush1.msra.mxu0 0.0
    %4137 = vmatprep.subr.mxu0 0.0
    %4138 = vmatpush1.msra.mxu0 0.0
    %4139 = vmatprep.subr.mxu0 0.0
    %4140 = vmatpush1.msra.mxu0 0.0
    %4141 = vmatprep.subr.mxu0 0.0
    %4142 = vmatpush1.msra.mxu0 0.0
    %4143 = vmatprep.subr.mxu0 0.0
    %4144 = vmatpush1.msra.mxu0 0.0
    %4145 = vmatprep.subr.mxu0 0.0
    %4146 = vmatpush1.msra.mxu0 0.0
    %4147 = vmatprep.subr.mxu0 0.0
    %4148 = vmatpush1.msra.mxu0 0.0
    %4149 = vmatprep.subr.mxu0 0.0
    %4150 = vmatpush1.msra.mxu0 0.0
    %4151 = vmatprep.subr.mxu0 0.0
    %4152 = vmatpush1.msra.mxu0 0.0
    %4153 = vmatprep.subr.mxu0 0.0
    %4154 = vmatpush1.msra.mxu0 0.0
    %4155 = vmatprep.subr.mxu0 0.0
    %4156 = vmatpush1.msra.mxu0 0.0
    %4157 = vmatprep.subr.mxu0 0.0
    %4158 = vmatpush1.msra.mxu0 0.0
    %4159 = vmatprep.subr.mxu0 0.0
    %4160 = vmatpush1.msra.mxu0 0.0
    %4161 = vmatprep.subr.mxu0 0.0
    %4162 = vmatpush1.msra.mxu0 0.0
    %4163 = vmatprep.subr.mxu0 0.0
    %4164 = vmatpush1.msra.mxu0 0.0
    %4165 = vmatprep.subr.mxu0 0.0
    %4166 = vmatpush1.msra.mxu0 0.0
    %4167 = vmatprep.subr.mxu0 0.0
    %4168 = vmatpush1.msra.mxu0 0.0
    %4169 = vmatprep.subr.mxu0 0.0
    %4170 = vmatpush1.msra.mxu0 0.0
    %4171 = vmatprep.subr.mxu0 0.0
    %4172 = vmatpush1.msra.mxu0 0.0
    %4173 = vmatprep.subr.mxu0 0.0
    %4174 = vmatpush1.msra.mxu0 0.0
    %4175 = vmatprep.subr.mxu0 0.0
    %4176 = vmatpush1.msra.mxu0 0.0
    %4177 = vmatprep.mubr.f32.mxu0 0.0
    %4178 = vmatmul.mubr.f32.gmra.mrb[0].mxu0 %v4102
    %v4179 = vpop.f32.mrb[0].mxu0
    %v4180 = vadd.f32 0.0, %v4179
    %v4181 = vpop.f32.mrb[0].mxu0
    %4182 = vmatprep.mubr.f32.mxu0 0.0
    %4183 = vmatmul.mubr.f32.gmra.mrb[0].mxu0 %v4105
    %v4184 = vpop.f32.mrb[0].mxu0
    %v4185 = vadd.f32 0.0, %v4184
    %v4186 = vpop.f32.mrb[0].mxu0
    %4187 = vmatprep.mubr.f32.mxu0 0.0
    %4188 = vmatmul.mubr.f32.gmra.mrb[0].mxu0 %v4108
    %v4189 = vpop.f32.mrb[0].mxu0
    %v4190 = vadd.f32 0.0, %v4189
    %v4191 = vpop.f32.mrb[0].mxu0
    %4192 = vmatprep.mubr.f32.mxu0 0.0
    %4193 = vmatmul.mubr.f32.gmra.mrb[0].mxu0 %v4111
    %v4194 = vpop.f32.mrb[0].mxu0
    %v4195 = vadd.f32 0.0, %v4194
    %v4196 = vpop.f32.mrb[0].mxu0
    %4197 = vdwg.mxu0
    %v4198 = vadd.f32 %v4074, %v4180
    %v4199 = vadd.f32 %v4079, %v4185
    %v4200 = vadd.f32 %v4084, %v4190
    %v4201 = vadd.f32 %v4089, %v4195
    %v4202 = vld [vmem:[#allocation3 + $0x3] sm:$0xff]
    %v4203 = vld [vmem:[#allocation3 + $0xb] sm:$0xff]
    %v4204 = vld [vmem:[#allocation3 + $0x1b] sm:$0xff]
    %v4205 = vld [vmem:[#allocation3 + $0x23] sm:$0xff]
    %s4206 = scalar_lea.vmem %s3, 96
    %v4207 = vld [vmem:[%s4206] sm:$0xff]
    %v4208 = vld [vmem:[%s4206 + $0x8] sm:$0xff]
    %v4209 = vld [vmem:[%s4206 + $0x10] sm:$0xff]
    %v4210 = vld [vmem:[%s4206 + $0x18] sm:$0xff]
    %v4212 = vsel %vm117, %v4202, 0
    %v4215 = vsel %vm117, %v4203, 0
    %v4218 = vsel %vm117, %v4204, 0
    %v4221 = vsel %vm117, %v4205, 0
    %4223 = vmatprep.subr.mxu0 0.0
    %4224 = vmatpush1.msra.mxu0 %v4207
    %4225 = vmatprep.subr.mxu0 0.0
    %4226 = vmatpush1.msra.mxu0 %v4208
    %4227 = vmatprep.subr.mxu0 0.0
    %4228 = vmatpush1.msra.mxu0 %v4209
    %4229 = vmatprep.subr.mxu0 0.0
    %4230 = vmatpush1.msra.mxu0 %v4210
    %4231 = vmatprep.subr.mxu0 0.0
    %4232 = vmatpush1.msra.mxu0 0.0
    %4233 = vmatprep.subr.mxu0 0.0
    %4234 = vmatpush1.msra.mxu0 0.0
    %4235 = vmatprep.subr.mxu0 0.0
    %4236 = vmatpush1.msra.mxu0 0.0
    %4237 = vmatprep.subr.mxu0 0.0
    %4238 = vmatpush1.msra.mxu0 0.0
    %4239 = vmatprep.subr.mxu0 0.0
    %4240 = vmatpush1.msra.mxu0 0.0
    %4241 = vmatprep.subr.mxu0 0.0
    %4242 = vmatpush1.msra.mxu0 0.0
    %4243 = vmatprep.subr.mxu0 0.0
    %4244 = vmatpush1.msra.mxu0 0.0
    %4245 = vmatprep.subr.mxu0 0.0
    %4246 = vmatpush1.msra.mxu0 0.0
    %4247 = vmatprep.subr.mxu0 0.0
    %4248 = vmatpush1.msra.mxu0 0.0
    %4249 = vmatprep.subr.mxu0 0.0
    %4250 = vmatpush1.msra.mxu0 0.0
    %4251 = vmatprep.subr.mxu0 0.0
    %4252 = vmatpush1.msra.mxu0 0.0
    %4253 = vmatprep.subr.mxu0 0.0
    %4254 = vmatpush1.msra.mxu0 0.0
    %4255 = vmatprep.subr.mxu0 0.0
    %4256 = vmatpush1.msra.mxu0 0.0
    %4257 = vmatprep.subr.mxu0 0.0
    %4258 = vmatpush1.msra.mxu0 0.0
    %4259 = vmatprep.subr.mxu0 0.0
    %4260 = vmatpush1.msra.mxu0 0.0
    %4261 = vmatprep.subr.mxu0 0.0
    %4262 = vmatpush1.msra.mxu0 0.0
    %4263 = vmatprep.subr.mxu0 0.0
    %4264 = vmatpush1.msra.mxu0 0.0
    %4265 = vmatprep.subr.mxu0 0.0
    %4266 = vmatpush1.msra.mxu0 0.0
    %4267 = vmatprep.subr.mxu0 0.0
    %4268 = vmatpush1.msra.mxu0 0.0
    %4269 = vmatprep.subr.mxu0 0.0
    %4270 = vmatpush1.msra.mxu0 0.0
    %4271 = vmatprep.subr.mxu0 0.0
    %4272 = vmatpush1.msra.mxu0 0.0
    %4273 = vmatprep.subr.mxu0 0.0
    %4274 = vmatpush1.msra.mxu0 0.0
    %4275 = vmatprep.subr.mxu0 0.0
    %4276 = vmatpush1.msra.mxu0 0.0
    %4277 = vmatprep.subr.mxu0 0.0
    %4278 = vmatpush1.msra.mxu0 0.0
    %4279 = vmatprep.subr.mxu0 0.0
    %4280 = vmatpush1.msra.mxu0 0.0
    %4281 = vmatprep.subr.mxu0 0.0
    %4282 = vmatpush1.msra.mxu0 0.0
    %4283 = vmatprep.subr.mxu0 0.0
    %4284 = vmatpush1.msra.mxu0 0.0
    %4285 = vmatprep.subr.mxu0 0.0
    %4286 = vmatpush1.msra.mxu0 0.0
    %4287 = vmatprep.mubr.f32.mxu0 0.0
    %4288 = vmatmul.mubr.f32.gmra.mrb[0].mxu0 %v4212
    %v4289 = vpop.f32.mrb[0].mxu0
    %v4290 = vadd.f32 0.0, %v4289
    %v4291 = vpop.f32.mrb[0].mxu0
    %4292 = vmatprep.mubr.f32.mxu0 0.0
    %4293 = vmatmul.mubr.f32.gmra.mrb[0].mxu0 %v4215
    %v4294 = vpop.f32.mrb[0].mxu0
    %v4295 = vadd.f32 0.0, %v4294
    %v4296 = vpop.f32.mrb[0].mxu0
    %4297 = vmatprep.mubr.f32.mxu0 0.0
    %4298 = vmatmul.mubr.f32.gmra.mrb[0].mxu0 %v4218
    %v4299 = vpop.f32.mrb[0].mxu0
    %v4300 = vadd.f32 0.0, %v4299
    %v4301 = vpop.f32.mrb[0].mxu0
    %4302 = vmatprep.mubr.f32.mxu0 0.0
    %4303 = vmatmul.mubr.f32.gmra.mrb[0].mxu0 %v4221
    %v4304 = vpop.f32.mrb[0].mxu0
    %v4305 = vadd.f32 0.0, %v4304
    %v4306 = vpop.f32.mrb[0].mxu0
    %4307 = vdwg.mxu0
    %v4308 = vadd.f32 %v4198, %v4290
    %v4309 = vadd.f32 %v4199, %v4295
    %v4310 = vadd.f32 %v4200, %v4300
    %v4311 = vadd.f32 %v4201, %v4305
    %v4312 = vld [vmem:[#allocation3 + $0x4] sm:$0xff]
    %v4313 = vld [vmem:[#allocation3 + $0xc] sm:$0xff]
    %v4314 = vld [vmem:[#allocation3 + $0x1c] sm:$0xff]
    %v4315 = vld [vmem:[#allocation3 + $0x24] sm:$0xff]
    %s4316 = scalar_lea.vmem %s3, 128
    %v4317 = vld [vmem:[%s4316] sm:$0xff]
    %v4318 = vld [vmem:[%s4316 + $0x8] sm:$0xff]
    %v4319 = vld [vmem:[%s4316 + $0x10] sm:$0xff]
    %v4320 = vld [vmem:[%s4316 + $0x18] sm:$0xff]
    %v4322 = vsel %vm117, %v4312, 0
    %v4325 = vsel %vm117, %v4313, 0
    %v4328 = vsel %vm117, %v4314, 0
    %v4331 = vsel %vm117, %v4315, 0
    %4333 = vmatprep.subr.mxu0 0.0
    %4334 = vmatpush1.msra.mxu0 %v4317
    %4335 = vmatprep.subr.mxu0 0.0
    %4336 = vmatpush1.msra.mxu0 %v4318
    %4337 = vmatprep.subr.mxu0 0.0
    %4338 = vmatpush1.msra.mxu0 %v4319
    %4339 = vmatprep.subr.mxu0 0.0
    %4340 = vmatpush1.msra.mxu0 %v4320
    %4341 = vmatprep.subr.mxu0 0.0
    %4342 = vmatpush1.msra.mxu0 0.0
    %4343 = vmatprep.subr.mxu0 0.0
    %4344 = vmatpush1.msra.mxu0 0.0
    %4345 = vmatprep.subr.mxu0 0.0
    %4346 = vmatpush1.msra.mxu0 0.0
    %4347 = vmatprep.subr.mxu0 0.0
    %4348 = vmatpush1.msra.mxu0 0.0
    %4349 = vmatprep.subr.mxu0 0.0
    %4350 = vmatpush1.msra.mxu0 0.0
    %4351 = vmatprep.subr.mxu0 0.0
    %4352 = vmatpush1.msra.mxu0 0.0
    %4353 = vmatprep.subr.mxu0 0.0
    %4354 = vmatpush1.msra.mxu0 0.0
    %4355 = vmatprep.subr.mxu0 0.0
    %4356 = vmatpush1.msra.mxu0 0.0
    %4357 = vmatprep.subr.mxu0 0.0
    %4358 = vmatpush1.msra.mxu0 0.0
    %4359 = vmatprep.subr.mxu0 0.0
    %4360 = vmatpush1.msra.mxu0 0.0
    %4361 = vmatprep.subr.mxu0 0.0
    %4362 = vmatpush1.msra.mxu0 0.0
    %4363 = vmatprep.subr.mxu0 0.0
    %4364 = vmatpush1.msra.mxu0 0.0
    %4365 = vmatprep.subr.mxu0 0.0
    %4366 = vmatpush1.msra.mxu0 0.0
    %4367 = vmatprep.subr.mxu0 0.0
    %4368 = vmatpush1.msra.mxu0 0.0
    %4369 = vmatprep.subr.mxu0 0.0
    %4370 = vmatpush1.msra.mxu0 0.0
    %4371 = vmatprep.subr.mxu0 0.0
    %4372 = vmatpush1.msra.mxu0 0.0
    %4373 = vmatprep.subr.mxu0 0.0
    %4374 = vmatpush1.msra.mxu0 0.0
    %4375 = vmatprep.subr.mxu0 0.0
    %4376 = vmatpush1.msra.mxu0 0.0
    %4377 = vmatprep.subr.mxu0 0.0
    %4378 = vmatpush1.msra.mxu0 0.0
    %4379 = vmatprep.subr.mxu0 0.0
    %4380 = vmatpush1.msra.mxu0 0.0
    %4381 = vmatprep.subr.mxu0 0.0
    %4382 = vmatpush1.msra.mxu0 0.0
    %4383 = vmatprep.subr.mxu0 0.0
    %4384 = vmatpush1.msra.mxu0 0.0
    %4385 = vmatprep.subr.mxu0 0.0
    %4386 = vmatpush1.msra.mxu0 0.0
    %4387 = vmatprep.subr.mxu0 0.0
    %4388 = vmatpush1.msra.mxu0 0.0
    %4389 = vmatprep.subr.mxu0 0.0
    %4390 = vmatpush1.msra.mxu0 0.0
    %4391 = vmatprep.subr.mxu0 0.0
    %4392 = vmatpush1.msra.mxu0 0.0
    %4393 = vmatprep.subr.mxu0 0.0
    %4394 = vmatpush1.msra.mxu0 0.0
    %4395 = vmatprep.subr.mxu0 0.0
    %4396 = vmatpush1.msra.mxu0 0.0
    %4397 = vmatprep.mubr.f32.mxu0 0.0
    %4398 = vmatmul.mubr.f32.gmra.mrb[0].mxu0 %v4322
    %v4399 = vpop.f32.mrb[0].mxu0
    %v4400 = vadd.f32 0.0, %v4399
    %v4401 = vpop.f32.mrb[0].mxu0
    %4402 = vmatprep.mubr.f32.mxu0 0.0
    %4403 = vmatmul.mubr.f32.gmra.mrb[0].mxu0 %v4325
    %v4404 = vpop.f32.mrb[0].mxu0
    %v4405 = vadd.f32 0.0, %v4404
    %v4406 = vpop.f32.mrb[0].mxu0
    %4407 = vmatprep.mubr.f32.mxu0 0.0
    %4408 = vmatmul.mubr.f32.gmra.mrb[0].mxu0 %v4328
    %v4409 = vpop.f32.mrb[0].mxu0
    %v4410 = vadd.f32 0.0, %v4409
    %v4411 = vpop.f32.mrb[0].mxu0
    %4412 = vmatprep.mubr.f32.mxu0 0.0
    %4413 = vmatmul.mubr.f32.gmra.mrb[0].mxu0 %v4331
    %v4414 = vpop.f32.mrb[0].mxu0
    %v4415 = vadd.f32 0.0, %v4414
    %v4416 = vpop.f32.mrb[0].mxu0
    %4417 = vdwg.mxu0
    %v4418 = vadd.f32 %v4308, %v4400
    %v4419 = vadd.f32 %v4309, %v4405
    %v4420 = vadd.f32 %v4310, %v4410
    %v4421 = vadd.f32 %v4311, %v4415
    %v4422 = vxor.u32 %v4418, 2147483648
    %v4423 = vxor.u32 %v4419, 2147483648
    %v4424 = vxor.u32 %v4420, 2147483648
    %v4425 = vxor.u32 %v4421, 2147483648
    %v4426 = vmul.f32 %v4422, 1.442695
    %v4427 = vpow.pop %v4426
    %v4428 = vmul.f32 %v4423, 1.442695
    %v4429 = vpow.pop %v4428
    %v4430 = vmul.f32 %v4424, 1.442695
    %v4431 = vpow.pop %v4430
    %v4432 = vmul.f32 %v4425, 1.442695
    %v4433 = vpow.pop %v4432
    %v4434 = vadd.f32 %v4427, 1.0
    %v4435 = vadd.f32 %v4429, 1.0
    %v4436 = vadd.f32 %v4431, 1.0
    %v4437 = vadd.f32 %v4433, 1.0
    %v4438 = vrcp.pop %v4434
    %v4439 = vmul.f32 1.0, %v4438
    %v4440 = vrcp.pop %v4435
    %v4441 = vmul.f32 1.0, %v4440
    %v4442 = vrcp.pop %v4436
    %v4443 = vmul.f32 1.0, %v4442
    %v4444 = vrcp.pop %v4437
    %v4445 = vmul.f32 1.0, %v4444
    %v4446 = vld [vmem:[%s8] sm:$0xff]
    %v4447 = vld [vmem:[%s8 + $0x8] sm:$0xff]
    %v4448 = vld [vmem:[%s8 + $0x10] sm:$0xff]
    %v4449 = vld [vmem:[%s8 + $0x18] sm:$0xff]
    %v4451 = vsel %vm2641, %v4439, 0
    %v4454 = vsel %vm2641, %v4441, 0
    %v4457 = vsel %vm2641, %v4443, 0
    %v4460 = vsel %vm2641, %v4445, 0
    %4462 = vmatprep.subr.mxu0 %v4447
    %4463 = vmatpush1.msra.mxu0 %v4446
    %4464 = vmatprep.subr.mxu0 %v4449
    %4465 = vmatpush1.msra.mxu0 %v4448
    %4466 = vmatprep.subr.mxu0 0.0
    %4467 = vmatpush1.msra.mxu0 0.0
    %4468 = vmatprep.subr.mxu0 0.0
    %4469 = vmatpush1.msra.mxu0 0.0
    %4470 = vmatprep.subr.mxu0 0.0
    %4471 = vmatpush1.msra.mxu0 0.0
    %4472 = vmatprep.subr.mxu0 0.0
    %4473 = vmatpush1.msra.mxu0 0.0
    %4474 = vmatprep.subr.mxu0 0.0
    %4475 = vmatpush1.msra.mxu0 0.0
    %4476 = vmatprep.subr.mxu0 0.0
    %4477 = vmatpush1.msra.mxu0 0.0
    %4478 = vmatprep.subr.mxu0 0.0
    %4479 = vmatpush1.msra.mxu0 0.0
    %4480 = vmatprep.subr.mxu0 0.0
    %4481 = vmatpush1.msra.mxu0 0.0
    %4482 = vmatprep.subr.mxu0 0.0
    %4483 = vmatpush1.msra.mxu0 0.0
    %4484 = vmatprep.subr.mxu0 0.0
    %4485 = vmatpush1.msra.mxu0 0.0
    %4486 = vmatprep.subr.mxu0 0.0
    %4487 = vmatpush1.msra.mxu0 0.0
    %4488 = vmatprep.subr.mxu0 0.0
    %4489 = vmatpush1.msra.mxu0 0.0
    %4490 = vmatprep.subr.mxu0 0.0
    %4491 = vmatpush1.msra.mxu0 0.0
    %4492 = vmatprep.subr.mxu0 0.0
    %4493 = vmatpush1.msra.mxu0 0.0
    %4494 = vmatprep.subr.mxu0 0.0
    %4495 = vmatpush1.msra.mxu0 0.0
    %4496 = vmatprep.subr.mxu0 0.0
    %4497 = vmatpush1.msra.mxu0 0.0
    %4498 = vmatprep.subr.mxu0 0.0
    %4499 = vmatpush1.msra.mxu0 0.0
    %4500 = vmatprep.subr.mxu0 0.0
    %4501 = vmatpush1.msra.mxu0 0.0
    %4502 = vmatprep.subr.mxu0 0.0
    %4503 = vmatpush1.msra.mxu0 0.0
    %4504 = vmatprep.subr.mxu0 0.0
    %4505 = vmatpush1.msra.mxu0 0.0
    %4506 = vmatprep.subr.mxu0 0.0
    %4507 = vmatpush1.msra.mxu0 0.0
    %4508 = vmatprep.subr.mxu0 0.0
    %4509 = vmatpush1.msra.mxu0 0.0
    %4510 = vmatprep.subr.mxu0 0.0
    %4511 = vmatpush1.msra.mxu0 0.0
    %4512 = vmatprep.subr.mxu0 0.0
    %4513 = vmatpush1.msra.mxu0 0.0
    %4514 = vmatprep.subr.mxu0 0.0
    %4515 = vmatpush1.msra.mxu0 0.0
    %4516 = vmatprep.subr.mxu0 0.0
    %4517 = vmatpush1.msra.mxu0 0.0
    %4518 = vmatprep.subr.mxu0 0.0
    %4519 = vmatpush1.msra.mxu0 0.0
    %4520 = vmatprep.subr.mxu0 0.0
    %4521 = vmatpush1.msra.mxu0 0.0
    %4522 = vmatprep.subr.mxu0 0.0
    %4523 = vmatpush1.msra.mxu0 0.0
    %4524 = vmatprep.subr.mxu0 0.0
    %4525 = vmatpush1.msra.mxu0 0.0
    %4526 = vmatprep.mubr.f32.mxu0 0.0
    %4527 = vmatmul.mubr.f32.gmra.mrb[0].mxu0 %v4451
    %v4528 = vpop.f32.mrb[0].mxu0
    %v4529 = vadd.f32 0.0, %v4528
    %v4530 = vpop.f32.mrb[0].mxu0
    %v4531 = vadd.f32 0.0, %v4530
    %4532 = vmatprep.mubr.f32.mxu0 0.0
    %4533 = vmatmul.mubr.f32.gmra.mrb[0].mxu0 %v4454
    %v4534 = vpop.f32.mrb[0].mxu0
    %v4535 = vadd.f32 0.0, %v4534
    %v4536 = vpop.f32.mrb[0].mxu0
    %v4537 = vadd.f32 0.0, %v4536
    %4538 = vmatprep.mubr.f32.mxu0 0.0
    %4539 = vmatmul.mubr.f32.gmra.mrb[0].mxu0 %v4457
    %v4540 = vpop.f32.mrb[0].mxu0
    %v4541 = vadd.f32 0.0, %v4540
    %v4542 = vpop.f32.mrb[0].mxu0
    %v4543 = vadd.f32 0.0, %v4542
    %4544 = vmatprep.mubr.f32.mxu0 0.0
    %4545 = vmatmul.mubr.f32.gmra.mrb[0].mxu0 %v4460
    %v4546 = vpop.f32.mrb[0].mxu0
    %v4547 = vadd.f32 0.0, %v4546
    %v4548 = vpop.f32.mrb[0].mxu0
    %v4549 = vadd.f32 0.0, %v4548
    %4550 = vdwg.mxu0
    %v4551 = vadd.f32 %v1369, %v1371
    %v4552 = vrot.slane %v4551, 4
    %v4553 = vadd.f32 %v4551, %v4552
    %v4554 = vrot.slane %v4553, 2
    %v4555 = vadd.f32 %v4553, %v4554
    %v4556 = vrot.slane %v4555, 1
    %v4557 = vadd.f32 %v4555, %v4556
    %v4558 = vadd.f32 %v1370, %v1372
    %v4559 = vrot.slane %v4558, 4
    %v4560 = vadd.f32 %v4558, %v4559
    %v4561 = vrot.slane %v4560, 2
    %v4562 = vadd.f32 %v4560, %v4561
    %v4563 = vrot.slane %v4562, 1
    %v4564 = vadd.f32 %v4562, %v4563
    %v4565 = vadd.f32 %v1373, %v1375
    %v4566 = vrot.slane %v4565, 4
    %v4567 = vadd.f32 %v4565, %v4566
    %v4568 = vrot.slane %v4567, 2
    %v4569 = vadd.f32 %v4567, %v4568
    %v4570 = vrot.slane %v4569, 1
    %v4571 = vadd.f32 %v4569, %v4570
    %v4572 = vadd.f32 %v1374, %v1376
    %v4573 = vrot.slane %v4572, 4
    %v4574 = vadd.f32 %v4572, %v4573
    %v4575 = vrot.slane %v4574, 2
    %v4576 = vadd.f32 %v4574, %v4575
    %v4577 = vrot.slane %v4576, 1
    %v4578 = vadd.f32 %v4576, %v4577
    %v4579 = vld [vmem:[%s10] sm:$0xff]
    %v4580 = vld [vmem:[%s10 + $0x8] sm:$0xff]
    %v4581 = vld [vmem:[%s10 + $0x10] sm:$0xff]
    %v4582 = vld [vmem:[%s10 + $0x18] sm:$0xff]
    %v4583 = vld [vmem:[%s10 + $0x20] sm:$0xff]
    %v4584 = vld [vmem:[%s10 + $0x28] sm:$0xff]
    %v4585 = vld [vmem:[%s10 + $0x30] sm:$0xff]
    %v4586 = vld [vmem:[%s10 + $0x38] sm:$0xff]
    %v4587 = vld [vmem:[%s10 + $0x40] sm:$0xff]
    %v4588 = vld [vmem:[%s10 + $0x48] sm:$0xff]
    %v4589 = vld [vmem:[%s10 + $0x50] sm:$0xff]
    %v4590 = vld [vmem:[%s10 + $0x58] sm:$0xff]
    %v4591 = vld [vmem:[%s10 + $0x60] sm:$0xff]
    %v4592 = vld [vmem:[%s10 + $0x68] sm:$0xff]
    %v4593 = vld [vmem:[%s10 + $0x70] sm:$0xff]
    %v4594 = vld [vmem:[%s10 + $0x78] sm:$0xff]
    %v4595 = vld [vmem:[%s10 + $0x80] sm:$0xff]
    %v4596 = vld [vmem:[%s10 + $0x88] sm:$0xff]
    %v4597 = vld [vmem:[%s10 + $0x90] sm:$0xff]
    %v4598 = vld [vmem:[%s10 + $0x98] sm:$0xff]
    %v4599 = vld [vmem:[%s10 + $0xa0] sm:$0xff]
    %v4600 = vld [vmem:[%s10 + $0xa8] sm:$0xff]
    %v4601 = vld [vmem:[%s10 + $0xb0] sm:$0xff]
    %v4602 = vld [vmem:[%s10 + $0xb8] sm:$0xff]
    %v4603 = vld [vmem:[%s10 + $0xc0] sm:$0xff]
    %v4604 = vld [vmem:[%s10 + $0xc8] sm:$0xff]
    %v4605 = vld [vmem:[%s10 + $0xd0] sm:$0xff]
    %v4606 = vld [vmem:[%s10 + $0xd8] sm:$0xff]
    %v4607 = vld [vmem:[%s10 + $0xe0] sm:$0xff]
    %v4608 = vld [vmem:[%s10 + $0xe8] sm:$0xff]
    %v4609 = vld [vmem:[%s10 + $0xf0] sm:$0xff]
    %v4610 = vld [vmem:[%s10 + $0xf8] sm:$0xff]
    %v4615 = vsel %vm3447, %v4571, %v4557
    %v4616 = vsel %vm3447, %v4578, %v4564
    %4619 = vmatprep.subr.mxu0 0.0
    %4620 = vmatpush1.msra.mxu0 %v4579
    %4621 = vmatprep.subr.mxu0 0.0
    %4622 = vmatpush1.msra.mxu0 %v4580
    %4623 = vmatprep.subr.mxu0 0.0
    %4624 = vmatpush1.msra.mxu0 %v4581
    %4625 = vmatprep.subr.mxu0 0.0
    %4626 = vmatpush1.msra.mxu0 %v4582
    %4627 = vmatprep.subr.mxu0 0.0
    %4628 = vmatpush1.msra.mxu0 %v4583
    %4629 = vmatprep.subr.mxu0 0.0
    %4630 = vmatpush1.msra.mxu0 %v4584
    %4631 = vmatprep.subr.mxu0 0.0
    %4632 = vmatpush1.msra.mxu0 %v4585
    %4633 = vmatprep.subr.mxu0 0.0
    %4634 = vmatpush1.msra.mxu0 %v4586
    %4635 = vmatprep.subr.mxu0 0.0
    %4636 = vmatpush1.msra.mxu0 %v4587
    %4637 = vmatprep.subr.mxu0 0.0
    %4638 = vmatpush1.msra.mxu0 %v4588
    %4639 = vmatprep.subr.mxu0 0.0
    %4640 = vmatpush1.msra.mxu0 %v4589
    %4641 = vmatprep.subr.mxu0 0.0
    %4642 = vmatpush1.msra.mxu0 %v4590
    %4643 = vmatprep.subr.mxu0 0.0
    %4644 = vmatpush1.msra.mxu0 %v4591
    %4645 = vmatprep.subr.mxu0 0.0
    %4646 = vmatpush1.msra.mxu0 %v4592
    %4647 = vmatprep.subr.mxu0 0.0
    %4648 = vmatpush1.msra.mxu0 %v4593
    %4649 = vmatprep.subr.mxu0 0.0
    %4650 = vmatpush1.msra.mxu0 %v4594
    %4651 = vmatprep.subr.mxu0 0.0
    %4652 = vmatpush1.msra.mxu0 %v4595
    %4653 = vmatprep.subr.mxu0 0.0
    %4654 = vmatpush1.msra.mxu0 %v4596
    %4655 = vmatprep.subr.mxu0 0.0
    %4656 = vmatpush1.msra.mxu0 %v4597
    %4657 = vmatprep.subr.mxu0 0.0
    %4658 = vmatpush1.msra.mxu0 %v4598
    %4659 = vmatprep.subr.mxu0 0.0
    %4660 = vmatpush1.msra.mxu0 %v4599
    %4661 = vmatprep.subr.mxu0 0.0
    %4662 = vmatpush1.msra.mxu0 %v4600
    %4663 = vmatprep.subr.mxu0 0.0
    %4664 = vmatpush1.msra.mxu0 %v4601
    %4665 = vmatprep.subr.mxu0 0.0
    %4666 = vmatpush1.msra.mxu0 %v4602
    %4667 = vmatprep.subr.mxu0 0.0
    %4668 = vmatpush1.msra.mxu0 %v4603
    %4669 = vmatprep.subr.mxu0 0.0
    %4670 = vmatpush1.msra.mxu0 %v4604
    %4671 = vmatprep.subr.mxu0 0.0
    %4672 = vmatpush1.msra.mxu0 %v4605
    %4673 = vmatprep.subr.mxu0 0.0
    %4674 = vmatpush1.msra.mxu0 %v4606
    %4675 = vmatprep.subr.mxu0 0.0
    %4676 = vmatpush1.msra.mxu0 %v4607
    %4677 = vmatprep.subr.mxu0 0.0
    %4678 = vmatpush1.msra.mxu0 %v4608
    %4679 = vmatprep.subr.mxu0 0.0
    %4680 = vmatpush1.msra.mxu0 %v4609
    %4681 = vmatprep.subr.mxu0 0.0
    %4682 = vmatpush1.msra.mxu0 %v4610
    %4683 = vmatprep.mubr.f32.mxu0 %v4616
    %4684 = vmatmul.mubr.f32.gmra.mrb[0].mxu0 %v4615
    %v4685 = vpop.f32.mrb[0].mxu0
    %v4686 = vadd.f32 0.0, %v4685
    %v4687 = vpop.f32.mrb[0].mxu0
    %4688 = vdwg.mxu0
    %v4689 = vld [vmem:[%s4] sm:$0xff]
    %v4690 = vld [vmem:[%s4 + $0x8] sm:$0xff]
    %v4692 = vsel %vm2641, %v4686, 0
    %4694 = vmatprep.subr.mxu0 0.0
    %4695 = vmatpush1.msra.mxu0 %v4689
    %4696 = vmatprep.subr.mxu0 0.0
    %4697 = vmatpush1.msra.mxu0 %v4690
    %4698 = vmatprep.subr.mxu0 0.0
    %4699 = vmatpush1.msra.mxu0 0.0
    %4700 = vmatprep.subr.mxu0 0.0
    %4701 = vmatpush1.msra.mxu0 0.0
    %4702 = vmatprep.subr.mxu0 0.0
    %4703 = vmatpush1.msra.mxu0 0.0
    %4704 = vmatprep.subr.mxu0 0.0
    %4705 = vmatpush1.msra.mxu0 0.0
    %4706 = vmatprep.subr.mxu0 0.0
    %4707 = vmatpush1.msra.mxu0 0.0
    %4708 = vmatprep.subr.mxu0 0.0
    %4709 = vmatpush1.msra.mxu0 0.0
    %4710 = vmatprep.subr.mxu0 0.0
    %4711 = vmatpush1.msra.mxu0 0.0
    %4712 = vmatprep.subr.mxu0 0.0
    %4713 = vmatpush1.msra.mxu0 0.0
    %4714 = vmatprep.subr.mxu0 0.0
    %4715 = vmatpush1.msra.mxu0 0.0
    %4716 = vmatprep.subr.mxu0 0.0
    %4717 = vmatpush1.msra.mxu0 0.0
    %4718 = vmatprep.subr.mxu0 0.0
    %4719 = vmatpush1.msra.mxu0 0.0
    %4720 = vmatprep.subr.mxu0 0.0
    %4721 = vmatpush1.msra.mxu0 0.0
    %4722 = vmatprep.subr.mxu0 0.0
    %4723 = vmatpush1.msra.mxu0 0.0
    %4724 = vmatprep.subr.mxu0 0.0
    %4725 = vmatpush1.msra.mxu0 0.0
    %4726 = vmatprep.subr.mxu0 0.0
    %4727 = vmatpush1.msra.mxu0 0.0
    %4728 = vmatprep.subr.mxu0 0.0
    %4729 = vmatpush1.msra.mxu0 0.0
    %4730 = vmatprep.subr.mxu0 0.0
    %4731 = vmatpush1.msra.mxu0 0.0
    %4732 = vmatprep.subr.mxu0 0.0
    %4733 = vmatpush1.msra.mxu0 0.0
    %4734 = vmatprep.subr.mxu0 0.0
    %4735 = vmatpush1.msra.mxu0 0.0
    %4736 = vmatprep.subr.mxu0 0.0
    %4737 = vmatpush1.msra.mxu0 0.0
    %4738 = vmatprep.subr.mxu0 0.0
    %4739 = vmatpush1.msra.mxu0 0.0
    %4740 = vmatprep.subr.mxu0 0.0
    %4741 = vmatpush1.msra.mxu0 0.0
    %4742 = vmatprep.subr.mxu0 0.0
    %4743 = vmatpush1.msra.mxu0 0.0
    %4744 = vmatprep.subr.mxu0 0.0
    %4745 = vmatpush1.msra.mxu0 0.0
    %4746 = vmatprep.subr.mxu0 0.0
    %4747 = vmatpush1.msra.mxu0 0.0
    %4748 = vmatprep.subr.mxu0 0.0
    %4749 = vmatpush1.msra.mxu0 0.0
    %4750 = vmatprep.subr.mxu0 0.0
    %4751 = vmatpush1.msra.mxu0 0.0
    %4752 = vmatprep.subr.mxu0 0.0
    %4753 = vmatpush1.msra.mxu0 0.0
    %4754 = vmatprep.subr.mxu0 0.0
    %4755 = vmatpush1.msra.mxu0 0.0
    %4756 = vmatprep.subr.mxu0 0.0
    %4757 = vmatpush1.msra.mxu0 0.0
    %4758 = vmatprep.mubr.f32.mxu0 0.0
    %4759 = vmatmul.mubr.f32.gmra.mrb[0].mxu0 %v4692
    %v4760 = vpop.f32.mrb[0].mxu0
    %v4761 = vadd.f32 0.0, %v4760
    %v4762 = vpop.f32.mrb[0].mxu0
    %4763 = vdwg.mxu0
    %v4764 = vmax.f32 %v4761, 0.0
    %v4765 = vld [vmem:[#allocation10] sm:$0x3]
    %vm4766 = vcmask 15360
    %v4768 = vsel %vm4766, %v4764, 0
    %vm4770 = vcmask 1041408
    %v4772 = vsel %vm4770, %v4765, 0
    %4774 = vmatprep.subr.mxu0 0.0
    %4775 = vmatpush1.msra.mxu0 %v4772
    %4776 = vmatprep.subr.mxu0 0.0
    %4777 = vmatpush1.msra.mxu0 0.0
    %4778 = vmatprep.subr.mxu0 0.0
    %4779 = vmatpush1.msra.mxu0 0.0
    %4780 = vmatprep.subr.mxu0 0.0
    %4781 = vmatpush1.msra.mxu0 0.0
    %4782 = vmatprep.subr.mxu0 0.0
    %4783 = vmatpush1.msra.mxu0 0.0
    %4784 = vmatprep.subr.mxu0 0.0
    %4785 = vmatpush1.msra.mxu0 0.0
    %4786 = vmatprep.subr.mxu0 0.0
    %4787 = vmatpush1.msra.mxu0 0.0
    %4788 = vmatprep.subr.mxu0 0.0
    %4789 = vmatpush1.msra.mxu0 0.0
    %4790 = vmatprep.subr.mxu0 0.0
    %4791 = vmatpush1.msra.mxu0 0.0
    %4792 = vmatprep.subr.mxu0 0.0
    %4793 = vmatpush1.msra.mxu0 0.0
    %4794 = vmatprep.subr.mxu0 0.0
    %4795 = vmatpush1.msra.mxu0 0.0
    %4796 = vmatprep.subr.mxu0 0.0
    %4797 = vmatpush1.msra.mxu0 0.0
    %4798 = vmatprep.subr.mxu0 0.0
    %4799 = vmatpush1.msra.mxu0 0.0
    %4800 = vmatprep.subr.mxu0 0.0
    %4801 = vmatpush1.msra.mxu0 0.0
    %4802 = vmatprep.subr.mxu0 0.0
    %4803 = vmatpush1.msra.mxu0 0.0
    %4804 = vmatprep.subr.mxu0 0.0
    %4805 = vmatpush1.msra.mxu0 0.0
    %4806 = vmatprep.subr.mxu0 0.0
    %4807 = vmatpush1.msra.mxu0 0.0
    %4808 = vmatprep.subr.mxu0 0.0
    %4809 = vmatpush1.msra.mxu0 0.0
    %4810 = vmatprep.subr.mxu0 0.0
    %4811 = vmatpush1.msra.mxu0 0.0
    %4812 = vmatprep.subr.mxu0 0.0
    %4813 = vmatpush1.msra.mxu0 0.0
    %4814 = vmatprep.subr.mxu0 0.0
    %4815 = vmatpush1.msra.mxu0 0.0
    %4816 = vmatprep.subr.mxu0 0.0
    %4817 = vmatpush1.msra.mxu0 0.0
    %4818 = vmatprep.subr.mxu0 0.0
    %4819 = vmatpush1.msra.mxu0 0.0
    %4820 = vmatprep.subr.mxu0 0.0
    %4821 = vmatpush1.msra.mxu0 0.0
    %4822 = vmatprep.subr.mxu0 0.0
    %4823 = vmatpush1.msra.mxu0 0.0
    %4824 = vmatprep.subr.mxu0 0.0
    %4825 = vmatpush1.msra.mxu0 0.0
    %4826 = vmatprep.subr.mxu0 0.0
    %4827 = vmatpush1.msra.mxu0 0.0
    %4828 = vmatprep.subr.mxu0 0.0
    %4829 = vmatpush1.msra.mxu0 0.0
    %4830 = vmatprep.subr.mxu0 0.0
    %4831 = vmatpush1.msra.mxu0 0.0
    %4832 = vmatprep.subr.mxu0 0.0
    %4833 = vmatpush1.msra.mxu0 0.0
    %4834 = vmatprep.subr.mxu0 0.0
    %4835 = vmatpush1.msra.mxu0 0.0
    %4836 = vmatprep.subr.mxu0 0.0
    %4837 = vmatpush1.msra.mxu0 0.0
    %4838 = vmatprep.mubr.f32.mxu0 0.0
    %4839 = vmatmul.mubr.f32.gmra.mrb[0].mxu0 %v4768
    %v4840 = vpop.f32.mrb[0].mxu0
    %v4841 = vadd.f32 0.0, %v4840
    %v4842 = vpop.f32.mrb[0].mxu0
    %4843 = vdwg.mxu0
    %v4844 = vxor.u32 %v4841, 2147483648
    %v4845 = vmul.f32 %v4844, 1.442695
    %v4846 = vpow.pop %v4845
    %v4847 = vadd.f32 %v4846, 1.0
    %v4848 = vrcp.pop %v4847
    %v4849 = vmul.f32 1.0, %v4848
    %v4850 = vld [vmem:[%s9] sm:$0xff]
    %v4851 = vld [vmem:[%s9 + $0x8] sm:$0xff]
    %v4852 = vld [vmem:[%s9 + $0x10] sm:$0xff]
    %v4853 = vld [vmem:[%s9 + $0x18] sm:$0xff]
    %v4855 = vsel %vm2641, %v4849, 0
    %4857 = vmatprep.subr.mxu0 %v4851
    %4858 = vmatpush1.msra.mxu0 %v4850
    %4859 = vmatprep.subr.mxu0 %v4853
    %4860 = vmatpush1.msra.mxu0 %v4852
    %4861 = vmatprep.subr.mxu0 0.0
    %4862 = vmatpush1.msra.mxu0 0.0
    %4863 = vmatprep.subr.mxu0 0.0
    %4864 = vmatpush1.msra.mxu0 0.0
    %4865 = vmatprep.subr.mxu0 0.0
    %4866 = vmatpush1.msra.mxu0 0.0
    %4867 = vmatprep.subr.mxu0 0.0
    %4868 = vmatpush1.msra.mxu0 0.0
    %4869 = vmatprep.subr.mxu0 0.0
    %4870 = vmatpush1.msra.mxu0 0.0
    %4871 = vmatprep.subr.mxu0 0.0
    %4872 = vmatpush1.msra.mxu0 0.0
    %4873 = vmatprep.subr.mxu0 0.0
    %4874 = vmatpush1.msra.mxu0 0.0
    %4875 = vmatprep.subr.mxu0 0.0
    %4876 = vmatpush1.msra.mxu0 0.0
    %4877 = vmatprep.subr.mxu0 0.0
    %4878 = vmatpush1.msra.mxu0 0.0
    %4879 = vmatprep.subr.mxu0 0.0
    %4880 = vmatpush1.msra.mxu0 0.0
    %4881 = vmatprep.subr.mxu0 0.0
    %4882 = vmatpush1.msra.mxu0 0.0
    %4883 = vmatprep.subr.mxu0 0.0
    %4884 = vmatpush1.msra.mxu0 0.0
    %4885 = vmatprep.subr.mxu0 0.0
    %4886 = vmatpush1.msra.mxu0 0.0
    %4887 = vmatprep.subr.mxu0 0.0
    %4888 = vmatpush1.msra.mxu0 0.0
    %4889 = vmatprep.subr.mxu0 0.0
    %4890 = vmatpush1.msra.mxu0 0.0
    %4891 = vmatprep.subr.mxu0 0.0
    %4892 = vmatpush1.msra.mxu0 0.0
    %4893 = vmatprep.subr.mxu0 0.0
    %4894 = vmatpush1.msra.mxu0 0.0
    %4895 = vmatprep.subr.mxu0 0.0
    %4896 = vmatpush1.msra.mxu0 0.0
    %4897 = vmatprep.subr.mxu0 0.0
    %4898 = vmatpush1.msra.mxu0 0.0
    %4899 = vmatprep.subr.mxu0 0.0
    %4900 = vmatpush1.msra.mxu0 0.0
    %4901 = vmatprep.subr.mxu0 0.0
    %4902 = vmatpush1.msra.mxu0 0.0
    %4903 = vmatprep.subr.mxu0 0.0
    %4904 = vmatpush1.msra.mxu0 0.0
    %4905 = vmatprep.subr.mxu0 0.0
    %4906 = vmatpush1.msra.mxu0 0.0
    %4907 = vmatprep.subr.mxu0 0.0
    %4908 = vmatpush1.msra.mxu0 0.0
    %4909 = vmatprep.subr.mxu0 0.0
    %4910 = vmatpush1.msra.mxu0 0.0
    %4911 = vmatprep.subr.mxu0 0.0
    %4912 = vmatpush1.msra.mxu0 0.0
    %4913 = vmatprep.subr.mxu0 0.0
    %4914 = vmatpush1.msra.mxu0 0.0
    %4915 = vmatprep.subr.mxu0 0.0
    %4916 = vmatpush1.msra.mxu0 0.0
    %4917 = vmatprep.subr.mxu0 0.0
    %4918 = vmatpush1.msra.mxu0 0.0
    %4919 = vmatprep.subr.mxu0 0.0
    %4920 = vmatpush1.msra.mxu0 0.0
    %4921 = vmatprep.mubr.f32.mxu0 0.0
    %4922 = vmatmul.mubr.f32.gmra.mrb[0].mxu0 %v4855
    %v4923 = vpop.f32.mrb[0].mxu0
    %v4924 = vadd.f32 0.0, %v4923
    %v4925 = vpop.f32.mrb[0].mxu0
    %v4926 = vadd.f32 0.0, %v4925
    %4927 = vdwg.mxu0
    %v4930 = vcombine.low %v4924, %v4926
    %v4932 = vunpack.c.l.s4 1966171168
    %v4933 = vunpack.c.0.s8 %v4932
    %v4934 = vlaneseq
    %v4935 = vshrl.u32 %v4934, 7
    %v4936 = vsub.s32 %v4933, %v4935
    %v4937 = vrot.slane %v4930, %v4936
    %v4938 = vcombine.high %v4937, %v4937
    %v4940 = vunpack.c.l.s4 1966171168
    %v4941 = vunpack.c.0.s8 %v4940
    %v4942 = vlaneseq
    %v4943 = vshrl.u32 %v4942, 7
    %v4944 = vsub.s32 %v4941, %v4943
    %v4945 = vrot.slane %v4937, %v4944
    %v4947 = vunpack.c.l.s4 1966171168
    %v4948 = vunpack.c.0.s8 %v4947
    %v4949 = vlaneseq
    %v4950 = vshrl.u32 %v4949, 7
    %v4951 = vsub.s32 %v4948, %v4950
    %v4952 = vrot.slane %v4938, %v4951
    %v4953 = vlaneseq
    %v4954 = vshrl.u32 %v4953, 7
    %v4955 = vsub.s32 0, %v4954
    %v4956 = vrot.slane %v4945, %v4955
    %v4957 = vlaneseq
    %v4958 = vshrl.u32 %v4957, 7
    %v4959 = vsub.s32 1, %v4958
    %v4960 = vrot.slane %v4945, %v4959
    %v4961 = vlaneseq
    %v4962 = vshrl.u32 %v4961, 7
    %v4963 = vsub.s32 0, %v4962
    %v4964 = vrot.slane %v4952, %v4963
    %v4965 = vlaneseq
    %v4966 = vshrl.u32 %v4965, 7
    %v4967 = vsub.s32 1, %v4966
    %v4968 = vrot.slane %v4952, %v4967
    %v4973 = vmul.f32 %v1369, %v4529
    %v4974 = vmul.f32 %v1370, %v4531
    %v4975 = vmul.f32 %v1371, %v4535
    %v4976 = vmul.f32 %v1372, %v4537
    %v4977 = vmul.f32 %v1373, %v4541
    %v4978 = vmul.f32 %v1374, %v4543
    %v4979 = vmul.f32 %v1375, %v4547
    %v4980 = vmul.f32 %v1376, %v4549
    %v4981 = vld [vmem:[%s6] sm:$0xff]
    %v4982 = vld [vmem:[%s6 + $0x8] sm:$0xff]
    %v4983 = vld [vmem:[%s6 + $0x10] sm:$0xff]
    %v4984 = vld [vmem:[%s6 + $0x18] sm:$0xff]
    %v4985 = vld [vmem:[%s6 + $0x20] sm:$0xff]
    %v4986 = vld [vmem:[%s6 + $0x28] sm:$0xff]
    %v4987 = vld [vmem:[%s6 + $0x30] sm:$0xff]
    %v4988 = vld [vmem:[%s6 + $0x38] sm:$0xff]
    %v4989 = vld [vmem:[%s6 + $0x40] sm:$0xff]
    %v4990 = vld [vmem:[%s6 + $0x48] sm:$0xff]
    %v4991 = vld [vmem:[%s6 + $0x50] sm:$0xff]
    %v4992 = vld [vmem:[%s6 + $0x58] sm:$0xff]
    %v4993 = vld [vmem:[%s6 + $0x60] sm:$0xff]
    %v4994 = vld [vmem:[%s6 + $0x68] sm:$0xff]
    %v4995 = vld [vmem:[%s6 + $0x70] sm:$0xff]
    %v4996 = vld [vmem:[%s6 + $0x78] sm:$0xff]
    %v4997 = vld [vmem:[%s6 + $0x80] sm:$0xff]
    %v4998 = vld [vmem:[%s6 + $0x88] sm:$0xff]
    %v4999 = vld [vmem:[%s6 + $0x90] sm:$0xff]
    %v5000 = vld [vmem:[%s6 + $0x98] sm:$0xff]
    %v5001 = vld [vmem:[%s6 + $0xa0] sm:$0xff]
    %v5002 = vld [vmem:[%s6 + $0xa8] sm:$0xff]
    %v5003 = vld [vmem:[%s6 + $0xb0] sm:$0xff]
    %v5004 = vld [vmem:[%s6 + $0xb8] sm:$0xff]
    %v5005 = vld [vmem:[%s6 + $0xc0] sm:$0xff]
    %v5006 = vld [vmem:[%s6 + $0xc8] sm:$0xff]
    %v5007 = vld [vmem:[%s6 + $0xd0] sm:$0xff]
    %v5008 = vld [vmem:[%s6 + $0xd8] sm:$0xff]
    %v5009 = vld [vmem:[%s6 + $0xe0] sm:$0xff]
    %v5010 = vld [vmem:[%s6 + $0xe8] sm:$0xff]
    %v5011 = vld [vmem:[%s6 + $0xf0] sm:$0xff]
    %v5012 = vld [vmem:[%s6 + $0xf8] sm:$0xff]
    %v5013 = vld [vmem:[%s6 + $0x100] sm:$0xff]
    %v5014 = vld [vmem:[%s6 + $0x108] sm:$0xff]
    %v5015 = vld [vmem:[%s6 + $0x110] sm:$0xff]
    %v5016 = vld [vmem:[%s6 + $0x118] sm:$0xff]
    %v5017 = vld [vmem:[%s6 + $0x120] sm:$0xff]
    %v5018 = vld [vmem:[%s6 + $0x128] sm:$0xff]
    %v5019 = vld [vmem:[%s6 + $0x130] sm:$0xff]
    %v5020 = vld [vmem:[%s6 + $0x138] sm:$0xff]
    %v5021 = vld [vmem:[%s6 + $0x140] sm:$0xff]
    %v5022 = vld [vmem:[%s6 + $0x148] sm:$0xff]
    %v5023 = vld [vmem:[%s6 + $0x150] sm:$0xff]
    %v5024 = vld [vmem:[%s6 + $0x158] sm:$0xff]
    %v5025 = vld [vmem:[%s6 + $0x160] sm:$0xff]
    %v5026 = vld [vmem:[%s6 + $0x168] sm:$0xff]
    %v5027 = vld [vmem:[%s6 + $0x170] sm:$0xff]
    %v5028 = vld [vmem:[%s6 + $0x178] sm:$0xff]
    %v5029 = vld [vmem:[%s6 + $0x180] sm:$0xff]
    %v5030 = vld [vmem:[%s6 + $0x188] sm:$0xff]
    %v5031 = vld [vmem:[%s6 + $0x190] sm:$0xff]
    %v5032 = vld [vmem:[%s6 + $0x198] sm:$0xff]
    %v5033 = vld [vmem:[%s6 + $0x1a0] sm:$0xff]
    %v5034 = vld [vmem:[%s6 + $0x1a8] sm:$0xff]
    %v5035 = vld [vmem:[%s6 + $0x1b0] sm:$0xff]
    %v5036 = vld [vmem:[%s6 + $0x1b8] sm:$0xff]
    %v5037 = vld [vmem:[%s6 + $0x1c0] sm:$0xff]
    %v5038 = vld [vmem:[%s6 + $0x1c8] sm:$0xff]
    %v5039 = vld [vmem:[%s6 + $0x1d0] sm:$0xff]
    %v5040 = vld [vmem:[%s6 + $0x1d8] sm:$0xff]
    %v5041 = vld [vmem:[%s6 + $0x1e0] sm:$0xff]
    %v5042 = vld [vmem:[%s6 + $0x1e8] sm:$0xff]
    %v5043 = vld [vmem:[%s6 + $0x1f0] sm:$0xff]
    %v5044 = vld [vmem:[%s6 + $0x1f8] sm:$0xff]
    %v5045 = vmul.f32 %v1369, %v4956
    %v5046 = vmul.f32 %v1370, %v4960
    %v5047 = vmul.f32 %v1371, %v4956
    %v5048 = vmul.f32 %v1372, %v4960
    %v5049 = vmul.f32 %v1373, %v4964
    %v5050 = vmul.f32 %v1374, %v4968
    %v5051 = vmul.f32 %v1375, %v4964
    %v5052 = vmul.f32 %v1376, %v4968
    %v5053 = vld [vmem:[#allocation12] sm:$0xff]
    %v5054 = vld [vmem:[#allocation12 + $0x8] sm:$0xff]
    %v5055 = vld [vmem:[#allocation12 + $0x10] sm:$0xff]
    %v5056 = vld [vmem:[#allocation12 + $0x18] sm:$0xff]
    %v5057 = vld [vmem:[#allocation12 + $0x20] sm:$0xff]
    %v5058 = vld [vmem:[#allocation12 + $0x28] sm:$0xff]
    %v5059 = vld [vmem:[#allocation12 + $0x30] sm:$0xff]
    %v5060 = vld [vmem:[#allocation12 + $0x38] sm:$0xff]
    %v5061 = vld [vmem:[#allocation12 + $0x40] sm:$0xff]
    %v5062 = vld [vmem:[#allocation12 + $0x48] sm:$0xff]
    %v5063 = vld [vmem:[#allocation12 + $0x50] sm:$0xff]
    %v5064 = vld [vmem:[#allocation12 + $0x58] sm:$0xff]
    %v5065 = vld [vmem:[#allocation12 + $0x60] sm:$0xff]
    %v5066 = vld [vmem:[#allocation12 + $0x68] sm:$0xff]
    %v5067 = vld [vmem:[#allocation12 + $0x70] sm:$0xff]
    %v5068 = vld [vmem:[#allocation12 + $0x78] sm:$0xff]
    %v5069 = vld [vmem:[#allocation12 + $0x80] sm:$0xff]
    %v5070 = vld [vmem:[#allocation12 + $0x88] sm:$0xff]
    %v5071 = vld [vmem:[#allocation12 + $0x90] sm:$0xff]
    %v5072 = vld [vmem:[#allocation12 + $0x98] sm:$0xff]
    %v5073 = vld [vmem:[#allocation12 + $0xa0] sm:$0xff]
    %v5074 = vld [vmem:[#allocation12 + $0xa8] sm:$0xff]
    %v5075 = vld [vmem:[#allocation12 + $0xb0] sm:$0xff]
    %v5076 = vld [vmem:[#allocation12 + $0xb8] sm:$0xff]
    %v5077 = vld [vmem:[#allocation12 + $0xc0] sm:$0xff]
    %v5078 = vld [vmem:[#allocation12 + $0xc8] sm:$0xff]
    %v5079 = vld [vmem:[#allocation12 + $0xd0] sm:$0xff]
    %v5080 = vld [vmem:[#allocation12 + $0xd8] sm:$0xff]
    %v5081 = vld [vmem:[#allocation12 + $0xe0] sm:$0xff]
    %v5082 = vld [vmem:[#allocation12 + $0xe8] sm:$0xff]
    %v5083 = vld [vmem:[#allocation12 + $0xf0] sm:$0xff]
    %v5084 = vld [vmem:[#allocation12 + $0xf8] sm:$0xff]
    %v5085 = vld [vmem:[#allocation12 + $0x100] sm:$0xff]
    %v5086 = vld [vmem:[#allocation12 + $0x108] sm:$0xff]
    %v5087 = vld [vmem:[#allocation12 + $0x110] sm:$0xff]
    %v5088 = vld [vmem:[#allocation12 + $0x118] sm:$0xff]
    %v5089 = vld [vmem:[#allocation12 + $0x120] sm:$0xff]
    %v5090 = vld [vmem:[#allocation12 + $0x128] sm:$0xff]
    %v5091 = vld [vmem:[#allocation12 + $0x130] sm:$0xff]
    %v5092 = vld [vmem:[#allocation12 + $0x138] sm:$0xff]
    %v5093 = vld [vmem:[#allocation12 + $0x140] sm:$0xff]
    %v5094 = vld [vmem:[#allocation12 + $0x148] sm:$0xff]
    %v5095 = vld [vmem:[#allocation12 + $0x150] sm:$0xff]
    %v5096 = vld [vmem:[#allocation12 + $0x158] sm:$0xff]
    %v5097 = vld [vmem:[#allocation12 + $0x160] sm:$0xff]
    %v5098 = vld [vmem:[#allocation12 + $0x168] sm:$0xff]
    %v5099 = vld [vmem:[#allocation12 + $0x170] sm:$0xff]
    %v5100 = vld [vmem:[#allocation12 + $0x178] sm:$0xff]
    %v5101 = vld [vmem:[#allocation12 + $0x180] sm:$0xff]
    %v5102 = vld [vmem:[#allocation12 + $0x188] sm:$0xff]
    %v5103 = vld [vmem:[#allocation12 + $0x190] sm:$0xff]
    %v5104 = vld [vmem:[#allocation12 + $0x198] sm:$0xff]
    %v5105 = vld [vmem:[#allocation12 + $0x1a0] sm:$0xff]
    %v5106 = vld [vmem:[#allocation12 + $0x1a8] sm:$0xff]
    %v5107 = vld [vmem:[#allocation12 + $0x1b0] sm:$0xff]
    %v5108 = vld [vmem:[#allocation12 + $0x1b8] sm:$0xff]
    %v5109 = vld [vmem:[#allocation12 + $0x1c0] sm:$0xff]
    %v5110 = vld [vmem:[#allocation12 + $0x1c8] sm:$0xff]
    %v5111 = vld [vmem:[#allocation12 + $0x1d0] sm:$0xff]
    %v5112 = vld [vmem:[#allocation12 + $0x1d8] sm:$0xff]
    %v5113 = vld [vmem:[#allocation12 + $0x1e0] sm:$0xff]
    %v5114 = vld [vmem:[#allocation12 + $0x1e8] sm:$0xff]
    %v5115 = vld [vmem:[#allocation12 + $0x1f0] sm:$0xff]
    %v5116 = vld [vmem:[#allocation12 + $0x1f8] sm:$0xff]
    %5117 = vmatprep.subr.mxu0 %v5054
    %5118 = vmatpush1.msra.mxu0 %v5053
    %5119 = vmatprep.subr.mxu0 %v5056
    %5120 = vmatpush1.msra.mxu0 %v5055
    %5121 = vmatprep.subr.mxu0 %v5058
    %5122 = vmatpush1.msra.mxu0 %v5057
    %5123 = vmatprep.subr.mxu0 %v5060
    %5124 = vmatpush1.msra.mxu0 %v5059
    %5125 = vmatprep.subr.mxu0 %v5062
    %5126 = vmatpush1.msra.mxu0 %v5061
    %5127 = vmatprep.subr.mxu0 %v5064
    %5128 = vmatpush1.msra.mxu0 %v5063
    %5129 = vmatprep.subr.mxu0 %v5066
    %5130 = vmatpush1.msra.mxu0 %v5065
    %5131 = vmatprep.subr.mxu0 %v5068
    %5132 = vmatpush1.msra.mxu0 %v5067
    %5133 = vmatprep.subr.mxu0 %v5070
    %5134 = vmatpush1.msra.mxu0 %v5069
    %5135 = vmatprep.subr.mxu0 %v5072
    %5136 = vmatpush1.msra.mxu0 %v5071
    %5137 = vmatprep.subr.mxu0 %v5074
    %5138 = vmatpush1.msra.mxu0 %v5073
    %5139 = vmatprep.subr.mxu0 %v5076
    %5140 = vmatpush1.msra.mxu0 %v5075
    %5141 = vmatprep.subr.mxu0 %v5078
    %5142 = vmatpush1.msra.mxu0 %v5077
    %5143 = vmatprep.subr.mxu0 %v5080
    %5144 = vmatpush1.msra.mxu0 %v5079
    %5145 = vmatprep.subr.mxu0 %v5082
    %5146 = vmatpush1.msra.mxu0 %v5081
    %5147 = vmatprep.subr.mxu0 %v5084
    %5148 = vmatpush1.msra.mxu0 %v5083
    %5149 = vmatprep.subr.mxu0 %v5086
    %5150 = vmatpush1.msra.mxu0 %v5085
    %5151 = vmatprep.subr.mxu0 %v5088
    %5152 = vmatpush1.msra.mxu0 %v5087
    %5153 = vmatprep.subr.mxu0 %v5090
    %5154 = vmatpush1.msra.mxu0 %v5089
    %5155 = vmatprep.subr.mxu0 %v5092
    %5156 = vmatpush1.msra.mxu0 %v5091
    %5157 = vmatprep.subr.mxu0 %v5094
    %5158 = vmatpush1.msra.mxu0 %v5093
    %5159 = vmatprep.subr.mxu0 %v5096
    %5160 = vmatpush1.msra.mxu0 %v5095
    %5161 = vmatprep.subr.mxu0 %v5098
    %5162 = vmatpush1.msra.mxu0 %v5097
    %5163 = vmatprep.subr.mxu0 %v5100
    %5164 = vmatpush1.msra.mxu0 %v5099
    %5165 = vmatprep.subr.mxu0 %v5102
    %5166 = vmatpush1.msra.mxu0 %v5101
    %5167 = vmatprep.subr.mxu0 %v5104
    %5168 = vmatpush1.msra.mxu0 %v5103
    %5169 = vmatprep.subr.mxu0 %v5106
    %5170 = vmatpush1.msra.mxu0 %v5105
    %5171 = vmatprep.subr.mxu0 %v5108
    %5172 = vmatpush1.msra.mxu0 %v5107
    %5173 = vmatprep.subr.mxu0 %v5110
    %5174 = vmatpush1.msra.mxu0 %v5109
    %5175 = vmatprep.subr.mxu0 %v5112
    %5176 = vmatpush1.msra.mxu0 %v5111
    %5177 = vmatprep.subr.mxu0 %v5114
    %5178 = vmatpush1.msra.mxu0 %v5113
    %5179 = vmatprep.subr.mxu0 %v5116
    %5180 = vmatpush1.msra.mxu0 %v5115
    %5181 = vmatprep.mubr.f32.mxu0 %v5046
    %5182 = vmatmul.mubr.f32.gmra.mrb[0].mxu0 %v5045
    %v5183 = vpop.f32.mrb[0].mxu0
    %v5184 = vadd.f32 0.0, %v5183
    %v5185 = vpop.f32.mrb[0].mxu0
    %v5186 = vadd.f32 0.0, %v5185
    %5187 = vmatprep.mubr.f32.mxu0 %v5048
    %5188 = vmatmul.mubr.f32.gmra.mrb[0].mxu0 %v5047
    %v5189 = vpop.f32.mrb[0].mxu0
    %v5190 = vadd.f32 0.0, %v5189
    %v5191 = vpop.f32.mrb[0].mxu0
    %v5192 = vadd.f32 0.0, %v5191
    %5193 = vmatprep.mubr.f32.mxu0 %v5050
    %5194 = vmatmul.mubr.f32.gmra.mrb[0].mxu0 %v5049
    %v5195 = vpop.f32.mrb[0].mxu0
    %v5196 = vadd.f32 0.0, %v5195
    %v5197 = vpop.f32.mrb[0].mxu0
    %v5198 = vadd.f32 0.0, %v5197
    %5199 = vmatprep.mubr.f32.mxu0 %v5052
    %5200 = vmatmul.mubr.f32.gmra.mrb[0].mxu0 %v5051
    %v5201 = vpop.f32.mrb[0].mxu0
    %v5202 = vadd.f32 0.0, %v5201
    %v5203 = vpop.f32.mrb[0].mxu0
    %v5204 = vadd.f32 0.0, %v5203
    %5205 = vdwg.mxu0
    %5206 = vmatprep.subr.mxu0 %v4982
    %5207 = vmatpush1.msra.mxu0 %v4981
    %5208 = vmatprep.subr.mxu0 %v4984
    %5209 = vmatpush1.msra.mxu0 %v4983
    %5210 = vmatprep.subr.mxu0 %v4986
    %5211 = vmatpush1.msra.mxu0 %v4985
    %5212 = vmatprep.subr.mxu0 %v4988
    %5213 = vmatpush1.msra.mxu0 %v4987
    %5214 = vmatprep.subr.mxu0 %v4990
    %5215 = vmatpush1.msra.mxu0 %v4989
    %5216 = vmatprep.subr.mxu0 %v4992
    %5217 = vmatpush1.msra.mxu0 %v4991
    %5218 = vmatprep.subr.mxu0 %v4994
    %5219 = vmatpush1.msra.mxu0 %v4993
    %5220 = vmatprep.subr.mxu0 %v4996
    %5221 = vmatpush1.msra.mxu0 %v4995
    %5222 = vmatprep.subr.mxu0 %v4998
    %5223 = vmatpush1.msra.mxu0 %v4997
    %5224 = vmatprep.subr.mxu0 %v5000
    %5225 = vmatpush1.msra.mxu0 %v4999
    %5226 = vmatprep.subr.mxu0 %v5002
    %5227 = vmatpush1.msra.mxu0 %v5001
    %5228 = vmatprep.subr.mxu0 %v5004
    %5229 = vmatpush1.msra.mxu0 %v5003
    %5230 = vmatprep.subr.mxu0 %v5006
    %5231 = vmatpush1.msra.mxu0 %v5005
    %5232 = vmatprep.subr.mxu0 %v5008
    %5233 = vmatpush1.msra.mxu0 %v5007
    %5234 = vmatprep.subr.mxu0 %v5010
    %5235 = vmatpush1.msra.mxu0 %v5009
    %5236 = vmatprep.subr.mxu0 %v5012
    %5237 = vmatpush1.msra.mxu0 %v5011
    %5238 = vmatprep.subr.mxu0 %v5014
    %5239 = vmatpush1.msra.mxu0 %v5013
    %5240 = vmatprep.subr.mxu0 %v5016
    %5241 = vmatpush1.msra.mxu0 %v5015
    %5242 = vmatprep.subr.mxu0 %v5018
    %5243 = vmatpush1.msra.mxu0 %v5017
    %5244 = vmatprep.subr.mxu0 %v5020
    %5245 = vmatpush1.msra.mxu0 %v5019
    %5246 = vmatprep.subr.mxu0 %v5022
    %5247 = vmatpush1.msra.mxu0 %v5021
    %5248 = vmatprep.subr.mxu0 %v5024
    %5249 = vmatpush1.msra.mxu0 %v5023
    %5250 = vmatprep.subr.mxu0 %v5026
    %5251 = vmatpush1.msra.mxu0 %v5025
    %5252 = vmatprep.subr.mxu0 %v5028
    %5253 = vmatpush1.msra.mxu0 %v5027
    %5254 = vmatprep.subr.mxu0 %v5030
    %5255 = vmatpush1.msra.mxu0 %v5029
    %5256 = vmatprep.subr.mxu0 %v5032
    %5257 = vmatpush1.msra.mxu0 %v5031
    %5258 = vmatprep.subr.mxu0 %v5034
    %5259 = vmatpush1.msra.mxu0 %v5033
    %5260 = vmatprep.subr.mxu0 %v5036
    %5261 = vmatpush1.msra.mxu0 %v5035
    %5262 = vmatprep.subr.mxu0 %v5038
    %5263 = vmatpush1.msra.mxu0 %v5037
    %5264 = vmatprep.subr.mxu0 %v5040
    %5265 = vmatpush1.msra.mxu0 %v5039
    %5266 = vmatprep.subr.mxu0 %v5042
    %5267 = vmatpush1.msra.mxu0 %v5041
    %5268 = vmatprep.subr.mxu0 %v5044
    %5269 = vmatpush1.msra.mxu0 %v5043
    %5270 = vmatprep.mubr.f32.mxu0 %v4974
    %5271 = vmatmul.mubr.f32.gmra.mrb[0].mxu0 %v4973
    %v5272 = vpop.f32.mrb[0].mxu0
    %v5273 = vadd.f32 %v5184, %v5272
    %v5274 = vpop.f32.mrb[0].mxu0
    %v5275 = vadd.f32 %v5186, %v5274
    %5276 = vmatprep.mubr.f32.mxu0 %v4976
    %5277 = vmatmul.mubr.f32.gmra.mrb[0].mxu0 %v4975
    %v5278 = vpop.f32.mrb[0].mxu0
    %v5279 = vadd.f32 %v5190, %v5278
    %v5280 = vpop.f32.mrb[0].mxu0
    %v5281 = vadd.f32 %v5192, %v5280
    %5282 = vmatprep.mubr.f32.mxu0 %v4978
    %5283 = vmatmul.mubr.f32.gmra.mrb[0].mxu0 %v4977
    %v5284 = vpop.f32.mrb[0].mxu0
    %v5285 = vadd.f32 %v5196, %v5284
    %v5286 = vpop.f32.mrb[0].mxu0
    %v5287 = vadd.f32 %v5198, %v5286
    %5288 = vmatprep.mubr.f32.mxu0 %v4980
    %5289 = vmatmul.mubr.f32.gmra.mrb[0].mxu0 %v4979
    %v5290 = vpop.f32.mrb[0].mxu0
    %v5291 = vadd.f32 %v5202, %v5290
    %v5292 = vpop.f32.mrb[0].mxu0
    %v5293 = vadd.f32 %v5204, %v5292
    %5294 = vdwg.mxu0
    %v5295 = vadd.f32 %v5273, %v124
    %v5296 = vadd.f32 %v5275, %v125
    %v5297 = vadd.f32 %v5279, %v126
    %v5298 = vadd.f32 %v5281, %v127
    %v5299 = vadd.f32 %v5285, %v128
    %v5300 = vadd.f32 %v5287, %v129
    %v5301 = vadd.f32 %v5291, %v130
    %v5302 = vadd.f32 %v5293, %v131
    %5303 = vst [vmem:[#allocation13] sm:$0xff] %v5295
    %5304 = vst [vmem:[#allocation13 + $0x8] sm:$0xff] %v5296
    %5305 = vst [vmem:[#allocation13 + $0x10] sm:$0xff] %v5297
    %5306 = vst [vmem:[#allocation13 + $0x18] sm:$0xff] %v5298
    %5307 = vst [vmem:[#allocation13 + $0x20] sm:$0xff] %v5299
    %5308 = vst [vmem:[#allocation13 + $0x28] sm:$0xff] %v5300
    %5309 = vst [vmem:[#allocation13 + $0x30] sm:$0xff] %v5301
    %5310 = vst [vmem:[#allocation13 + $0x38] sm:$0xff] %v5302
    // Predicated region
    $region66: #{tpu_custom_call.1} parent=1 // pred_check
      _
    $region67: #{tpu_custom_call.1} parent=1 // pred_check_branch
      %5312 = sbr.rel (0) target = $region69
    $region68: #{tpu_custom_call.1} parent=1 // pred_region
      %s5314 = ssub.s32 1024, 1024
      %5315 = vsyncadd [#allocation6], %s5314
      %s5316 = sshll.u32 [#allocation13], 4
      %s5317 = int_to_ptr.vmem [resolvable:$true] %s5316
      %5322 = dma.vmem_to_hbm [thread:$0]  %s5317, 1024, %s11, [#allocation6], 256, 256, 16
    $region69: #{tpu_custom_call.1} parent=1 // pred_fallthru
      _
    // Predicated region
    $region70: #{tpu_custom_call.1} parent=1 // pred_check
      _
    $region71: #{tpu_custom_call.1} parent=1 // pred_check_branch
      %5324 = sbr.rel (0) target = $region73
    $region72: #{tpu_custom_call.1} parent=1 // pred_region
      %5325 = dma.done [#allocation6], 1024
    $region73: #{tpu_custom_call.1} parent=1 // pred_fallthru
      _
    %5326 = vsyncpa [#allocation5], 1
    %5327 = vsyncpa [#allocation8], 1
    %5328 = vsyncpa [#allocation11], 1
    %5329 = vsyncpa [#allocation6], 1

</llo_original>
